<compile_context>
chip_gen: v6e
topology: v6e:2x2x1
jax: 0.10.0
libtpu: 0.0.40
codegen_flags: <defaults>
</compile_context>

<pallas_src>
import jax
import jax.numpy as jnp
from jax.experimental import pallas as pl
from jax.experimental.pallas import tpu as pltpu

# ----------------------------- model configuration -----------------------------
NUM_NODES = 8          # num_nodes
RNN_UNITS = 16         # rnn_units
NUM_LAYERS = 1         # num_rnn_layers
INPUT_DIM = 1          # input_dim
OUTPUT_DIM = 1         # output_dim
SEQ_LEN = 6            # seq_len
HORIZON = 3            # horizon
BATCH = 2              # batch_size
HS = NUM_NODES * RNN_UNITS     # hidden_state_size = 128
NIN = NUM_NODES * INPUT_DIM    # 8
NOUT = NUM_NODES * OUTPUT_DIM  # 8

FP = jnp.float32


# ----------------------------- slab layouts (static) -----------------------------
def build_layouts(num_layers):
    hs3 = 3 * HS

    def make(entries):
        lay, off = {}, 0
        for name, w in entries:
            lay[name] = (off, w)
            off += w
        return lay, off

    # slab_x: 8-row input-path weights (encoder layer-0 raw input, decoder layer-0 raw input)
    x_entries = [("enc0_x_zrc", hs3), ("dec0_i_zrc", hs3)]

    # slab_h: 128-row (HS-row) weights
    h_entries = []
    for l in range(num_layers):
        h_entries += [(f"enc{l}_h_zr", 2 * HS), (f"enc{l}_h_c", HS)]
        if l >= 1:
            h_entries += [(f"enc{l}_x_zrc", hs3)]
    for l in range(num_layers):
        h_entries += [(f"dec{l}_h_zr", 2 * HS), (f"dec{l}_h_c", HS)]
        h_entries += [("dec0_w_zrc", hs3)] if l == 0 else [(f"dec{l}_x_zrc", hs3)]
    h_entries += [("awh", HS), ("awe", HS), ("proj_o", NOUT), ("proj_wt", NOUT)]

    # slab_v: 1-row biases / vectors
    v_entries = [(f"enc{l}_b_zrc", hs3) for l in range(num_layers)]
    v_entries += [(f"dec{l}_b_zrc", hs3) for l in range(num_layers)]
    v_entries += [("ab", HS), ("av", HS), ("pinp_row", NOUT), ("pbr", NOUT)]

    return make(x_entries), make(h_entries), make(v_entries)


LAYOUTS = build_layouts(NUM_LAYERS)


# ----------------------------- fused Pallas kernel -----------------------------
def make_dcrnn_kernel(seq_len, horizon, num_layers, layouts):
    (lay_x, _), (lay_h, _), (lay_v, _) = layouts
    f32 = jnp.float32

    def kernel(x_ref, sx_ref, sh_ref, sv_ref, out_ref):
        B = x_ref.shape[0] // seq_len

        def hview(name):
            o, w = lay_h[name]
            return sh_ref.at[:, o:o + w]

        def xview(name):
            o, w = lay_x[name]
            return sx_ref.at[:, o:o + w]

        def vval(name):
            o, w = lay_v[name]
            return sv_ref[:, o:o + w]                     # (1, w)

        def mm(a, w_view):
            return jnp.dot(a, w_view[...], preferred_element_type=f32)

        def dcgru(h_prev, x_gates, h_zr, h_c):
            """x_gates: (B, 3*HS) input-path pre-activations (z|r|c) INCLUDING biases."""
            zr = mm(h_prev, h_zr) + x_gates[:, :2 * HS]   # one fused (HS, 2*HS) dot
            z = jax.nn.sigmoid(zr[:, :HS])
            r = jax.nn.sigmoid(zr[:, HS:])
            c = jnp.tanh(x_gates[:, 2 * HS:] + mm(r * h_prev, h_c))
            return c + z * (h_prev - c)                   # == z*h + (1-z)*c

        # ---- hoisted: ALL encoder layer-0 input-path gate contributions ----
        xin = x_ref[...]                                              # (S*B, N*in)
        enc0_in_gates = mm(xin, xview("enc0_x_zrc")) + vval("enc0_b_zrc")   # (S*B, 3HS)

        # ---------------- encoder over seq_len (encoder4attention) ----------------
        hidden = [jnp.zeros((B, HS), f32) for _ in range(num_layers)]
        enc_outs = []
        for t in range(seq_len):
            layer_in = dcgru(hidden[0], enc0_in_gates[t * B:(t + 1) * B, :],
                             hview("enc0_h_zr"), hview("enc0_h_c"))
            hidden[0] = layer_in
            for l in range(1, num_layers):
                xg = mm(layer_in, hview(f"enc{l}_x_zrc")) + vval(f"enc{l}_b_zrc")
                layer_in = dcgru(hidden[l], xg, hview(f"enc{l}_h_zr"), hview(f"enc{l}_h_c"))
                hidden[l] = layer_in
            enc_outs.append(layer_in)
        enc_hidden = list(hidden)

        # ---------------- decoder over horizon (decoder4attention) ----------------
        # NOTE: DCRNNModel.forward passes (encoder_outputs, encoder_hidden_state) into
        # decoder4attention positionally SWAPPED; replicated exactly here.
        attn_enc = enc_hidden            # plays the decoder's "encoder_outputs" role (K = L)
        dec_hidden = enc_outs            # plays the decoder's "hidden_state" role at step 0
        dec_input = xin[(seq_len - 1) * B:seq_len * B, :]             # go symbol (B, N*out)

        dec0_b = vval("dec0_b_zrc")
        pbr = vval("pbr")
        pinp_row = vval("pinp_row")      # scalar*I projection path (OUTPUT_DIM == 1)

        if num_layers == 1:
            # softmax over K=1 is identically 1 -> attention is a no-op, weighted is constant.
            weighted = attn_enc[0]
            w_gates = mm(weighted, hview("dec0_w_zrc")) + dec0_b      # hoisted (B, 3HS)
            wt_proj = mm(weighted, hview("proj_wt"))                  # hoisted (B, NOUT)
        else:
            ab = vval("ab")
            av = vval("av")
            enc_we = [mm(e, hview("awe")) + ab for e in attn_enc]     # hoisted invariants

        for t in range(horizon):
            if num_layers > 1:
                hq = mm(dec_hidden[-1], hview("awh"))
                scores = [jnp.sum(jnp.tanh(ew + hq) * av, axis=-1, keepdims=True)
                          for ew in enc_we]
                score = jnp.concatenate(scores, axis=1)
                e = jnp.exp(score - jnp.max(score, axis=1, keepdims=True))
                a = e * pl.reciprocal(jnp.sum(e, axis=1, keepdims=True), approx=True)
                weighted = a[:, 0:1] * attn_enc[0]
                for k in range(1, num_layers):
                    weighted = weighted + a[:, k:k + 1] * attn_enc[k]
                w_gates = mm(weighted, hview("dec0_w_zrc")) + dec0_b
                wt_proj = mm(weighted, hview("proj_wt"))

            # decoder DCGRU stack (layer 0: raw-input path + hoisted weighted path)
            xg0 = mm(dec_input, xview("dec0_i_zrc")) + w_gates
            h_out = dcgru(dec_hidden[0], xg0, hview("dec0_h_zr"), hview("dec0_h_c"))
            new_hidden = [h_out]
            for l in range(1, num_layers):
                xg = mm(h_out, hview(f"dec{l}_x_zrc")) + vval(f"dec{l}_b_zrc")
                h_out = dcgru(dec_hidden[l], xg, hview(f"dec{l}_h_zr"), hview(f"dec{l}_h_c"))
                new_hidden.append(h_out)
            dec_hidden = new_hidden

            # fused projection: 1 MXU issue + elementwise input-path scale
            proj = mm(h_out, hview("proj_o")) + wt_proj + dec_input * pinp_row + pbr
            out_ref[t] = proj
            dec_input = proj

    return kernel


def dcrnn_forward_fused(slabs, inputs):
    """inputs: (seq_len, B, N*input_dim) -> (horizon, B, N*output_dim)."""
    slab_x, slab_h, slab_v = slabs
    S, B, _ = inputs.shape
    x2d = inputs.reshape(S * B, NUM_NODES * INPUT_DIM)
    vmem = pl.BlockSpec(memory_space=pltpu.MemorySpace.VMEM)
    kernel = make_dcrnn_kernel(SEQ_LEN, HORIZON, NUM_LAYERS, LAYOUTS)
    return pl.pallas_call(
        kernel,
        out_shape=jax.ShapeDtypeStruct((HORIZON, B, NOUT), FP),
        in_specs=[vmem, vmem, vmem, vmem],
        out_specs=vmem,
    )(x2d, slab_x, slab_h, slab_v)


# ----------------------------- weight expansion (init time) -----------------------------
def expand_params(params):
    """Fold the one-hop graph conv and per-node gate weights into lane-dense
    kron-expanded matrices and pack them into 3 VMEM slabs."""
    (lay_x, wx), (lay_h, wh), (lay_v, wv) = LAYOUTS
    adj_t = params["adj"].T
    R, N = RNN_UNITS, NUM_NODES
    # TODO(synk): pinp (input->projection block) is scalar*I only for OUTPUT_DIM == 1;
    # generalize to a small matmul path for OUTPUT_DIM > 1.
    assert OUTPUT_DIM == 1 and INPUT_DIM == 1

    def x_zrc(p, rows):
        wzx, wcx = p["wzx"][rows], p["wcx"][rows]
        return jnp.concatenate([jnp.kron(adj_t, wzx[:, :R]),
                                jnp.kron(adj_t, wzx[:, R:]),
                                jnp.kron(adj_t, wcx)], axis=1)

    def h_zr(p):
        wzh = p["wzh"]
        return jnp.concatenate([jnp.kron(adj_t, wzh[:, :R]),
                                jnp.kron(adj_t, wzh[:, R:])], axis=1)

    def h_c(p):
        return jnp.kron(adj_t, p["wch"])

    def b_zrc(p):
        return jnp.concatenate([jnp.tile(p["bz"][:, :R], (1, N)),
                                jnp.tile(p["bz"][:, R:], (1, N)),
                                jnp.tile(p["bc"], (1, N))], axis=1)

    enc = params["enc_gru"]
    dec = params["dec"]["gru"]
    attn = params["dec"]["attn"]
    pw, pb = params["dec"]["proj_w"], params["dec"]["proj_b"]
    eye_n = jnp.eye(N, dtype=FP)

    blocks_x = {"enc0_x_zrc": x_zrc(enc[0], slice(None)),
                "dec0_i_zrc": x_zrc(dec[0], slice(0, OUTPUT_DIM))}

    blocks_h = {}
    for l in range(NUM_LAYERS):
        blocks_h[f"enc{l}_h_zr"] = h_zr(enc[l])
        blocks_h[f"enc{l}_h_c"] = h_c(enc[l])
        if l >= 1:
            blocks_h[f"enc{l}_x_zrc"] = x_zrc(enc[l], slice(None))
    for l in range(NUM_LAYERS):
        blocks_h[f"dec{l}_h_zr"] = h_zr(dec[l])
        blocks_h[f"dec{l}_h_c"] = h_c(dec[l])
        if l == 0:
            blocks_h["dec0_w_zrc"] = x_zrc(dec[0], slice(OUTPUT_DIM, None))
        else:
            blocks_h[f"dec{l}_x_zrc"] = x_zrc(dec[l], slice(None))
    blocks_h["awh"] = attn["wh"]
    blocks_h["awe"] = attn["we"]
    blocks_h["proj_o"] = jnp.kron(eye_n, pw[:R, :])
    blocks_h["proj_wt"] = jnp.kron(eye_n, pw[R:2 * R, :])

    blocks_v = {}
    for l in range(NUM_LAYERS):
        blocks_v[f"enc{l}_b_zrc"] = b_zrc(enc[l])
        blocks_v[f"dec{l}_b_zrc"] = b_zrc(dec[l])
    blocks_v["ab"] = attn["b"]
    blocks_v["av"] = attn["v"].reshape(1, HS)
    blocks_v["pinp_row"] = jnp.full((1, NOUT), pw[2 * R, 0], dtype=FP)
    blocks_v["pbr"] = jnp.tile(pb, (1, N))

    def assemble(layout, width, blocks, rows):
        parts = []
        for name, (_o, w) in sorted(layout.items(), key=lambda kv: kv[1][0]):
            b = blocks[name].astype(FP)
            assert b.shape == (rows, w), (name, b.shape, (rows, w))
            parts.append(b)
        slab = jnp.concatenate(parts, axis=1)
        assert slab.shape == (rows, width)
        pad = (-width) % 128
        if pad:
            slab = jnp.pad(slab, ((0, 0), (0, pad)))
        return slab

    slab_x = assemble(lay_x, wx, blocks_x, NIN)
    slab_h = assemble(lay_h, wh, blocks_h, HS)
    slab_v = assemble(lay_v, wv, blocks_v, 1)
    return slab_x, slab_h, slab_v


# ----------------------------- deterministic parameter init -----------------------------
def init_params(key):
    def nrm(k, shape, scale=0.1):
        return (scale * jax.random.normal(k, shape)).astype(FP)

    keys = iter(jax.random.split(key, 64))

    # row-normalized random adjacency as the graph kernel
    adj_raw = jax.random.uniform(next(keys), (NUM_NODES, NUM_NODES), dtype=FP) + 0.1
    adj = adj_raw / jnp.sum(adj_raw, axis=1, keepdims=True)

    def gru_params(in_dim):
        return {
            "wzx": nrm(next(keys), (in_dim, 2 * RNN_UNITS)),
            "wzh": nrm(next(keys), (RNN_UNITS, 2 * RNN_UNITS)),
            "bz": nrm(next(keys), (1, 2 * RNN_UNITS)),
            "wcx": nrm(next(keys), (in_dim, RNN_UNITS)),
            "wch": nrm(next(keys), (RNN_UNITS, RNN_UNITS)),
            "bc": nrm(next(keys), (1, RNN_UNITS)),
        }

    enc_gru = [gru_params(INPUT_DIM if l == 0 else RNN_UNITS) for l in range(NUM_LAYERS)]
    dec_gru = [gru_params(OUTPUT_DIM + RNN_UNITS if l == 0 else RNN_UNITS)
               for l in range(NUM_LAYERS)]

    attn = {
        # split of nn.Linear(2*HS, HS) on cat([hidden, enc]): hidden@Wh + enc@We + b
        "wh": nrm(next(keys), (HS, HS)),
        "we": nrm(next(keys), (HS, HS)),
        "b": nrm(next(keys), (1, HS)),
        "v": jax.random.uniform(next(keys), (HS, 1), dtype=FP),
    }

    dec = {
        "attn": attn,
        "gru": dec_gru,
        "proj_w": nrm(next(keys), (2 * RNN_UNITS + OUTPUT_DIM, OUTPUT_DIM)),
        "proj_b": nrm(next(keys), (1, OUTPUT_DIM)),
    }
    return {"adj": adj, "enc_gru": enc_gru, "dec": dec}


# ----------------------------- pure-JAX reference (per-node math) -----------------------------
def reference_forward(params, inputs):
    P = jax.lax.Precision.HIGHEST
    adj = params["adj"]
    R = RNN_UNITS

    def cell(x_bn, h_bn, p):
        gx = jnp.einsum("nm,bmd->bnd", adj, x_bn, precision=P)
        gh = jnp.einsum("nm,bmr->bnr", adj, h_bn, precision=P)
        zr = jax.nn.sigmoid(jnp.einsum("bnd,dg->bng", gx, p["wzx"], precision=P)
                            + jnp.einsum("bnr,rg->bng", gh, p["wzh"], precision=P)
                            + p["bz"][0])
        z, r = zr[..., :R], zr[..., R:]
        grh = jnp.einsum("nm,bmr->bnr", adj, r * h_bn, precision=P)
        c = jnp.tanh(jnp.einsum("bnd,dr->bnr", gx, p["wcx"], precision=P)
                     + jnp.einsum("bnr,rs->bns", grh, p["wch"], precision=P)
                     + p["bc"][0])
        return z * h_bn + (1.0 - z) * c

    S, B, _ = inputs.shape
    hidden = [jnp.zeros((B, NUM_NODES, R), FP) for _ in range(NUM_LAYERS)]
    enc_outs = []
    for t in range(S):
        layer_in = inputs[t].reshape(B, NUM_NODES, -1)
        for l in range(NUM_LAYERS):
            hidden[l] = cell(layer_in, hidden[l], params["enc_gru"][l])
            layer_in = hidden[l]
        enc_outs.append(layer_in.reshape(B, HS))
    enc_hidden = [h.reshape(B, HS) for h in hidden]

    attn = params["dec"]["attn"]
    dec_hidden = list(enc_outs)          # swapped wiring at horizon step 0
    dec_input = inputs[-1]
    outs = []
    for _t in range(HORIZON):
        h_att = dec_hidden[-1]
        hproj = jnp.dot(h_att, attn["wh"], precision=P) + attn["b"]
        scores = []
        for enc_k in enc_hidden:
            energy = jnp.tanh(jnp.dot(enc_k, attn["we"], precision=P) + hproj)
            scores.append((energy * attn["v"].reshape(1, HS)).sum(-1, keepdims=True))
        score = scores[0] if len(scores) == 1 else jnp.concatenate(scores, axis=1)
        a = jax.nn.softmax(score, axis=1)
        weighted = sum(a[:, k:k + 1] * enc_hidden[k] for k in range(len(enc_hidden)))

        x0 = jnp.concatenate([dec_input.reshape(B, NUM_NODES, OUTPUT_DIM),
                              weighted.reshape(B, NUM_NODES, R)], axis=2)
        new_hidden = []
        layer_in = x0
        for l in range(NUM_LAYERS):
            h_new = cell(layer_in, dec_hidden[l].reshape(B, NUM_NODES, R),
                         params["dec"]["gru"][l])
            new_hidden.append(h_new.reshape(B, HS))
            layer_in = h_new
        dec_hidden = new_hidden

        proj_in = jnp.concatenate(
            [layer_in.reshape(B * NUM_NODES, R),
             weighted.reshape(B * NUM_NODES, R),
             dec_input.reshape(B * NUM_NODES, OUTPUT_DIM)], axis=1)
        proj = jnp.dot(proj_in, params["dec"]["proj_w"], precision=P) + params["dec"]["proj_b"]
        out = proj.reshape(B, -1)
        outs.append(out)
        dec_input = out
    return jnp.stack(outs, axis=0)


# ----------------------------- main -----------------------------
if __name__ == "__main__":
    key = jax.random.PRNGKey(0)
    pkey, xkey = jax.random.split(key)
    params = init_params(pkey)
    slabs = expand_params(params)

    # inputs: (seq_len, batch, num_nodes * input_dim)
    inputs = jax.random.normal(xkey, (SEQ_LEN, BATCH, NUM_NODES * INPUT_DIM), dtype=FP)

    fwd = jax.jit(dcrnn_forward_fused)
    out = fwd(slabs, inputs)
    jax.block_until_ready(out)

    assert out.shape == (HORIZON, BATCH, NOUT)
    assert out.dtype == jnp.float32

    ref = reference_forward(params, inputs)
    assert jnp.allclose(out, ref, atol=3e-3, rtol=3e-2), float(jnp.max(jnp.abs(out - ref)))

    print("KERNEL_OK")
</pallas_src>

<mosaic_0001>
module attributes {stable_mosaic.version = 11 : i64} {
  func.func @kernel(%arg0: memref<12x8xf32, #tpu.memory_space<vmem>>, %arg1: memref<8x768xf32, #tpu.memory_space<vmem>>, %arg2: memref<128x1536xf32, #tpu.memory_space<vmem>>, %arg3: memref<1x1152xf32, #tpu.memory_space<vmem>>, %arg4: memref<3x2x8xf32, #tpu.memory_space<vmem>>) attributes {dimension_semantics = [], scalar_prefetch = 0 : i64, scratch_operands = 0 : i64, tpu.core_type = #tpu.core_type<tc>} {
    %c0 = arith.constant 0 : index
    %c0_0 = arith.constant 0 : index
    %0 = vector.load %arg0[%c0, %c0_0] : memref<12x8xf32, #tpu.memory_space<vmem>>, vector<12x8xf32>
    %c0_1 = arith.constant 0 : index
    %c0_2 = arith.constant 0 : index
    %1 = vector.load %arg1[%c0_1, %c0_2] : memref<8x768xf32, #tpu.memory_space<vmem>>, vector<8x384xf32>
    %cst = arith.constant dense<0.000000e+00> : vector<12x384xf32>
    %2 = tpu.matmul %0, %1, %cst {dimension_numbers = #tpu.dot_dimension_numbers<[1], [0], [0], [1], [0, 0, 1, 1], [], []>} : vector<12x8xf32>, vector<8x384xf32>, vector<12x384xf32> -> vector<12x384xf32>
    %c0_3 = arith.constant 0 : index
    %c0_4 = arith.constant 0 : index
    %3 = vector.load %arg3[%c0_3, %c0_4] : memref<1x1152xf32, #tpu.memory_space<vmem>>, vector<1x384xf32>
    %4 = vector.broadcast %3 : vector<1x384xf32> to vector<12x384xf32>
    %5 = arith.addf %2, %4 : vector<12x384xf32>
    %cst_5 = arith.constant 0.000000e+00 : f32
    %6 = vector.broadcast %cst_5 : f32 to vector<2x128xf32>
    %7 = vector.extract_strided_slice %5 {offsets = [0, 0], sizes = [2, 384], strides = [1, 1]} : vector<12x384xf32> to vector<2x384xf32>
    %c0_6 = arith.constant 0 : index
    %c0_7 = arith.constant 0 : index
    %8 = vector.load %arg2[%c0_6, %c0_7] : memref<128x1536xf32, #tpu.memory_space<vmem>>, vector<128x256xf32>
    %cst_8 = arith.constant dense<0.000000e+00> : vector<2x256xf32>
    %9 = tpu.matmul %6, %8, %cst_8 {dimension_numbers = #tpu.dot_dimension_numbers<[1], [0], [0], [1], [0, 0, 1, 1], [], []>} : vector<2x128xf32>, vector<128x256xf32>, vector<2x256xf32> -> vector<2x256xf32>
    %10 = vector.extract_strided_slice %7 {offsets = [0, 0], sizes = [2, 256], strides = [1, 1]} : vector<2x384xf32> to vector<2x256xf32>
    %11 = arith.addf %9, %10 : vector<2x256xf32>
    %12 = vector.extract_strided_slice %11 {offsets = [0, 0], sizes = [2, 128], strides = [1, 1]} : vector<2x256xf32> to vector<2x128xf32>
    %13 = arith.negf %12 : vector<2x128xf32>
    %14 = math.exp %13 : vector<2x128xf32>
    %cst_9 = arith.constant 1.000000e+00 : f32
    %15 = vector.broadcast %cst_9 : f32 to vector<2x128xf32>
    %16 = arith.addf %15, %14 : vector<2x128xf32>
    %17 = arith.divf %15, %16 : vector<2x128xf32>
    %18 = vector.extract_strided_slice %11 {offsets = [0, 128], sizes = [2, 128], strides = [1, 1]} : vector<2x256xf32> to vector<2x128xf32>
    %19 = arith.negf %18 : vector<2x128xf32>
    %20 = math.exp %19 : vector<2x128xf32>
    %cst_10 = arith.constant 1.000000e+00 : f32
    %21 = vector.broadcast %cst_10 : f32 to vector<2x128xf32>
    %22 = arith.addf %21, %20 : vector<2x128xf32>
    %23 = arith.divf %21, %22 : vector<2x128xf32>
    %24 = vector.extract_strided_slice %7 {offsets = [0, 256], sizes = [2, 128], strides = [1, 1]} : vector<2x384xf32> to vector<2x128xf32>
    %25 = arith.mulf %23, %6 : vector<2x128xf32>
    %c0_11 = arith.constant 0 : index
    %c256 = arith.constant 256 : index
    %26 = vector.load %arg2[%c0_11, %c256] : memref<128x1536xf32, #tpu.memory_space<vmem>>, vector<128x128xf32>
    %cst_12 = arith.constant dense<0.000000e+00> : vector<2x128xf32>
    %27 = tpu.matmul %25, %26, %cst_12 {dimension_numbers = #tpu.dot_dimension_numbers<[1], [0], [0], [1], [0, 0, 1, 1], [], []>} : vector<2x128xf32>, vector<128x128xf32>, vector<2x128xf32> -> vector<2x128xf32>
    %28 = arith.addf %24, %27 : vector<2x128xf32>
    %29 = math.tanh %28 : vector<2x128xf32>
    %30 = arith.subf %6, %29 : vector<2x128xf32>
    %31 = arith.mulf %17, %30 : vector<2x128xf32>
    %32 = arith.addf %29, %31 : vector<2x128xf32>
    %33 = vector.extract_strided_slice %5 {offsets = [2, 0], sizes = [2, 384], strides = [1, 1]} : vector<12x384xf32> to vector<2x384xf32>
    %c0_13 = arith.constant 0 : index
    %c0_14 = arith.constant 0 : index
    %34 = vector.load %arg2[%c0_13, %c0_14] : memref<128x1536xf32, #tpu.memory_space<vmem>>, vector<128x256xf32>
    %cst_15 = arith.constant dense<0.000000e+00> : vector<2x256xf32>
    %35 = tpu.matmul %32, %34, %cst_15 {dimension_numbers = #tpu.dot_dimension_numbers<[1], [0], [0], [1], [0, 0, 1, 1], [], []>} : vector<2x128xf32>, vector<128x256xf32>, vector<2x256xf32> -> vector<2x256xf32>
    %36 = vector.extract_strided_slice %33 {offsets = [0, 0], sizes = [2, 256], strides = [1, 1]} : vector<2x384xf32> to vector<2x256xf32>
    %37 = arith.addf %35, %36 : vector<2x256xf32>
    %38 = vector.extract_strided_slice %37 {offsets = [0, 0], sizes = [2, 128], strides = [1, 1]} : vector<2x256xf32> to vector<2x128xf32>
    %39 = arith.negf %38 : vector<2x128xf32>
    %40 = math.exp %39 : vector<2x128xf32>
    %cst_16 = arith.constant 1.000000e+00 : f32
    %41 = vector.broadcast %cst_16 : f32 to vector<2x128xf32>
    %42 = arith.addf %41, %40 : vector<2x128xf32>
    %43 = arith.divf %41, %42 : vector<2x128xf32>
    %44 = vector.extract_strided_slice %37 {offsets = [0, 128], sizes = [2, 128], strides = [1, 1]} : vector<2x256xf32> to vector<2x128xf32>
    %45 = arith.negf %44 : vector<2x128xf32>
    %46 = math.exp %45 : vector<2x128xf32>
    %cst_17 = arith.constant 1.000000e+00 : f32
    %47 = vector.broadcast %cst_17 : f32 to vector<2x128xf32>
    %48 = arith.addf %47, %46 : vector<2x128xf32>
    %49 = arith.divf %47, %48 : vector<2x128xf32>
    %50 = vector.extract_strided_slice %33 {offsets = [0, 256], sizes = [2, 128], strides = [1, 1]} : vector<2x384xf32> to vector<2x128xf32>
    %51 = arith.mulf %49, %32 : vector<2x128xf32>
    %c0_18 = arith.constant 0 : index
    %c256_19 = arith.constant 256 : index
    %52 = vector.load %arg2[%c0_18, %c256_19] : memref<128x1536xf32, #tpu.memory_space<vmem>>, vector<128x128xf32>
    %cst_20 = arith.constant dense<0.000000e+00> : vector<2x128xf32>
    %53 = tpu.matmul %51, %52, %cst_20 {dimension_numbers = #tpu.dot_dimension_numbers<[1], [0], [0], [1], [0, 0, 1, 1], [], []>} : vector<2x128xf32>, vector<128x128xf32>, vector<2x128xf32> -> vector<2x128xf32>
    %54 = arith.addf %50, %53 : vector<2x128xf32>
    %55 = math.tanh %54 : vector<2x128xf32>
    %56 = arith.subf %32, %55 : vector<2x128xf32>
    %57 = arith.mulf %43, %56 : vector<2x128xf32>
    %58 = arith.addf %55, %57 : vector<2x128xf32>
    %59 = vector.extract_strided_slice %5 {offsets = [4, 0], sizes = [2, 384], strides = [1, 1]} : vector<12x384xf32> to vector<2x384xf32>
    %c0_21 = arith.constant 0 : index
    %c0_22 = arith.constant 0 : index
    %60 = vector.load %arg2[%c0_21, %c0_22] : memref<128x1536xf32, #tpu.memory_space<vmem>>, vector<128x256xf32>
    %cst_23 = arith.constant dense<0.000000e+00> : vector<2x256xf32>
    %61 = tpu.matmul %58, %60, %cst_23 {dimension_numbers = #tpu.dot_dimension_numbers<[1], [0], [0], [1], [0, 0, 1, 1], [], []>} : vector<2x128xf32>, vector<128x256xf32>, vector<2x256xf32> -> vector<2x256xf32>
    %62 = vector.extract_strided_slice %59 {offsets = [0, 0], sizes = [2, 256], strides = [1, 1]} : vector<2x384xf32> to vector<2x256xf32>
    %63 = arith.addf %61, %62 : vector<2x256xf32>
    %64 = vector.extract_strided_slice %63 {offsets = [0, 0], sizes = [2, 128], strides = [1, 1]} : vector<2x256xf32> to vector<2x128xf32>
    %65 = arith.negf %64 : vector<2x128xf32>
    %66 = math.exp %65 : vector<2x128xf32>
    %cst_24 = arith.constant 1.000000e+00 : f32
    %67 = vector.broadcast %cst_24 : f32 to vector<2x128xf32>
    %68 = arith.addf %67, %66 : vector<2x128xf32>
    %69 = arith.divf %67, %68 : vector<2x128xf32>
    %70 = vector.extract_strided_slice %63 {offsets = [0, 128], sizes = [2, 128], strides = [1, 1]} : vector<2x256xf32> to vector<2x128xf32>
    %71 = arith.negf %70 : vector<2x128xf32>
    %72 = math.exp %71 : vector<2x128xf32>
    %cst_25 = arith.constant 1.000000e+00 : f32
    %73 = vector.broadcast %cst_25 : f32 to vector<2x128xf32>
    %74 = arith.addf %73, %72 : vector<2x128xf32>
    %75 = arith.divf %73, %74 : vector<2x128xf32>
    %76 = vector.extract_strided_slice %59 {offsets = [0, 256], sizes = [2, 128], strides = [1, 1]} : vector<2x384xf32> to vector<2x128xf32>
    %77 = arith.mulf %75, %58 : vector<2x128xf32>
    %c0_26 = arith.constant 0 : index
    %c256_27 = arith.constant 256 : index
    %78 = vector.load %arg2[%c0_26, %c256_27] : memref<128x1536xf32, #tpu.memory_space<vmem>>, vector<128x128xf32>
    %cst_28 = arith.constant dense<0.000000e+00> : vector<2x128xf32>
    %79 = tpu.matmul %77, %78, %cst_28 {dimension_numbers = #tpu.dot_dimension_numbers<[1], [0], [0], [1], [0, 0, 1, 1], [], []>} : vector<2x128xf32>, vector<128x128xf32>, vector<2x128xf32> -> vector<2x128xf32>
    %80 = arith.addf %76, %79 : vector<2x128xf32>
    %81 = math.tanh %80 : vector<2x128xf32>
    %82 = arith.subf %58, %81 : vector<2x128xf32>
    %83 = arith.mulf %69, %82 : vector<2x128xf32>
    %84 = arith.addf %81, %83 : vector<2x128xf32>
    %85 = vector.extract_strided_slice %5 {offsets = [6, 0], sizes = [2, 384], strides = [1, 1]} : vector<12x384xf32> to vector<2x384xf32>
    %c0_29 = arith.constant 0 : index
    %c0_30 = arith.constant 0 : index
    %86 = vector.load %arg2[%c0_29, %c0_30] : memref<128x1536xf32, #tpu.memory_space<vmem>>, vector<128x256xf32>
    %cst_31 = arith.constant dense<0.000000e+00> : vector<2x256xf32>
    %87 = tpu.matmul %84, %86, %cst_31 {dimension_numbers = #tpu.dot_dimension_numbers<[1], [0], [0], [1], [0, 0, 1, 1], [], []>} : vector<2x128xf32>, vector<128x256xf32>, vector<2x256xf32> -> vector<2x256xf32>
    %88 = vector.extract_strided_slice %85 {offsets = [0, 0], sizes = [2, 256], strides = [1, 1]} : vector<2x384xf32> to vector<2x256xf32>
    %89 = arith.addf %87, %88 : vector<2x256xf32>
    %90 = vector.extract_strided_slice %89 {offsets = [0, 0], sizes = [2, 128], strides = [1, 1]} : vector<2x256xf32> to vector<2x128xf32>
    %91 = arith.negf %90 : vector<2x128xf32>
    %92 = math.exp %91 : vector<2x128xf32>
    %cst_32 = arith.constant 1.000000e+00 : f32
    %93 = vector.broadcast %cst_32 : f32 to vector<2x128xf32>
    %94 = arith.addf %93, %92 : vector<2x128xf32>
    %95 = arith.divf %93, %94 : vector<2x128xf32>
    %96 = vector.extract_strided_slice %89 {offsets = [0, 128], sizes = [2, 128], strides = [1, 1]} : vector<2x256xf32> to vector<2x128xf32>
    %97 = arith.negf %96 : vector<2x128xf32>
    %98 = math.exp %97 : vector<2x128xf32>
    %cst_33 = arith.constant 1.000000e+00 : f32
    %99 = vector.broadcast %cst_33 : f32 to vector<2x128xf32>
    %100 = arith.addf %99, %98 : vector<2x128xf32>
    %101 = arith.divf %99, %100 : vector<2x128xf32>
    %102 = vector.extract_strided_slice %85 {offsets = [0, 256], sizes = [2, 128], strides = [1, 1]} : vector<2x384xf32> to vector<2x128xf32>
    %103 = arith.mulf %101, %84 : vector<2x128xf32>
    %c0_34 = arith.constant 0 : index
    %c256_35 = arith.constant 256 : index
    %104 = vector.load %arg2[%c0_34, %c256_35] : memref<128x1536xf32, #tpu.memory_space<vmem>>, vector<128x128xf32>
    %cst_36 = arith.constant dense<0.000000e+00> : vector<2x128xf32>
    %105 = tpu.matmul %103, %104, %cst_36 {dimension_numbers = #tpu.dot_dimension_numbers<[1], [0], [0], [1], [0, 0, 1, 1], [], []>} : vector<2x128xf32>, vector<128x128xf32>, vector<2x128xf32> -> vector<2x128xf32>
    %106 = arith.addf %102, %105 : vector<2x128xf32>
    %107 = math.tanh %106 : vector<2x128xf32>
    %108 = arith.subf %84, %107 : vector<2x128xf32>
    %109 = arith.mulf %95, %108 : vector<2x128xf32>
    %110 = arith.addf %107, %109 : vector<2x128xf32>
    %111 = vector.extract_strided_slice %5 {offsets = [8, 0], sizes = [2, 384], strides = [1, 1]} : vector<12x384xf32> to vector<2x384xf32>
    %c0_37 = arith.constant 0 : index
    %c0_38 = arith.constant 0 : index
    %112 = vector.load %arg2[%c0_37, %c0_38] : memref<128x1536xf32, #tpu.memory_space<vmem>>, vector<128x256xf32>
    %cst_39 = arith.constant dense<0.000000e+00> : vector<2x256xf32>
    %113 = tpu.matmul %110, %112, %cst_39 {dimension_numbers = #tpu.dot_dimension_numbers<[1], [0], [0], [1], [0, 0, 1, 1], [], []>} : vector<2x128xf32>, vector<128x256xf32>, vector<2x256xf32> -> vector<2x256xf32>
    %114 = vector.extract_strided_slice %111 {offsets = [0, 0], sizes = [2, 256], strides = [1, 1]} : vector<2x384xf32> to vector<2x256xf32>
    %115 = arith.addf %113, %114 : vector<2x256xf32>
    %116 = vector.extract_strided_slice %115 {offsets = [0, 0], sizes = [2, 128], strides = [1, 1]} : vector<2x256xf32> to vector<2x128xf32>
    %117 = arith.negf %116 : vector<2x128xf32>
    %118 = math.exp %117 : vector<2x128xf32>
    %cst_40 = arith.constant 1.000000e+00 : f32
    %119 = vector.broadcast %cst_40 : f32 to vector<2x128xf32>
    %120 = arith.addf %119, %118 : vector<2x128xf32>
    %121 = arith.divf %119, %120 : vector<2x128xf32>
    %122 = vector.extract_strided_slice %115 {offsets = [0, 128], sizes = [2, 128], strides = [1, 1]} : vector<2x256xf32> to vector<2x128xf32>
    %123 = arith.negf %122 : vector<2x128xf32>
    %124 = math.exp %123 : vector<2x128xf32>
    %cst_41 = arith.constant 1.000000e+00 : f32
    %125 = vector.broadcast %cst_41 : f32 to vector<2x128xf32>
    %126 = arith.addf %125, %124 : vector<2x128xf32>
    %127 = arith.divf %125, %126 : vector<2x128xf32>
    %128 = vector.extract_strided_slice %111 {offsets = [0, 256], sizes = [2, 128], strides = [1, 1]} : vector<2x384xf32> to vector<2x128xf32>
    %129 = arith.mulf %127, %110 : vector<2x128xf32>
    %c0_42 = arith.constant 0 : index
    %c256_43 = arith.constant 256 : index
    %130 = vector.load %arg2[%c0_42, %c256_43] : memref<128x1536xf32, #tpu.memory_space<vmem>>, vector<128x128xf32>
    %cst_44 = arith.constant dense<0.000000e+00> : vector<2x128xf32>
    %131 = tpu.matmul %129, %130, %cst_44 {dimension_numbers = #tpu.dot_dimension_numbers<[1], [0], [0], [1], [0, 0, 1, 1], [], []>} : vector<2x128xf32>, vector<128x128xf32>, vector<2x128xf32> -> vector<2x128xf32>
    %132 = arith.addf %128, %131 : vector<2x128xf32>
    %133 = math.tanh %132 : vector<2x128xf32>
    %134 = arith.subf %110, %133 : vector<2x128xf32>
    %135 = arith.mulf %121, %134 : vector<2x128xf32>
    %136 = arith.addf %133, %135 : vector<2x128xf32>
    %137 = vector.extract_strided_slice %5 {offsets = [10, 0], sizes = [2, 384], strides = [1, 1]} : vector<12x384xf32> to vector<2x384xf32>
    %c0_45 = arith.constant 0 : index
    %c0_46 = arith.constant 0 : index
    %138 = vector.load %arg2[%c0_45, %c0_46] : memref<128x1536xf32, #tpu.memory_space<vmem>>, vector<128x256xf32>
    %cst_47 = arith.constant dense<0.000000e+00> : vector<2x256xf32>
    %139 = tpu.matmul %136, %138, %cst_47 {dimension_numbers = #tpu.dot_dimension_numbers<[1], [0], [0], [1], [0, 0, 1, 1], [], []>} : vector<2x128xf32>, vector<128x256xf32>, vector<2x256xf32> -> vector<2x256xf32>
    %140 = vector.extract_strided_slice %137 {offsets = [0, 0], sizes = [2, 256], strides = [1, 1]} : vector<2x384xf32> to vector<2x256xf32>
    %141 = arith.addf %139, %140 : vector<2x256xf32>
    %142 = vector.extract_strided_slice %141 {offsets = [0, 0], sizes = [2, 128], strides = [1, 1]} : vector<2x256xf32> to vector<2x128xf32>
    %143 = arith.negf %142 : vector<2x128xf32>
    %144 = math.exp %143 : vector<2x128xf32>
    %cst_48 = arith.constant 1.000000e+00 : f32
    %145 = vector.broadcast %cst_48 : f32 to vector<2x128xf32>
    %146 = arith.addf %145, %144 : vector<2x128xf32>
    %147 = arith.divf %145, %146 : vector<2x128xf32>
    %148 = vector.extract_strided_slice %141 {offsets = [0, 128], sizes = [2, 128], strides = [1, 1]} : vector<2x256xf32> to vector<2x128xf32>
    %149 = arith.negf %148 : vector<2x128xf32>
    %150 = math.exp %149 : vector<2x128xf32>
    %cst_49 = arith.constant 1.000000e+00 : f32
    %151 = vector.broadcast %cst_49 : f32 to vector<2x128xf32>
    %152 = arith.addf %151, %150 : vector<2x128xf32>
    %153 = arith.divf %151, %152 : vector<2x128xf32>
    %154 = vector.extract_strided_slice %137 {offsets = [0, 256], sizes = [2, 128], strides = [1, 1]} : vector<2x384xf32> to vector<2x128xf32>
    %155 = arith.mulf %153, %136 : vector<2x128xf32>
    %c0_50 = arith.constant 0 : index
    %c256_51 = arith.constant 256 : index
    %156 = vector.load %arg2[%c0_50, %c256_51] : memref<128x1536xf32, #tpu.memory_space<vmem>>, vector<128x128xf32>
    %cst_52 = arith.constant dense<0.000000e+00> : vector<2x128xf32>
    %157 = tpu.matmul %155, %156, %cst_52 {dimension_numbers = #tpu.dot_dimension_numbers<[1], [0], [0], [1], [0, 0, 1, 1], [], []>} : vector<2x128xf32>, vector<128x128xf32>, vector<2x128xf32> -> vector<2x128xf32>
    %158 = arith.addf %154, %157 : vector<2x128xf32>
    %159 = math.tanh %158 : vector<2x128xf32>
    %160 = arith.subf %136, %159 : vector<2x128xf32>
    %161 = arith.mulf %147, %160 : vector<2x128xf32>
    %162 = arith.addf %159, %161 : vector<2x128xf32>
    %163 = vector.extract_strided_slice %0 {offsets = [10, 0], sizes = [2, 8], strides = [1, 1]} : vector<12x8xf32> to vector<2x8xf32>
    %c0_53 = arith.constant 0 : index
    %c384 = arith.constant 384 : index
    %164 = vector.load %arg3[%c0_53, %c384] : memref<1x1152xf32, #tpu.memory_space<vmem>>, vector<1x384xf32>
    %c0_54 = arith.constant 0 : index
    %c1032 = arith.constant 1032 : index
    %165 = vector.load %arg3[%c0_54, %c1032] : memref<1x1152xf32, #tpu.memory_space<vmem>>, vector<1x8xf32>
    %c0_55 = arith.constant 0 : index
    %c1024 = arith.constant 1024 : index
    %166 = vector.load %arg3[%c0_55, %c1024] : memref<1x1152xf32, #tpu.memory_space<vmem>>, vector<1x8xf32>
    %c0_56 = arith.constant 0 : index
    %c768 = arith.constant 768 : index
    %167 = vector.load %arg2[%c0_56, %c768] : memref<128x1536xf32, #tpu.memory_space<vmem>>, vector<128x384xf32>
    %cst_57 = arith.constant dense<0.000000e+00> : vector<2x384xf32>
    %168 = tpu.matmul %162, %167, %cst_57 {dimension_numbers = #tpu.dot_dimension_numbers<[1], [0], [0], [1], [0, 0, 1, 1], [], []>} : vector<2x128xf32>, vector<128x384xf32>, vector<2x384xf32> -> vector<2x384xf32>
    %169 = vector.broadcast %164 : vector<1x384xf32> to vector<2x384xf32>
    %170 = arith.addf %168, %169 : vector<2x384xf32>
    %c0_58 = arith.constant 0 : index
    %c1416 = arith.constant 1416 : index
    %171 = vector.load %arg2[%c0_58, %c1416] : memref<128x1536xf32, #tpu.memory_space<vmem>>, vector<128x8xf32>
    %cst_59 = arith.constant dense<0.000000e+00> : vector<2x8xf32>
    %172 = tpu.matmul %162, %171, %cst_59 {dimension_numbers = #tpu.dot_dimension_numbers<[1], [0], [0], [1], [0, 0, 1, 1], [], []>} : vector<2x128xf32>, vector<128x8xf32>, vector<2x8xf32> -> vector<2x8xf32>
    %c0_60 = arith.constant 0 : index
    %c384_61 = arith.constant 384 : index
    %173 = vector.load %arg1[%c0_60, %c384_61] : memref<8x768xf32, #tpu.memory_space<vmem>>, vector<8x384xf32>
    %cst_62 = arith.constant dense<0.000000e+00> : vector<2x384xf32>
    %174 = tpu.matmul %163, %173, %cst_62 {dimension_numbers = #tpu.dot_dimension_numbers<[1], [0], [0], [1], [0, 0, 1, 1], [], []>} : vector<2x8xf32>, vector<8x384xf32>, vector<2x384xf32> -> vector<2x384xf32>
    %175 = arith.addf %174, %170 : vector<2x384xf32>
    %c0_63 = arith.constant 0 : index
    %c384_64 = arith.constant 384 : index
    %176 = vector.load %arg2[%c0_63, %c384_64] : memref<128x1536xf32, #tpu.memory_space<vmem>>, vector<128x256xf32>
    %cst_65 = arith.constant dense<0.000000e+00> : vector<2x256xf32>
    %177 = tpu.matmul %32, %176, %cst_65 {dimension_numbers = #tpu.dot_dimension_numbers<[1], [0], [0], [1], [0, 0, 1, 1], [], []>} : vector<2x128xf32>, vector<128x256xf32>, vector<2x256xf32> -> vector<2x256xf32>
    %178 = vector.extract_strided_slice %175 {offsets = [0, 0], sizes = [2, 256], strides = [1, 1]} : vector<2x384xf32> to vector<2x256xf32>
    %179 = arith.addf %177, %178 : vector<2x256xf32>
    %180 = vector.extract_strided_slice %179 {offsets = [0, 0], sizes = [2, 128], strides = [1, 1]} : vector<2x256xf32> to vector<2x128xf32>
    %181 = arith.negf %180 : vector<2x128xf32>
    %182 = math.exp %181 : vector<2x128xf32>
    %cst_66 = arith.constant 1.000000e+00 : f32
    %183 = vector.broadcast %cst_66 : f32 to vector<2x128xf32>
    %184 = arith.addf %183, %182 : vector<2x128xf32>
    %185 = arith.divf %183, %184 : vector<2x128xf32>
    %186 = vector.extract_strided_slice %179 {offsets = [0, 128], sizes = [2, 128], strides = [1, 1]} : vector<2x256xf32> to vector<2x128xf32>
    %187 = arith.negf %186 : vector<2x128xf32>
    %188 = math.exp %187 : vector<2x128xf32>
    %cst_67 = arith.constant 1.000000e+00 : f32
    %189 = vector.broadcast %cst_67 : f32 to vector<2x128xf32>
    %190 = arith.addf %189, %188 : vector<2x128xf32>
    %191 = arith.divf %189, %190 : vector<2x128xf32>
    %192 = vector.extract_strided_slice %175 {offsets = [0, 256], sizes = [2, 128], strides = [1, 1]} : vector<2x384xf32> to vector<2x128xf32>
    %193 = arith.mulf %191, %32 : vector<2x128xf32>
    %c0_68 = arith.constant 0 : index
    %c640 = arith.constant 640 : index
    %194 = vector.load %arg2[%c0_68, %c640] : memref<128x1536xf32, #tpu.memory_space<vmem>>, vector<128x128xf32>
    %cst_69 = arith.constant dense<0.000000e+00> : vector<2x128xf32>
    %195 = tpu.matmul %193, %194, %cst_69 {dimension_numbers = #tpu.dot_dimension_numbers<[1], [0], [0], [1], [0, 0, 1, 1], [], []>} : vector<2x128xf32>, vector<128x128xf32>, vector<2x128xf32> -> vector<2x128xf32>
    %196 = arith.addf %192, %195 : vector<2x128xf32>
    %197 = math.tanh %196 : vector<2x128xf32>
    %198 = arith.subf %32, %197 : vector<2x128xf32>
    %199 = arith.mulf %185, %198 : vector<2x128xf32>
    %200 = arith.addf %197, %199 : vector<2x128xf32>
    %c0_70 = arith.constant 0 : index
    %c1408 = arith.constant 1408 : index
    %201 = vector.load %arg2[%c0_70, %c1408] : memref<128x1536xf32, #tpu.memory_space<vmem>>, vector<128x8xf32>
    %cst_71 = arith.constant dense<0.000000e+00> : vector<2x8xf32>
    %202 = tpu.matmul %200, %201, %cst_71 {dimension_numbers = #tpu.dot_dimension_numbers<[1], [0], [0], [1], [0, 0, 1, 1], [], []>} : vector<2x128xf32>, vector<128x8xf32>, vector<2x8xf32> -> vector<2x8xf32>
    %203 = arith.addf %202, %172 : vector<2x8xf32>
    %204 = vector.broadcast %166 : vector<1x8xf32> to vector<2x8xf32>
    %205 = arith.mulf %163, %204 : vector<2x8xf32>
    %206 = arith.addf %203, %205 : vector<2x8xf32>
    %207 = vector.broadcast %165 : vector<1x8xf32> to vector<2x8xf32>
    %208 = arith.addf %206, %207 : vector<2x8xf32>
    %c0_72 = arith.constant 0 : index
    %c0_73 = arith.constant 0 : index
    %c0_74 = arith.constant 0 : index
    %209 = vector.load %arg4[%c0_72, %c0_73, %c0_74] : memref<3x2x8xf32, #tpu.memory_space<vmem>>, vector<1x2x8xf32>
    %210 = vector.shape_cast %209 : vector<1x2x8xf32> to vector<2x8xf32>
    %211 = vector.shape_cast %208 : vector<2x8xf32> to vector<1x2x8xf32>
    tpu.vector_store %arg4[%c0_72, %c0_73, %c0_74], %211 {strides = array<i32>} : memref<3x2x8xf32, #tpu.memory_space<vmem>>, vector<1x2x8xf32>,
    %c0_75 = arith.constant 0 : index
    %c384_76 = arith.constant 384 : index
    %212 = vector.load %arg1[%c0_75, %c384_76] : memref<8x768xf32, #tpu.memory_space<vmem>>, vector<8x384xf32>
    %cst_77 = arith.constant dense<0.000000e+00> : vector<2x384xf32>
    %213 = tpu.matmul %208, %212, %cst_77 {dimension_numbers = #tpu.dot_dimension_numbers<[1], [0], [0], [1], [0, 0, 1, 1], [], []>} : vector<2x8xf32>, vector<8x384xf32>, vector<2x384xf32> -> vector<2x384xf32>
    %214 = arith.addf %213, %170 : vector<2x384xf32>
    %c0_78 = arith.constant 0 : index
    %c384_79 = arith.constant 384 : index
    %215 = vector.load %arg2[%c0_78, %c384_79] : memref<128x1536xf32, #tpu.memory_space<vmem>>, vector<128x256xf32>
    %cst_80 = arith.constant dense<0.000000e+00> : vector<2x256xf32>
    %216 = tpu.matmul %200, %215, %cst_80 {dimension_numbers = #tpu.dot_dimension_numbers<[1], [0], [0], [1], [0, 0, 1, 1], [], []>} : vector<2x128xf32>, vector<128x256xf32>, vector<2x256xf32> -> vector<2x256xf32>
    %217 = vector.extract_strided_slice %214 {offsets = [0, 0], sizes = [2, 256], strides = [1, 1]} : vector<2x384xf32> to vector<2x256xf32>
    %218 = arith.addf %216, %217 : vector<2x256xf32>
    %219 = vector.extract_strided_slice %218 {offsets = [0, 0], sizes = [2, 128], strides = [1, 1]} : vector<2x256xf32> to vector<2x128xf32>
    %220 = arith.negf %219 : vector<2x128xf32>
    %221 = math.exp %220 : vector<2x128xf32>
    %cst_81 = arith.constant 1.000000e+00 : f32
    %222 = vector.broadcast %cst_81 : f32 to vector<2x128xf32>
    %223 = arith.addf %222, %221 : vector<2x128xf32>
    %224 = arith.divf %222, %223 : vector<2x128xf32>
    %225 = vector.extract_strided_slice %218 {offsets = [0, 128], sizes = [2, 128], strides = [1, 1]} : vector<2x256xf32> to vector<2x128xf32>
    %226 = arith.negf %225 : vector<2x128xf32>
    %227 = math.exp %226 : vector<2x128xf32>
    %cst_82 = arith.constant 1.000000e+00 : f32
    %228 = vector.broadcast %cst_82 : f32 to vector<2x128xf32>
    %229 = arith.addf %228, %227 : vector<2x128xf32>
    %230 = arith.divf %228, %229 : vector<2x128xf32>
    %231 = vector.extract_strided_slice %214 {offsets = [0, 256], sizes = [2, 128], strides = [1, 1]} : vector<2x384xf32> to vector<2x128xf32>
    %232 = arith.mulf %230, %200 : vector<2x128xf32>
    %c0_83 = arith.constant 0 : index
    %c640_84 = arith.constant 640 : index
    %233 = vector.load %arg2[%c0_83, %c640_84] : memref<128x1536xf32, #tpu.memory_space<vmem>>, vector<128x128xf32>
    %cst_85 = arith.constant dense<0.000000e+00> : vector<2x128xf32>
    %234 = tpu.matmul %232, %233, %cst_85 {dimension_numbers = #tpu.dot_dimension_numbers<[1], [0], [0], [1], [0, 0, 1, 1], [], []>} : vector<2x128xf32>, vector<128x128xf32>, vector<2x128xf32> -> vector<2x128xf32>
    %235 = arith.addf %231, %234 : vector<2x128xf32>
    %236 = math.tanh %235 : vector<2x128xf32>
    %237 = arith.subf %200, %236 : vector<2x128xf32>
    %238 = arith.mulf %224, %237 : vector<2x128xf32>
    %239 = arith.addf %236, %238 : vector<2x128xf32>
    %c0_86 = arith.constant 0 : index
    %c1408_87 = arith.constant 1408 : index
    %240 = vector.load %arg2[%c0_86, %c1408_87] : memref<128x1536xf32, #tpu.memory_space<vmem>>, vector<128x8xf32>
    %cst_88 = arith.constant dense<0.000000e+00> : vector<2x8xf32>
    %241 = tpu.matmul %239, %240, %cst_88 {dimension_numbers = #tpu.dot_dimension_numbers<[1], [0], [0], [1], [0, 0, 1, 1], [], []>} : vector<2x128xf32>, vector<128x8xf32>, vector<2x8xf32> -> vector<2x8xf32>
    %242 = arith.addf %241, %172 : vector<2x8xf32>
    %243 = vector.broadcast %166 : vector<1x8xf32> to vector<2x8xf32>
    %244 = arith.mulf %208, %243 : vector<2x8xf32>
    %245 = arith.addf %242, %244 : vector<2x8xf32>
    %246 = vector.broadcast %165 : vector<1x8xf32> to vector<2x8xf32>
    %247 = arith.addf %245, %246 : vector<2x8xf32>
    %c1 = arith.constant 1 : index
    %c0_89 = arith.constant 0 : index
    %c0_90 = arith.constant 0 : index
    %248 = vector.load %arg4[%c1, %c0_89, %c0_90] : memref<3x2x8xf32, #tpu.memory_space<vmem>>, vector<1x2x8xf32>
    %249 = vector.shape_cast %248 : vector<1x2x8xf32> to vector<2x8xf32>
    %250 = vector.shape_cast %247 : vector<2x8xf32> to vector<1x2x8xf32>
    tpu.vector_store %arg4[%c1, %c0_89, %c0_90], %250 {strides = array<i32>} : memref<3x2x8xf32, #tpu.memory_space<vmem>>, vector<1x2x8xf32>,
    %c0_91 = arith.constant 0 : index
    %c384_92 = arith.constant 384 : index
    %251 = vector.load %arg1[%c0_91, %c384_92] : memref<8x768xf32, #tpu.memory_space<vmem>>, vector<8x384xf32>
    %cst_93 = arith.constant dense<0.000000e+00> : vector<2x384xf32>
    %252 = tpu.matmul %247, %251, %cst_93 {dimension_numbers = #tpu.dot_dimension_numbers<[1], [0], [0], [1], [0, 0, 1, 1], [], []>} : vector<2x8xf32>, vector<8x384xf32>, vector<2x384xf32> -> vector<2x384xf32>
    %253 = arith.addf %252, %170 : vector<2x384xf32>
    %c0_94 = arith.constant 0 : index
    %c384_95 = arith.constant 384 : index
    %254 = vector.load %arg2[%c0_94, %c384_95] : memref<128x1536xf32, #tpu.memory_space<vmem>>, vector<128x256xf32>
    %cst_96 = arith.constant dense<0.000000e+00> : vector<2x256xf32>
    %255 = tpu.matmul %239, %254, %cst_96 {dimension_numbers = #tpu.dot_dimension_numbers<[1], [0], [0], [1], [0, 0, 1, 1], [], []>} : vector<2x128xf32>, vector<128x256xf32>, vector<2x256xf32> -> vector<2x256xf32>
    %256 = vector.extract_strided_slice %253 {offsets = [0, 0], sizes = [2, 256], strides = [1, 1]} : vector<2x384xf32> to vector<2x256xf32>
    %257 = arith.addf %255, %256 : vector<2x256xf32>
    %258 = vector.extract_strided_slice %257 {offsets = [0, 0], sizes = [2, 128], strides = [1, 1]} : vector<2x256xf32> to vector<2x128xf32>
    %259 = arith.negf %258 : vector<2x128xf32>
    %260 = math.exp %259 : vector<2x128xf32>
    %cst_97 = arith.constant 1.000000e+00 : f32
    %261 = vector.broadcast %cst_97 : f32 to vector<2x128xf32>
    %262 = arith.addf %261, %260 : vector<2x128xf32>
    %263 = arith.divf %261, %262 : vector<2x128xf32>
    %264 = vector.extract_strided_slice %257 {offsets = [0, 128], sizes = [2, 128], strides = [1, 1]} : vector<2x256xf32> to vector<2x128xf32>
    %265 = arith.negf %264 : vector<2x128xf32>
    %266 = math.exp %265 : vector<2x128xf32>
    %cst_98 = arith.constant 1.000000e+00 : f32
    %267 = vector.broadcast %cst_98 : f32 to vector<2x128xf32>
    %268 = arith.addf %267, %266 : vector<2x128xf32>
    %269 = arith.divf %267, %268 : vector<2x128xf32>
    %270 = vector.extract_strided_slice %253 {offsets = [0, 256], sizes = [2, 128], strides = [1, 1]} : vector<2x384xf32> to vector<2x128xf32>
    %271 = arith.mulf %269, %239 : vector<2x128xf32>
    %c0_99 = arith.constant 0 : index
    %c640_100 = arith.constant 640 : index
    %272 = vector.load %arg2[%c0_99, %c640_100] : memref<128x1536xf32, #tpu.memory_space<vmem>>, vector<128x128xf32>
    %cst_101 = arith.constant dense<0.000000e+00> : vector<2x128xf32>
    %273 = tpu.matmul %271, %272, %cst_101 {dimension_numbers = #tpu.dot_dimension_numbers<[1], [0], [0], [1], [0, 0, 1, 1], [], []>} : vector<2x128xf32>, vector<128x128xf32>, vector<2x128xf32> -> vector<2x128xf32>
    %274 = arith.addf %270, %273 : vector<2x128xf32>
    %275 = math.tanh %274 : vector<2x128xf32>
    %276 = arith.subf %239, %275 : vector<2x128xf32>
    %277 = arith.mulf %263, %276 : vector<2x128xf32>
    %278 = arith.addf %275, %277 : vector<2x128xf32>
    %c0_102 = arith.constant 0 : index
    %c1408_103 = arith.constant 1408 : index
    %279 = vector.load %arg2[%c0_102, %c1408_103] : memref<128x1536xf32, #tpu.memory_space<vmem>>, vector<128x8xf32>
    %cst_104 = arith.constant dense<0.000000e+00> : vector<2x8xf32>
    %280 = tpu.matmul %278, %279, %cst_104 {dimension_numbers = #tpu.dot_dimension_numbers<[1], [0], [0], [1], [0, 0, 1, 1], [], []>} : vector<2x128xf32>, vector<128x8xf32>, vector<2x8xf32> -> vector<2x8xf32>
    %281 = arith.addf %280, %172 : vector<2x8xf32>
    %282 = vector.broadcast %166 : vector<1x8xf32> to vector<2x8xf32>
    %283 = arith.mulf %247, %282 : vector<2x8xf32>
    %284 = arith.addf %281, %283 : vector<2x8xf32>
    %285 = vector.broadcast %165 : vector<1x8xf32> to vector<2x8xf32>
    %286 = arith.addf %284, %285 : vector<2x8xf32>
    %c2 = arith.constant 2 : index
    %c0_105 = arith.constant 0 : index
    %c0_106 = arith.constant 0 : index
    %287 = vector.load %arg4[%c2, %c0_105, %c0_106] : memref<3x2x8xf32, #tpu.memory_space<vmem>>, vector<1x2x8xf32>
    %288 = vector.shape_cast %287 : vector<1x2x8xf32> to vector<2x8xf32>
    %289 = vector.shape_cast %286 : vector<2x8xf32> to vector<1x2x8xf32>
    tpu.vector_store %arg4[%c2, %c0_105, %c0_106], %289 {strides = array<i32>} : memref<3x2x8xf32, #tpu.memory_space<vmem>>, vector<1x2x8xf32>,
    return
  }
}

</mosaic_0001>

<llo_original>
// kernel: dcrnn_forward_fused.1
$region0: #{dcrnn_forward_fused.1}
  #allocation0 [shape = 'u32[]', space=smem, size = 0x4, offset = 0x4, fixed_abs, tag = 'smem constant byte address 0x4 - core index']
  #allocation1 [shape = 'u32[144,128]{1,0:T(1,128)}', space=vmem, size = 0x12000, scoped, tag = 'internal scratch']
  %s0 = inlined_call_operand.vmem [shape: f32[12,8], index: 0, kind: input, shape index: {}]
  %s1 = inlined_call_operand.hbm [shape: f32[8,768], index: 1, kind: input, shape index: {}]
  %s2 = inlined_call_operand.hbm [shape: f32[128,1536], index: 2, kind: input, shape index: {}]
  %s3 = inlined_call_operand.vmem [shape: f32[1,1152], index: 3, kind: input, shape index: {}]
  %s4 = inlined_call_operand.hbm [shape: f32[3,2,8], index: 4, kind: output, shape index: {}]
  %s5 = sld [smem:[#allocation0]]
  $region34: #{dcrnn_forward_fused.1} parent=0
    _
  %s7 = ssub.s32 1, %s5
  %s8 = scalar_select 0, %s7, %s5
  $region1: #{dcrnn_forward_fused.1} parent=0
    #allocation2 [shape = 'u8[24576]{0}', space=vmem, size = 0x6000, scoped, tag = 'input window, operand 1, single buffered']
    #allocation3 [shape = 's32[1]{0}', space=sflag, size = 0x4, scoped, tag = 'scoped memory for dcrnn_forward_fused.1']
    #allocation4 [shape = 's32[1]{0}', space=sflag, size = 0x4, scoped, tag = 'scoped memory for dcrnn_forward_fused.1']
    #allocation5 [shape = 'u8[786432]{0}', space=vmem, size = 0xc0000, scoped, tag = 'input window, operand 2, single buffered']
    #allocation6 [shape = 's32[1]{0}', space=sflag, size = 0x4, scoped, tag = 'scoped memory for dcrnn_forward_fused.1']
    #allocation7 [shape = 'u8[3072]{0}', space=vmem, size = 0xc00, scoped, tag = 'output window, operand 0, single buffered']
    %9 = vsyncpa [#allocation3], 0
    %10 = vsyncpa [#allocation6], 0
    %11 = vsyncpa [#allocation4], 0
    // Predicated region
    $region2: #{dcrnn_forward_fused.1} parent=1 // pred_check
      _
    $region3: #{dcrnn_forward_fused.1} parent=1 // pred_check_branch
      %13 = sbr.rel (0) target = $region5
    $region4: #{dcrnn_forward_fused.1} parent=1 // pred_region
      _
    $region5: #{dcrnn_forward_fused.1} parent=1 // pred_fallthru
      _
    // Predicated region
    $region6: #{dcrnn_forward_fused.1} parent=1 // pred_check
      _
    $region7: #{dcrnn_forward_fused.1} parent=1 // pred_check_branch
      %15 = sbr.rel (0) target = $region9
    $region8: #{dcrnn_forward_fused.1} parent=1 // pred_region
      %s17 = ssub.s32 768, 768
      %18 = vsyncadd [#allocation3], %s17
      %s20 = sshll.u32 [#allocation2], 4
      %s21 = int_to_ptr.vmem [resolvable:$true] %s20
      %23 = dma.hbm_to_vmem [thread:$0]  %s1, 768, %s21, [#allocation3]
    $region9: #{dcrnn_forward_fused.1} parent=1 // pred_fallthru
      _
    // Predicated region
    $region10: #{dcrnn_forward_fused.1} parent=1 // pred_check
      _
    $region11: #{dcrnn_forward_fused.1} parent=1 // pred_check_branch
      %25 = sbr.rel (0) target = $region13
    $region12: #{dcrnn_forward_fused.1} parent=1 // pred_region
      %s27 = ssub.s32 24576, 24576
      %28 = vsyncadd [#allocation6], %s27
      %s29 = sshll.u32 [#allocation5], 4
      %s30 = int_to_ptr.vmem [resolvable:$true] %s29
      %35 = dma.hbm_to_vmem [thread:$0]  %s2, 24576, %s30, [#allocation6], 1536, 1536, 96
    $region13: #{dcrnn_forward_fused.1} parent=1 // pred_fallthru
      _
    // Predicated region
    $region14: #{dcrnn_forward_fused.1} parent=1 // pred_check
      _
    $region15: #{dcrnn_forward_fused.1} parent=1 // pred_check_branch
      %37 = sbr.rel (0) target = $region17
    $region16: #{dcrnn_forward_fused.1} parent=1 // pred_region
      _
    $region17: #{dcrnn_forward_fused.1} parent=1 // pred_fallthru
      _
    // Predicated region
    $region18: #{dcrnn_forward_fused.1} parent=1 // pred_check
      _
    $region19: #{dcrnn_forward_fused.1} parent=1 // pred_check_branch
      %39 = sbr.rel (0) target = $region21
    $region20: #{dcrnn_forward_fused.1} parent=1 // pred_region
      %40 = dma.done [#allocation3], 768
    $region21: #{dcrnn_forward_fused.1} parent=1 // pred_fallthru
      _
    // Predicated region
    $region22: #{dcrnn_forward_fused.1} parent=1 // pred_check
      _
    $region23: #{dcrnn_forward_fused.1} parent=1 // pred_check_branch
      %42 = sbr.rel (0) target = $region25
    $region24: #{dcrnn_forward_fused.1} parent=1 // pred_region
      %43 = dma.done [#allocation6], 24576
    $region25: #{dcrnn_forward_fused.1} parent=1 // pred_fallthru
      _
    %v44 = vld [vmem:[%s0] sm:$0xff]
    %v45 = vld [vmem:[%s0 + $0x8] sm:$0xf]
    %v46 = vld [vmem:[#allocation2] sm:$0xff]
    %v47 = vld [vmem:[#allocation2 + $0x8] sm:$0xff]
    %v48 = vld [vmem:[#allocation2 + $0x10] sm:$0xff]
    %v49 = vld [vmem:[%s3] sm:$0x7]
    %v51 = vlaneseq
    %v52 = vshrl.u32 %v51, 7
    %v53 = vsub.s32 0, %v52
    %v54 = vrot.slane %v49, %v53
    %v55 = vlaneseq
    %v56 = vshrl.u32 %v55, 7
    %v57 = vsub.s32 1, %v56
    %v58 = vrot.slane %v49, %v57
    %v59 = vlaneseq
    %v60 = vshrl.u32 %v59, 7
    %v61 = vsub.s32 2, %v60
    %v62 = vrot.slane %v49, %v61
    %vm66 = vcmask 64512
    %v68 = vsel %vm66, %v44, 0
    %v71 = vsel %vm66, %v45, 0
    %73 = vmatprep.subr.mxu0 0.0
    %74 = vmatpush1.msra.mxu0 0.0
    %75 = vmatprep.subr.mxu0 0.0
    %76 = vmatpush1.msra.mxu0 0.0
    %77 = vmatprep.subr.mxu0 0.0
    %78 = vmatpush1.msra.mxu0 0.0
    %79 = vmatprep.subr.mxu0 0.0
    %80 = vmatpush1.msra.mxu0 0.0
    %81 = vmatprep.subr.mxu0 0.0
    %82 = vmatpush1.msra.mxu0 0.0
    %83 = vmatprep.subr.mxu0 0.0
    %84 = vmatpush1.msra.mxu0 0.0
    %85 = vmatprep.subr.mxu0 0.0
    %86 = vmatpush1.msra.mxu0 0.0
    %87 = vmatprep.subr.mxu0 0.0
    %88 = vmatpush1.msra.mxu0 0.0
    %89 = vmatprep.subr.mxu0 0.0
    %90 = vmatpush1.msra.mxu0 0.0
    %91 = vmatprep.subr.mxu0 0.0
    %92 = vmatpush1.msra.mxu0 0.0
    %93 = vmatprep.subr.mxu0 0.0
    %94 = vmatpush1.msra.mxu0 0.0
    %95 = vmatprep.subr.mxu0 0.0
    %96 = vmatpush1.msra.mxu0 0.0
    %97 = vmatprep.subr.mxu0 0.0
    %98 = vmatpush1.msra.mxu0 0.0
    %99 = vmatprep.subr.mxu0 0.0
    %100 = vmatpush1.msra.mxu0 0.0
    %101 = vmatprep.subr.mxu0 0.0
    %102 = vmatpush1.msra.mxu0 0.0
    %103 = vmatprep.subr.mxu0 %v47
    %104 = vmatpush1.msra.mxu0 %v46
    %105 = vmatprep.subr.mxu0 0.0
    %106 = vmatpush2.msra.mxu0 0.0
    %107 = vmatprep.subr.mxu0 0.0
    %108 = vmatpush2.msra.mxu0 0.0
    %109 = vmatprep.subr.mxu0 0.0
    %110 = vmatpush2.msra.mxu0 0.0
    %111 = vmatprep.subr.mxu0 0.0
    %112 = vmatpush2.msra.mxu0 0.0
    %113 = vmatprep.subr.mxu0 0.0
    %114 = vmatpush2.msra.mxu0 0.0
    %115 = vmatprep.subr.mxu0 0.0
    %116 = vmatpush2.msra.mxu0 0.0
    %117 = vmatprep.subr.mxu0 0.0
    %118 = vmatpush2.msra.mxu0 0.0
    %119 = vmatprep.subr.mxu0 0.0
    %120 = vmatpush2.msra.mxu0 0.0
    %121 = vmatprep.subr.mxu0 0.0
    %122 = vmatpush2.msra.mxu0 0.0
    %123 = vmatprep.subr.mxu0 0.0
    %124 = vmatpush2.msra.mxu0 0.0
    %125 = vmatprep.subr.mxu0 0.0
    %126 = vmatpush2.msra.mxu0 0.0
    %127 = vmatprep.subr.mxu0 0.0
    %128 = vmatpush2.msra.mxu0 0.0
    %129 = vmatprep.subr.mxu0 0.0
    %130 = vmatpush2.msra.mxu0 0.0
    %131 = vmatprep.subr.mxu0 0.0
    %132 = vmatpush2.msra.mxu0 0.0
    %133 = vmatprep.subr.mxu0 0.0
    %134 = vmatpush2.msra.mxu0 0.0
    %135 = vmatprep.subr.mxu0 0.0
    %136 = vmatpush2.msra.mxu0 0.0
    %137 = vmatprep.mubr.f32.mxu0 0.0
    %138 = vmatmul.mubr.f32.gmra.mxu0 %v68
    %v139 = vpop.f32.mrf.mxu0
    %v140 = vadd.f32 %v54, %v139
    %v141 = vpop.f32.mrf.mxu0
    %v142 = vadd.f32 %v58, %v141
    %143 = vmatprep.mubr.f32.mxu0 0.0
    %144 = vmatmul.mubr.f32.gmra.mxu0 %v71
    %v145 = vpop.f32.mrf.mxu0
    %v146 = vadd.f32 %v54, %v145
    %v147 = vpop.f32.mrf.mxu0
    %v148 = vadd.f32 %v58, %v147
    %149 = vdwg.mxu0
    %150 = vmatprep.subr.mxu0 0.0
    %151 = vmatpush1.msra.mxu0 0.0
    %152 = vmatprep.subr.mxu0 0.0
    %153 = vmatpush1.msra.mxu0 0.0
    %154 = vmatprep.subr.mxu0 0.0
    %155 = vmatpush1.msra.mxu0 0.0
    %156 = vmatprep.subr.mxu0 0.0
    %157 = vmatpush1.msra.mxu0 0.0
    %158 = vmatprep.subr.mxu0 0.0
    %159 = vmatpush1.msra.mxu0 0.0
    %160 = vmatprep.subr.mxu0 0.0
    %161 = vmatpush1.msra.mxu0 0.0
    %162 = vmatprep.subr.mxu0 0.0
    %163 = vmatpush1.msra.mxu0 0.0
    %164 = vmatprep.subr.mxu0 0.0
    %165 = vmatpush1.msra.mxu0 0.0
    %166 = vmatprep.subr.mxu0 0.0
    %167 = vmatpush1.msra.mxu0 0.0
    %168 = vmatprep.subr.mxu0 0.0
    %169 = vmatpush1.msra.mxu0 0.0
    %170 = vmatprep.subr.mxu0 0.0
    %171 = vmatpush1.msra.mxu0 0.0
    %172 = vmatprep.subr.mxu0 0.0
    %173 = vmatpush1.msra.mxu0 0.0
    %174 = vmatprep.subr.mxu0 0.0
    %175 = vmatpush1.msra.mxu0 0.0
    %176 = vmatprep.subr.mxu0 0.0
    %177 = vmatpush1.msra.mxu0 0.0
    %178 = vmatprep.subr.mxu0 0.0
    %179 = vmatpush1.msra.mxu0 0.0
    %180 = vmatprep.subr.mxu0 0.0
    %181 = vmatpush1.msra.mxu0 %v48
    %182 = vmatprep.subr.mxu0 0.0
    %183 = vmatpush2.msra.mxu0 0.0
    %184 = vmatprep.subr.mxu0 0.0
    %185 = vmatpush2.msra.mxu0 0.0
    %186 = vmatprep.subr.mxu0 0.0
    %187 = vmatpush2.msra.mxu0 0.0
    %188 = vmatprep.subr.mxu0 0.0
    %189 = vmatpush2.msra.mxu0 0.0
    %190 = vmatprep.subr.mxu0 0.0
    %191 = vmatpush2.msra.mxu0 0.0
    %192 = vmatprep.subr.mxu0 0.0
    %193 = vmatpush2.msra.mxu0 0.0
    %194 = vmatprep.subr.mxu0 0.0
    %195 = vmatpush2.msra.mxu0 0.0
    %196 = vmatprep.subr.mxu0 0.0
    %197 = vmatpush2.msra.mxu0 0.0
    %198 = vmatprep.subr.mxu0 0.0
    %199 = vmatpush2.msra.mxu0 0.0
    %200 = vmatprep.subr.mxu0 0.0
    %201 = vmatpush2.msra.mxu0 0.0
    %202 = vmatprep.subr.mxu0 0.0
    %203 = vmatpush2.msra.mxu0 0.0
    %204 = vmatprep.subr.mxu0 0.0
    %205 = vmatpush2.msra.mxu0 0.0
    %206 = vmatprep.subr.mxu0 0.0
    %207 = vmatpush2.msra.mxu0 0.0
    %208 = vmatprep.subr.mxu0 0.0
    %209 = vmatpush2.msra.mxu0 0.0
    %210 = vmatprep.subr.mxu0 0.0
    %211 = vmatpush2.msra.mxu0 0.0
    %212 = vmatprep.subr.mxu0 0.0
    %213 = vmatpush2.msra.mxu0 0.0
    %214 = vmatprep.mubr.f32.mxu0 0.0
    %215 = vmatmul.mubr.f32.gmra.mxu0 %v68
    %v216 = vpop.f32.mrf.mxu0
    %v217 = vadd.f32 %v62, %v216
    %v218 = vpop.f32.mrf.mxu0
    %219 = vmatprep.mubr.f32.mxu0 0.0
    %220 = vmatmul.mubr.f32.gmra.mxu0 %v71
    %v221 = vpop.f32.mrf.mxu0
    %v222 = vadd.f32 %v62, %v221
    %v223 = vpop.f32.mrf.mxu0
    %224 = vdwg.mxu0
    %v225 = vld [vmem:[#allocation5] sm:$0xff]
    %v226 = vld [vmem:[#allocation5 + $0x8] sm:$0xff]
    %v227 = vld [vmem:[#allocation5 + $0x60] sm:$0xff]
    %v228 = vld [vmem:[#allocation5 + $0x68] sm:$0xff]
    %v229 = vld [vmem:[#allocation5 + $0xc0] sm:$0xff]
    %v230 = vld [vmem:[#allocation5 + $0xc8] sm:$0xff]
    %v231 = vld [vmem:[#allocation5 + $0x120] sm:$0xff]
    %v232 = vld [vmem:[#allocation5 + $0x128] sm:$0xff]
    %v233 = vld [vmem:[#allocation5 + $0x180] sm:$0xff]
    %v234 = vld [vmem:[#allocation5 + $0x188] sm:$0xff]
    %v235 = vld [vmem:[#allocation5 + $0x1e0] sm:$0xff]
    %v236 = vld [vmem:[#allocation5 + $0x1e8] sm:$0xff]
    %v237 = vld [vmem:[#allocation5 + $0x240] sm:$0xff]
    %v238 = vld [vmem:[#allocation5 + $0x248] sm:$0xff]
    %v239 = vld [vmem:[#allocation5 + $0x2a0] sm:$0xff]
    %v240 = vld [vmem:[#allocation5 + $0x2a8] sm:$0xff]
    %v241 = vld [vmem:[#allocation5 + $0x300] sm:$0xff]
    %v242 = vld [vmem:[#allocation5 + $0x308] sm:$0xff]
    %v243 = vld [vmem:[#allocation5 + $0x360] sm:$0xff]
    %v244 = vld [vmem:[#allocation5 + $0x368] sm:$0xff]
    %v245 = vld [vmem:[#allocation5 + $0x3c0] sm:$0xff]
    %v246 = vld [vmem:[#allocation5 + $0x3c8] sm:$0xff]
    %v247 = vld [vmem:[#allocation5 + $0x420] sm:$0xff]
    %v248 = vld [vmem:[#allocation5 + $0x428] sm:$0xff]
    %v249 = vld [vmem:[#allocation5 + $0x480] sm:$0xff]
    %v250 = vld [vmem:[#allocation5 + $0x488] sm:$0xff]
    %v251 = vld [vmem:[#allocation5 + $0x4e0] sm:$0xff]
    %v252 = vld [vmem:[#allocation5 + $0x4e8] sm:$0xff]
    %v253 = vld [vmem:[#allocation5 + $0x540] sm:$0xff]
    %v254 = vld [vmem:[#allocation5 + $0x548] sm:$0xff]
    %v255 = vld [vmem:[#allocation5 + $0x5a0] sm:$0xff]
    %v256 = vld [vmem:[#allocation5 + $0x5a8] sm:$0xff]
    %257 = vmatprep.subr.mxu0 %v256
    %258 = vmatpush1.msra.mxu0 %v255
    %259 = vmatprep.subr.mxu0 %v254
    %260 = vmatpush1.msra.mxu0 %v253
    %261 = vmatprep.subr.mxu0 %v252
    %262 = vmatpush1.msra.mxu0 %v251
    %263 = vmatprep.subr.mxu0 %v250
    %264 = vmatpush1.msra.mxu0 %v249
    %265 = vmatprep.subr.mxu0 %v248
    %266 = vmatpush1.msra.mxu0 %v247
    %267 = vmatprep.subr.mxu0 %v246
    %268 = vmatpush1.msra.mxu0 %v245
    %269 = vmatprep.subr.mxu0 %v244
    %270 = vmatpush1.msra.mxu0 %v243
    %271 = vmatprep.subr.mxu0 %v242
    %272 = vmatpush1.msra.mxu0 %v241
    %273 = vmatprep.subr.mxu0 %v240
    %274 = vmatpush1.msra.mxu0 %v239
    %275 = vmatprep.subr.mxu0 %v238
    %276 = vmatpush1.msra.mxu0 %v237
    %277 = vmatprep.subr.mxu0 %v236
    %278 = vmatpush1.msra.mxu0 %v235
    %279 = vmatprep.subr.mxu0 %v234
    %280 = vmatpush1.msra.mxu0 %v233
    %281 = vmatprep.subr.mxu0 %v232
    %282 = vmatpush1.msra.mxu0 %v231
    %283 = vmatprep.subr.mxu0 %v230
    %284 = vmatpush1.msra.mxu0 %v229
    %285 = vmatprep.subr.mxu0 %v228
    %286 = vmatpush1.msra.mxu0 %v227
    %287 = vmatprep.subr.mxu0 %v226
    %288 = vmatpush1.msra.mxu0 %v225
    %289 = vmatprep.subr.mxu0 0.0
    %290 = vmatpush2.msra.mxu0 0.0
    %291 = vmatprep.subr.mxu0 0.0
    %292 = vmatpush2.msra.mxu0 0.0
    %293 = vmatprep.subr.mxu0 0.0
    %294 = vmatpush2.msra.mxu0 0.0
    %295 = vmatprep.subr.mxu0 0.0
    %296 = vmatpush2.msra.mxu0 0.0
    %297 = vmatprep.subr.mxu0 0.0
    %298 = vmatpush2.msra.mxu0 0.0
    %299 = vmatprep.subr.mxu0 0.0
    %300 = vmatpush2.msra.mxu0 0.0
    %301 = vmatprep.subr.mxu0 0.0
    %302 = vmatpush2.msra.mxu0 0.0
    %303 = vmatprep.subr.mxu0 0.0
    %304 = vmatpush2.msra.mxu0 0.0
    %305 = vmatprep.subr.mxu0 0.0
    %306 = vmatpush2.msra.mxu0 0.0
    %307 = vmatprep.subr.mxu0 0.0
    %308 = vmatpush2.msra.mxu0 0.0
    %309 = vmatprep.subr.mxu0 0.0
    %310 = vmatpush2.msra.mxu0 0.0
    %311 = vmatprep.subr.mxu0 0.0
    %312 = vmatpush2.msra.mxu0 0.0
    %313 = vmatprep.subr.mxu0 0.0
    %314 = vmatpush2.msra.mxu0 0.0
    %315 = vmatprep.subr.mxu0 0.0
    %316 = vmatpush2.msra.mxu0 0.0
    %317 = vmatprep.subr.mxu0 0.0
    %318 = vmatpush2.msra.mxu0 0.0
    %319 = vmatprep.subr.mxu0 0.0
    %320 = vmatpush2.msra.mxu0 0.0
    %321 = vmatprep.mubr.f32.mxu0 0.0
    %322 = vmatmul.mubr.f32.gmra.mxu0 0.0
    %v323 = vpop.f32.mrf.mxu0
    %v324 = vadd.f32 %v140, %v323
    %v325 = vpop.f32.mrf.mxu0
    %v326 = vadd.f32 %v142, %v325
    %327 = vdwg.mxu0
    %v328 = vxor.u32 %v324, 2147483648
    %v329 = vmul.f32 %v328, 1.442695
    %v330 = vpow.pop %v329
    %v331 = vadd.f32 %v330, 1.0
    %v332 = vrcp.pop %v331
    %v333 = vmul.f32 1.0, %v332
    %v334 = vxor.u32 %v326, 2147483648
    %v335 = vmul.f32 %v334, 1.442695
    %v336 = vpow.pop %v335
    %v337 = vadd.f32 %v336, 1.0
    %v338 = vrcp.pop %v337
    %v339 = vmul.f32 1.0, %v338
    %v340 = vmul.f32 %v339, 0.0
    %v341 = vld [vmem:[#allocation5 + $0x10] sm:$0xff]
    %v342 = vld [vmem:[#allocation5 + $0x70] sm:$0xff]
    %v343 = vld [vmem:[#allocation5 + $0xd0] sm:$0xff]
    %v344 = vld [vmem:[#allocation5 + $0x130] sm:$0xff]
    %v345 = vld [vmem:[#allocation5 + $0x190] sm:$0xff]
    %v346 = vld [vmem:[#allocation5 + $0x1f0] sm:$0xff]
    %v347 = vld [vmem:[#allocation5 + $0x250] sm:$0xff]
    %v348 = vld [vmem:[#allocation5 + $0x2b0] sm:$0xff]
    %v349 = vld [vmem:[#allocation5 + $0x310] sm:$0xff]
    %v350 = vld [vmem:[#allocation5 + $0x370] sm:$0xff]
    %v351 = vld [vmem:[#allocation5 + $0x3d0] sm:$0xff]
    %v352 = vld [vmem:[#allocation5 + $0x430] sm:$0xff]
    %v353 = vld [vmem:[#allocation5 + $0x490] sm:$0xff]
    %v354 = vld [vmem:[#allocation5 + $0x4f0] sm:$0xff]
    %v355 = vld [vmem:[#allocation5 + $0x550] sm:$0xff]
    %v356 = vld [vmem:[#allocation5 + $0x5b0] sm:$0xff]
    %357 = vmatprep.subr.mxu0 0.0
    %358 = vmatpush1.msra.mxu0 %v356
    %359 = vmatprep.subr.mxu0 0.0
    %360 = vmatpush1.msra.mxu0 %v355
    %361 = vmatprep.subr.mxu0 0.0
    %362 = vmatpush1.msra.mxu0 %v354
    %363 = vmatprep.subr.mxu0 0.0
    %364 = vmatpush1.msra.mxu0 %v353
    %365 = vmatprep.subr.mxu0 0.0
    %366 = vmatpush1.msra.mxu0 %v352
    %367 = vmatprep.subr.mxu0 0.0
    %368 = vmatpush1.msra.mxu0 %v351
    %369 = vmatprep.subr.mxu0 0.0
    %370 = vmatpush1.msra.mxu0 %v350
    %371 = vmatprep.subr.mxu0 0.0
    %372 = vmatpush1.msra.mxu0 %v349
    %373 = vmatprep.subr.mxu0 0.0
    %374 = vmatpush1.msra.mxu0 %v348
    %375 = vmatprep.subr.mxu0 0.0
    %376 = vmatpush1.msra.mxu0 %v347
    %377 = vmatprep.subr.mxu0 0.0
    %378 = vmatpush1.msra.mxu0 %v346
    %379 = vmatprep.subr.mxu0 0.0
    %380 = vmatpush1.msra.mxu0 %v345
    %381 = vmatprep.subr.mxu0 0.0
    %382 = vmatpush1.msra.mxu0 %v344
    %383 = vmatprep.subr.mxu0 0.0
    %384 = vmatpush1.msra.mxu0 %v343
    %385 = vmatprep.subr.mxu0 0.0
    %386 = vmatpush1.msra.mxu0 %v342
    %387 = vmatprep.subr.mxu0 0.0
    %388 = vmatpush1.msra.mxu0 %v341
    %389 = vmatprep.subr.mxu0 0.0
    %390 = vmatpush2.msra.mxu0 0.0
    %391 = vmatprep.subr.mxu0 0.0
    %392 = vmatpush2.msra.mxu0 0.0
    %393 = vmatprep.subr.mxu0 0.0
    %394 = vmatpush2.msra.mxu0 0.0
    %395 = vmatprep.subr.mxu0 0.0
    %396 = vmatpush2.msra.mxu0 0.0
    %397 = vmatprep.subr.mxu0 0.0
    %398 = vmatpush2.msra.mxu0 0.0
    %399 = vmatprep.subr.mxu0 0.0
    %400 = vmatpush2.msra.mxu0 0.0
    %401 = vmatprep.subr.mxu0 0.0
    %402 = vmatpush2.msra.mxu0 0.0
    %403 = vmatprep.subr.mxu0 0.0
    %404 = vmatpush2.msra.mxu0 0.0
    %405 = vmatprep.subr.mxu0 0.0
    %406 = vmatpush2.msra.mxu0 0.0
    %407 = vmatprep.subr.mxu0 0.0
    %408 = vmatpush2.msra.mxu0 0.0
    %409 = vmatprep.subr.mxu0 0.0
    %410 = vmatpush2.msra.mxu0 0.0
    %411 = vmatprep.subr.mxu0 0.0
    %412 = vmatpush2.msra.mxu0 0.0
    %413 = vmatprep.subr.mxu0 0.0
    %414 = vmatpush2.msra.mxu0 0.0
    %415 = vmatprep.subr.mxu0 0.0
    %416 = vmatpush2.msra.mxu0 0.0
    %417 = vmatprep.subr.mxu0 0.0
    %418 = vmatpush2.msra.mxu0 0.0
    %419 = vmatprep.subr.mxu0 0.0
    %420 = vmatpush2.msra.mxu0 0.0
    %421 = vmatprep.mubr.f32.mxu0 0.0
    %422 = vmatmul.mubr.f32.gmra.mxu0 %v340
    %v423 = vpop.f32.mrf.mxu0
    %v424 = vadd.f32 0.0, %v423
    %v425 = vpop.f32.mrf.mxu0
    %426 = vdwg.mxu0
    %v427 = vadd.f32 %v217, %v424
    %v428 = vtanh.pop %v427
    %v429 = vsub.f32 0.0, %v428
    %v430 = vmul.f32 %v333, %v429
    %v431 = vadd.f32 %v428, %v430
    %v434 = vrot.slane %v140, 2
    %v435 = vrot.slane %v142, 2
    %438 = vmatprep.subr.mxu0 %v256
    %439 = vmatpush1.msra.mxu0 %v255
    %440 = vmatprep.subr.mxu0 %v254
    %441 = vmatpush1.msra.mxu0 %v253
    %442 = vmatprep.subr.mxu0 %v252
    %443 = vmatpush1.msra.mxu0 %v251
    %444 = vmatprep.subr.mxu0 %v250
    %445 = vmatpush1.msra.mxu0 %v249
    %446 = vmatprep.subr.mxu0 %v248
    %447 = vmatpush1.msra.mxu0 %v247
    %448 = vmatprep.subr.mxu0 %v246
    %449 = vmatpush1.msra.mxu0 %v245
    %450 = vmatprep.subr.mxu0 %v244
    %451 = vmatpush1.msra.mxu0 %v243
    %452 = vmatprep.subr.mxu0 %v242
    %453 = vmatpush1.msra.mxu0 %v241
    %454 = vmatprep.subr.mxu0 %v240
    %455 = vmatpush1.msra.mxu0 %v239
    %456 = vmatprep.subr.mxu0 %v238
    %457 = vmatpush1.msra.mxu0 %v237
    %458 = vmatprep.subr.mxu0 %v236
    %459 = vmatpush1.msra.mxu0 %v235
    %460 = vmatprep.subr.mxu0 %v234
    %461 = vmatpush1.msra.mxu0 %v233
    %462 = vmatprep.subr.mxu0 %v232
    %463 = vmatpush1.msra.mxu0 %v231
    %464 = vmatprep.subr.mxu0 %v230
    %465 = vmatpush1.msra.mxu0 %v229
    %466 = vmatprep.subr.mxu0 %v228
    %467 = vmatpush1.msra.mxu0 %v227
    %468 = vmatprep.subr.mxu0 %v226
    %469 = vmatpush1.msra.mxu0 %v225
    %470 = vmatprep.subr.mxu0 0.0
    %471 = vmatpush2.msra.mxu0 0.0
    %472 = vmatprep.subr.mxu0 0.0
    %473 = vmatpush2.msra.mxu0 0.0
    %474 = vmatprep.subr.mxu0 0.0
    %475 = vmatpush2.msra.mxu0 0.0
    %476 = vmatprep.subr.mxu0 0.0
    %477 = vmatpush2.msra.mxu0 0.0
    %478 = vmatprep.subr.mxu0 0.0
    %479 = vmatpush2.msra.mxu0 0.0
    %480 = vmatprep.subr.mxu0 0.0
    %481 = vmatpush2.msra.mxu0 0.0
    %482 = vmatprep.subr.mxu0 0.0
    %483 = vmatpush2.msra.mxu0 0.0
    %484 = vmatprep.subr.mxu0 0.0
    %485 = vmatpush2.msra.mxu0 0.0
    %486 = vmatprep.subr.mxu0 0.0
    %487 = vmatpush2.msra.mxu0 0.0
    %488 = vmatprep.subr.mxu0 0.0
    %489 = vmatpush2.msra.mxu0 0.0
    %490 = vmatprep.subr.mxu0 0.0
    %491 = vmatpush2.msra.mxu0 0.0
    %492 = vmatprep.subr.mxu0 0.0
    %493 = vmatpush2.msra.mxu0 0.0
    %494 = vmatprep.subr.mxu0 0.0
    %495 = vmatpush2.msra.mxu0 0.0
    %496 = vmatprep.subr.mxu0 0.0
    %497 = vmatpush2.msra.mxu0 0.0
    %498 = vmatprep.subr.mxu0 0.0
    %499 = vmatpush2.msra.mxu0 0.0
    %500 = vmatprep.subr.mxu0 0.0
    %501 = vmatpush2.msra.mxu0 0.0
    %502 = vmatprep.mubr.f32.mxu0 0.0
    %503 = vmatmul.mubr.f32.gmra.mxu0 %v431
    %v504 = vpop.f32.mrf.mxu0
    %v505 = vadd.f32 %v434, %v504
    %v506 = vpop.f32.mrf.mxu0
    %v507 = vadd.f32 %v435, %v506
    %508 = vdwg.mxu0
    %v509 = vxor.u32 %v505, 2147483648
    %v510 = vmul.f32 %v509, 1.442695
    %v511 = vpow.pop %v510
    %v512 = vadd.f32 %v511, 1.0
    %v513 = vrcp.pop %v512
    %v514 = vmul.f32 1.0, %v513
    %v515 = vxor.u32 %v507, 2147483648
    %v516 = vmul.f32 %v515, 1.442695
    %v517 = vpow.pop %v516
    %v518 = vadd.f32 %v517, 1.0
    %v519 = vrcp.pop %v518
    %v520 = vmul.f32 1.0, %v519
    %v521 = vmul.f32 %v520, %v431
    %522 = vmatprep.subr.mxu0 0.0
    %523 = vmatpush1.msra.mxu0 %v356
    %524 = vmatprep.subr.mxu0 0.0
    %525 = vmatpush1.msra.mxu0 %v355
    %526 = vmatprep.subr.mxu0 0.0
    %527 = vmatpush1.msra.mxu0 %v354
    %528 = vmatprep.subr.mxu0 0.0
    %529 = vmatpush1.msra.mxu0 %v353
    %530 = vmatprep.subr.mxu0 0.0
    %531 = vmatpush1.msra.mxu0 %v352
    %532 = vmatprep.subr.mxu0 0.0
    %533 = vmatpush1.msra.mxu0 %v351
    %534 = vmatprep.subr.mxu0 0.0
    %535 = vmatpush1.msra.mxu0 %v350
    %536 = vmatprep.subr.mxu0 0.0
    %537 = vmatpush1.msra.mxu0 %v349
    %538 = vmatprep.subr.mxu0 0.0
    %539 = vmatpush1.msra.mxu0 %v348
    %540 = vmatprep.subr.mxu0 0.0
    %541 = vmatpush1.msra.mxu0 %v347
    %542 = vmatprep.subr.mxu0 0.0
    %543 = vmatpush1.msra.mxu0 %v346
    %544 = vmatprep.subr.mxu0 0.0
    %545 = vmatpush1.msra.mxu0 %v345
    %546 = vmatprep.subr.mxu0 0.0
    %547 = vmatpush1.msra.mxu0 %v344
    %548 = vmatprep.subr.mxu0 0.0
    %549 = vmatpush1.msra.mxu0 %v343
    %550 = vmatprep.subr.mxu0 0.0
    %551 = vmatpush1.msra.mxu0 %v342
    %552 = vmatprep.subr.mxu0 0.0
    %553 = vmatpush1.msra.mxu0 %v341
    %554 = vmatprep.subr.mxu0 0.0
    %555 = vmatpush2.msra.mxu0 0.0
    %556 = vmatprep.subr.mxu0 0.0
    %557 = vmatpush2.msra.mxu0 0.0
    %558 = vmatprep.subr.mxu0 0.0
    %559 = vmatpush2.msra.mxu0 0.0
    %560 = vmatprep.subr.mxu0 0.0
    %561 = vmatpush2.msra.mxu0 0.0
    %562 = vmatprep.subr.mxu0 0.0
    %563 = vmatpush2.msra.mxu0 0.0
    %564 = vmatprep.subr.mxu0 0.0
    %565 = vmatpush2.msra.mxu0 0.0
    %566 = vmatprep.subr.mxu0 0.0
    %567 = vmatpush2.msra.mxu0 0.0
    %568 = vmatprep.subr.mxu0 0.0
    %569 = vmatpush2.msra.mxu0 0.0
    %570 = vmatprep.subr.mxu0 0.0
    %571 = vmatpush2.msra.mxu0 0.0
    %572 = vmatprep.subr.mxu0 0.0
    %573 = vmatpush2.msra.mxu0 0.0
    %574 = vmatprep.subr.mxu0 0.0
    %575 = vmatpush2.msra.mxu0 0.0
    %576 = vmatprep.subr.mxu0 0.0
    %577 = vmatpush2.msra.mxu0 0.0
    %578 = vmatprep.subr.mxu0 0.0
    %579 = vmatpush2.msra.mxu0 0.0
    %580 = vmatprep.subr.mxu0 0.0
    %581 = vmatpush2.msra.mxu0 0.0
    %582 = vmatprep.subr.mxu0 0.0
    %583 = vmatpush2.msra.mxu0 0.0
    %584 = vmatprep.subr.mxu0 0.0
    %585 = vmatpush2.msra.mxu0 0.0
    %586 = vmatprep.mubr.f32.mxu0 0.0
    %587 = vmatmul.mubr.f32.gmra.mxu0 %v521
    %v588 = vpop.f32.mrf.mxu0
    %v589 = vadd.f32 0.0, %v588
    %v590 = vpop.f32.mrf.mxu0
    %591 = vdwg.mxu0
    %v593 = vrot.slane %v589, 6
    %v595 = vadd.f32 %v217, %v593
    %v596 = vtanh.pop %v595
    %v598 = vrot.slane %v596, 2
    %v600 = vsub.f32 %v431, %v598
    %v601 = vmul.f32 %v514, %v600
    %v603 = vrot.slane %v601, 6
    %v605 = vadd.f32 %v596, %v603
    %v607 = vrot.slane %v605, 2
    %v609 = vrot.slane %v140, 4
    %v610 = vrot.slane %v142, 4
    %613 = vmatprep.subr.mxu0 %v256
    %614 = vmatpush1.msra.mxu0 %v255
    %615 = vmatprep.subr.mxu0 %v254
    %616 = vmatpush1.msra.mxu0 %v253
    %617 = vmatprep.subr.mxu0 %v252
    %618 = vmatpush1.msra.mxu0 %v251
    %619 = vmatprep.subr.mxu0 %v250
    %620 = vmatpush1.msra.mxu0 %v249
    %621 = vmatprep.subr.mxu0 %v248
    %622 = vmatpush1.msra.mxu0 %v247
    %623 = vmatprep.subr.mxu0 %v246
    %624 = vmatpush1.msra.mxu0 %v245
    %625 = vmatprep.subr.mxu0 %v244
    %626 = vmatpush1.msra.mxu0 %v243
    %627 = vmatprep.subr.mxu0 %v242
    %628 = vmatpush1.msra.mxu0 %v241
    %629 = vmatprep.subr.mxu0 %v240
    %630 = vmatpush1.msra.mxu0 %v239
    %631 = vmatprep.subr.mxu0 %v238
    %632 = vmatpush1.msra.mxu0 %v237
    %633 = vmatprep.subr.mxu0 %v236
    %634 = vmatpush1.msra.mxu0 %v235
    %635 = vmatprep.subr.mxu0 %v234
    %636 = vmatpush1.msra.mxu0 %v233
    %637 = vmatprep.subr.mxu0 %v232
    %638 = vmatpush1.msra.mxu0 %v231
    %639 = vmatprep.subr.mxu0 %v230
    %640 = vmatpush1.msra.mxu0 %v229
    %641 = vmatprep.subr.mxu0 %v228
    %642 = vmatpush1.msra.mxu0 %v227
    %643 = vmatprep.subr.mxu0 %v226
    %644 = vmatpush1.msra.mxu0 %v225
    %645 = vmatprep.subr.mxu0 0.0
    %646 = vmatpush2.msra.mxu0 0.0
    %647 = vmatprep.subr.mxu0 0.0
    %648 = vmatpush2.msra.mxu0 0.0
    %649 = vmatprep.subr.mxu0 0.0
    %650 = vmatpush2.msra.mxu0 0.0
    %651 = vmatprep.subr.mxu0 0.0
    %652 = vmatpush2.msra.mxu0 0.0
    %653 = vmatprep.subr.mxu0 0.0
    %654 = vmatpush2.msra.mxu0 0.0
    %655 = vmatprep.subr.mxu0 0.0
    %656 = vmatpush2.msra.mxu0 0.0
    %657 = vmatprep.subr.mxu0 0.0
    %658 = vmatpush2.msra.mxu0 0.0
    %659 = vmatprep.subr.mxu0 0.0
    %660 = vmatpush2.msra.mxu0 0.0
    %661 = vmatprep.subr.mxu0 0.0
    %662 = vmatpush2.msra.mxu0 0.0
    %663 = vmatprep.subr.mxu0 0.0
    %664 = vmatpush2.msra.mxu0 0.0
    %665 = vmatprep.subr.mxu0 0.0
    %666 = vmatpush2.msra.mxu0 0.0
    %667 = vmatprep.subr.mxu0 0.0
    %668 = vmatpush2.msra.mxu0 0.0
    %669 = vmatprep.subr.mxu0 0.0
    %670 = vmatpush2.msra.mxu0 0.0
    %671 = vmatprep.subr.mxu0 0.0
    %672 = vmatpush2.msra.mxu0 0.0
    %673 = vmatprep.subr.mxu0 0.0
    %674 = vmatpush2.msra.mxu0 0.0
    %675 = vmatprep.subr.mxu0 0.0
    %676 = vmatpush2.msra.mxu0 0.0
    %677 = vmatprep.mubr.f32.mxu0 0.0
    %678 = vmatmul.mubr.f32.gmra.mxu0 %v607
    %v679 = vpop.f32.mrf.mxu0
    %v680 = vadd.f32 %v609, %v679
    %v681 = vpop.f32.mrf.mxu0
    %v682 = vadd.f32 %v610, %v681
    %683 = vdwg.mxu0
    %v684 = vxor.u32 %v680, 2147483648
    %v685 = vmul.f32 %v684, 1.442695
    %v686 = vpow.pop %v685
    %v687 = vadd.f32 %v686, 1.0
    %v688 = vrcp.pop %v687
    %v689 = vmul.f32 1.0, %v688
    %v690 = vxor.u32 %v682, 2147483648
    %v691 = vmul.f32 %v690, 1.442695
    %v692 = vpow.pop %v691
    %v693 = vadd.f32 %v692, 1.0
    %v694 = vrcp.pop %v693
    %v695 = vmul.f32 1.0, %v694
    %v696 = vmul.f32 %v695, %v607
    %697 = vmatprep.subr.mxu0 0.0
    %698 = vmatpush1.msra.mxu0 %v356
    %699 = vmatprep.subr.mxu0 0.0
    %700 = vmatpush1.msra.mxu0 %v355
    %701 = vmatprep.subr.mxu0 0.0
    %702 = vmatpush1.msra.mxu0 %v354
    %703 = vmatprep.subr.mxu0 0.0
    %704 = vmatpush1.msra.mxu0 %v353
    %705 = vmatprep.subr.mxu0 0.0
    %706 = vmatpush1.msra.mxu0 %v352
    %707 = vmatprep.subr.mxu0 0.0
    %708 = vmatpush1.msra.mxu0 %v351
    %709 = vmatprep.subr.mxu0 0.0
    %710 = vmatpush1.msra.mxu0 %v350
    %711 = vmatprep.subr.mxu0 0.0
    %712 = vmatpush1.msra.mxu0 %v349
    %713 = vmatprep.subr.mxu0 0.0
    %714 = vmatpush1.msra.mxu0 %v348
    %715 = vmatprep.subr.mxu0 0.0
    %716 = vmatpush1.msra.mxu0 %v347
    %717 = vmatprep.subr.mxu0 0.0
    %718 = vmatpush1.msra.mxu0 %v346
    %719 = vmatprep.subr.mxu0 0.0
    %720 = vmatpush1.msra.mxu0 %v345
    %721 = vmatprep.subr.mxu0 0.0
    %722 = vmatpush1.msra.mxu0 %v344
    %723 = vmatprep.subr.mxu0 0.0
    %724 = vmatpush1.msra.mxu0 %v343
    %725 = vmatprep.subr.mxu0 0.0
    %726 = vmatpush1.msra.mxu0 %v342
    %727 = vmatprep.subr.mxu0 0.0
    %728 = vmatpush1.msra.mxu0 %v341
    %729 = vmatprep.subr.mxu0 0.0
    %730 = vmatpush2.msra.mxu0 0.0
    %731 = vmatprep.subr.mxu0 0.0
    %732 = vmatpush2.msra.mxu0 0.0
    %733 = vmatprep.subr.mxu0 0.0
    %734 = vmatpush2.msra.mxu0 0.0
    %735 = vmatprep.subr.mxu0 0.0
    %736 = vmatpush2.msra.mxu0 0.0
    %737 = vmatprep.subr.mxu0 0.0
    %738 = vmatpush2.msra.mxu0 0.0
    %739 = vmatprep.subr.mxu0 0.0
    %740 = vmatpush2.msra.mxu0 0.0
    %741 = vmatprep.subr.mxu0 0.0
    %742 = vmatpush2.msra.mxu0 0.0
    %743 = vmatprep.subr.mxu0 0.0
    %744 = vmatpush2.msra.mxu0 0.0
    %745 = vmatprep.subr.mxu0 0.0
    %746 = vmatpush2.msra.mxu0 0.0
    %747 = vmatprep.subr.mxu0 0.0
    %748 = vmatpush2.msra.mxu0 0.0
    %749 = vmatprep.subr.mxu0 0.0
    %750 = vmatpush2.msra.mxu0 0.0
    %751 = vmatprep.subr.mxu0 0.0
    %752 = vmatpush2.msra.mxu0 0.0
    %753 = vmatprep.subr.mxu0 0.0
    %754 = vmatpush2.msra.mxu0 0.0
    %755 = vmatprep.subr.mxu0 0.0
    %756 = vmatpush2.msra.mxu0 0.0
    %757 = vmatprep.subr.mxu0 0.0
    %758 = vmatpush2.msra.mxu0 0.0
    %759 = vmatprep.subr.mxu0 0.0
    %760 = vmatpush2.msra.mxu0 0.0
    %761 = vmatprep.mubr.f32.mxu0 0.0
    %762 = vmatmul.mubr.f32.gmra.mxu0 %v696
    %v763 = vpop.f32.mrf.mxu0
    %v764 = vadd.f32 0.0, %v763
    %v765 = vpop.f32.mrf.mxu0
    %766 = vdwg.mxu0
    %v768 = vrot.slane %v764, 4
    %v770 = vadd.f32 %v217, %v768
    %v771 = vtanh.pop %v770
    %v773 = vrot.slane %v771, 2
    %v775 = vsub.f32 %v605, %v773
    %v777 = vrot.slane %v775, 2
    %v779 = vmul.f32 %v689, %v777
    %v781 = vrot.slane %v779, 4
    %v783 = vadd.f32 %v771, %v781
    %v785 = vrot.slane %v783, 4
    %v787 = vrot.slane %v140, 6
    %v788 = vrot.slane %v142, 6
    %791 = vmatprep.subr.mxu0 %v256
    %792 = vmatpush1.msra.mxu0 %v255
    %793 = vmatprep.subr.mxu0 %v254
    %794 = vmatpush1.msra.mxu0 %v253
    %795 = vmatprep.subr.mxu0 %v252
    %796 = vmatpush1.msra.mxu0 %v251
    %797 = vmatprep.subr.mxu0 %v250
    %798 = vmatpush1.msra.mxu0 %v249
    %799 = vmatprep.subr.mxu0 %v248
    %800 = vmatpush1.msra.mxu0 %v247
    %801 = vmatprep.subr.mxu0 %v246
    %802 = vmatpush1.msra.mxu0 %v245
    %803 = vmatprep.subr.mxu0 %v244
    %804 = vmatpush1.msra.mxu0 %v243
    %805 = vmatprep.subr.mxu0 %v242
    %806 = vmatpush1.msra.mxu0 %v241
    %807 = vmatprep.subr.mxu0 %v240
    %808 = vmatpush1.msra.mxu0 %v239
    %809 = vmatprep.subr.mxu0 %v238
    %810 = vmatpush1.msra.mxu0 %v237
    %811 = vmatprep.subr.mxu0 %v236
    %812 = vmatpush1.msra.mxu0 %v235
    %813 = vmatprep.subr.mxu0 %v234
    %814 = vmatpush1.msra.mxu0 %v233
    %815 = vmatprep.subr.mxu0 %v232
    %816 = vmatpush1.msra.mxu0 %v231
    %817 = vmatprep.subr.mxu0 %v230
    %818 = vmatpush1.msra.mxu0 %v229
    %819 = vmatprep.subr.mxu0 %v228
    %820 = vmatpush1.msra.mxu0 %v227
    %821 = vmatprep.subr.mxu0 %v226
    %822 = vmatpush1.msra.mxu0 %v225
    %823 = vmatprep.subr.mxu0 0.0
    %824 = vmatpush2.msra.mxu0 0.0
    %825 = vmatprep.subr.mxu0 0.0
    %826 = vmatpush2.msra.mxu0 0.0
    %827 = vmatprep.subr.mxu0 0.0
    %828 = vmatpush2.msra.mxu0 0.0
    %829 = vmatprep.subr.mxu0 0.0
    %830 = vmatpush2.msra.mxu0 0.0
    %831 = vmatprep.subr.mxu0 0.0
    %832 = vmatpush2.msra.mxu0 0.0
    %833 = vmatprep.subr.mxu0 0.0
    %834 = vmatpush2.msra.mxu0 0.0
    %835 = vmatprep.subr.mxu0 0.0
    %836 = vmatpush2.msra.mxu0 0.0
    %837 = vmatprep.subr.mxu0 0.0
    %838 = vmatpush2.msra.mxu0 0.0
    %839 = vmatprep.subr.mxu0 0.0
    %840 = vmatpush2.msra.mxu0 0.0
    %841 = vmatprep.subr.mxu0 0.0
    %842 = vmatpush2.msra.mxu0 0.0
    %843 = vmatprep.subr.mxu0 0.0
    %844 = vmatpush2.msra.mxu0 0.0
    %845 = vmatprep.subr.mxu0 0.0
    %846 = vmatpush2.msra.mxu0 0.0
    %847 = vmatprep.subr.mxu0 0.0
    %848 = vmatpush2.msra.mxu0 0.0
    %849 = vmatprep.subr.mxu0 0.0
    %850 = vmatpush2.msra.mxu0 0.0
    %851 = vmatprep.subr.mxu0 0.0
    %852 = vmatpush2.msra.mxu0 0.0
    %853 = vmatprep.subr.mxu0 0.0
    %854 = vmatpush2.msra.mxu0 0.0
    %855 = vmatprep.mubr.f32.mxu0 0.0
    %856 = vmatmul.mubr.f32.gmra.mxu0 %v785
    %v857 = vpop.f32.mrf.mxu0
    %v858 = vadd.f32 %v787, %v857
    %v859 = vpop.f32.mrf.mxu0
    %v860 = vadd.f32 %v788, %v859
    %861 = vdwg.mxu0
    %v862 = vxor.u32 %v858, 2147483648
    %v863 = vmul.f32 %v862, 1.442695
    %v864 = vpow.pop %v863
    %v865 = vadd.f32 %v864, 1.0
    %v866 = vrcp.pop %v865
    %v867 = vmul.f32 1.0, %v866
    %v868 = vxor.u32 %v860, 2147483648
    %v869 = vmul.f32 %v868, 1.442695
    %v870 = vpow.pop %v869
    %v871 = vadd.f32 %v870, 1.0
    %v872 = vrcp.pop %v871
    %v873 = vmul.f32 1.0, %v872
    %v874 = vmul.f32 %v873, %v785
    %875 = vmatprep.subr.mxu0 0.0
    %876 = vmatpush1.msra.mxu0 %v356
    %877 = vmatprep.subr.mxu0 0.0
    %878 = vmatpush1.msra.mxu0 %v355
    %879 = vmatprep.subr.mxu0 0.0
    %880 = vmatpush1.msra.mxu0 %v354
    %881 = vmatprep.subr.mxu0 0.0
    %882 = vmatpush1.msra.mxu0 %v353
    %883 = vmatprep.subr.mxu0 0.0
    %884 = vmatpush1.msra.mxu0 %v352
    %885 = vmatprep.subr.mxu0 0.0
    %886 = vmatpush1.msra.mxu0 %v351
    %887 = vmatprep.subr.mxu0 0.0
    %888 = vmatpush1.msra.mxu0 %v350
    %889 = vmatprep.subr.mxu0 0.0
    %890 = vmatpush1.msra.mxu0 %v349
    %891 = vmatprep.subr.mxu0 0.0
    %892 = vmatpush1.msra.mxu0 %v348
    %893 = vmatprep.subr.mxu0 0.0
    %894 = vmatpush1.msra.mxu0 %v347
    %895 = vmatprep.subr.mxu0 0.0
    %896 = vmatpush1.msra.mxu0 %v346
    %897 = vmatprep.subr.mxu0 0.0
    %898 = vmatpush1.msra.mxu0 %v345
    %899 = vmatprep.subr.mxu0 0.0
    %900 = vmatpush1.msra.mxu0 %v344
    %901 = vmatprep.subr.mxu0 0.0
    %902 = vmatpush1.msra.mxu0 %v343
    %903 = vmatprep.subr.mxu0 0.0
    %904 = vmatpush1.msra.mxu0 %v342
    %905 = vmatprep.subr.mxu0 0.0
    %906 = vmatpush1.msra.mxu0 %v341
    %907 = vmatprep.subr.mxu0 0.0
    %908 = vmatpush2.msra.mxu0 0.0
    %909 = vmatprep.subr.mxu0 0.0
    %910 = vmatpush2.msra.mxu0 0.0
    %911 = vmatprep.subr.mxu0 0.0
    %912 = vmatpush2.msra.mxu0 0.0
    %913 = vmatprep.subr.mxu0 0.0
    %914 = vmatpush2.msra.mxu0 0.0
    %915 = vmatprep.subr.mxu0 0.0
    %916 = vmatpush2.msra.mxu0 0.0
    %917 = vmatprep.subr.mxu0 0.0
    %918 = vmatpush2.msra.mxu0 0.0
    %919 = vmatprep.subr.mxu0 0.0
    %920 = vmatpush2.msra.mxu0 0.0
    %921 = vmatprep.subr.mxu0 0.0
    %922 = vmatpush2.msra.mxu0 0.0
    %923 = vmatprep.subr.mxu0 0.0
    %924 = vmatpush2.msra.mxu0 0.0
    %925 = vmatprep.subr.mxu0 0.0
    %926 = vmatpush2.msra.mxu0 0.0
    %927 = vmatprep.subr.mxu0 0.0
    %928 = vmatpush2.msra.mxu0 0.0
    %929 = vmatprep.subr.mxu0 0.0
    %930 = vmatpush2.msra.mxu0 0.0
    %931 = vmatprep.subr.mxu0 0.0
    %932 = vmatpush2.msra.mxu0 0.0
    %933 = vmatprep.subr.mxu0 0.0
    %934 = vmatpush2.msra.mxu0 0.0
    %935 = vmatprep.subr.mxu0 0.0
    %936 = vmatpush2.msra.mxu0 0.0
    %937 = vmatprep.subr.mxu0 0.0
    %938 = vmatpush2.msra.mxu0 0.0
    %939 = vmatprep.mubr.f32.mxu0 0.0
    %940 = vmatmul.mubr.f32.gmra.mxu0 %v874
    %v941 = vpop.f32.mrf.mxu0
    %v942 = vadd.f32 0.0, %v941
    %v943 = vpop.f32.mrf.mxu0
    %944 = vdwg.mxu0
    %v946 = vrot.slane %v942, 2
    %v948 = vadd.f32 %v217, %v946
    %v949 = vtanh.pop %v948
    %v951 = vrot.slane %v949, 2
    %v953 = vsub.f32 %v783, %v951
    %v955 = vrot.slane %v953, 4
    %v957 = vmul.f32 %v867, %v955
    %v959 = vrot.slane %v957, 2
    %v961 = vadd.f32 %v949, %v959
    %v963 = vrot.slane %v961, 6
    %965 = vmatprep.subr.mxu0 %v256
    %966 = vmatpush1.msra.mxu0 %v255
    %967 = vmatprep.subr.mxu0 %v254
    %968 = vmatpush1.msra.mxu0 %v253
    %969 = vmatprep.subr.mxu0 %v252
    %970 = vmatpush1.msra.mxu0 %v251
    %971 = vmatprep.subr.mxu0 %v250
    %972 = vmatpush1.msra.mxu0 %v249
    %973 = vmatprep.subr.mxu0 %v248
    %974 = vmatpush1.msra.mxu0 %v247
    %975 = vmatprep.subr.mxu0 %v246
    %976 = vmatpush1.msra.mxu0 %v245
    %977 = vmatprep.subr.mxu0 %v244
    %978 = vmatpush1.msra.mxu0 %v243
    %979 = vmatprep.subr.mxu0 %v242
    %980 = vmatpush1.msra.mxu0 %v241
    %981 = vmatprep.subr.mxu0 %v240
    %982 = vmatpush1.msra.mxu0 %v239
    %983 = vmatprep.subr.mxu0 %v238
    %984 = vmatpush1.msra.mxu0 %v237
    %985 = vmatprep.subr.mxu0 %v236
    %986 = vmatpush1.msra.mxu0 %v235
    %987 = vmatprep.subr.mxu0 %v234
    %988 = vmatpush1.msra.mxu0 %v233
    %989 = vmatprep.subr.mxu0 %v232
    %990 = vmatpush1.msra.mxu0 %v231
    %991 = vmatprep.subr.mxu0 %v230
    %992 = vmatpush1.msra.mxu0 %v229
    %993 = vmatprep.subr.mxu0 %v228
    %994 = vmatpush1.msra.mxu0 %v227
    %995 = vmatprep.subr.mxu0 %v226
    %996 = vmatpush1.msra.mxu0 %v225
    %997 = vmatprep.subr.mxu0 0.0
    %998 = vmatpush2.msra.mxu0 0.0
    %999 = vmatprep.subr.mxu0 0.0
    %1000 = vmatpush2.msra.mxu0 0.0
    %1001 = vmatprep.subr.mxu0 0.0
    %1002 = vmatpush2.msra.mxu0 0.0
    %1003 = vmatprep.subr.mxu0 0.0
    %1004 = vmatpush2.msra.mxu0 0.0
    %1005 = vmatprep.subr.mxu0 0.0
    %1006 = vmatpush2.msra.mxu0 0.0
    %1007 = vmatprep.subr.mxu0 0.0
    %1008 = vmatpush2.msra.mxu0 0.0
    %1009 = vmatprep.subr.mxu0 0.0
    %1010 = vmatpush2.msra.mxu0 0.0
    %1011 = vmatprep.subr.mxu0 0.0
    %1012 = vmatpush2.msra.mxu0 0.0
    %1013 = vmatprep.subr.mxu0 0.0
    %1014 = vmatpush2.msra.mxu0 0.0
    %1015 = vmatprep.subr.mxu0 0.0
    %1016 = vmatpush2.msra.mxu0 0.0
    %1017 = vmatprep.subr.mxu0 0.0
    %1018 = vmatpush2.msra.mxu0 0.0
    %1019 = vmatprep.subr.mxu0 0.0
    %1020 = vmatpush2.msra.mxu0 0.0
    %1021 = vmatprep.subr.mxu0 0.0
    %1022 = vmatpush2.msra.mxu0 0.0
    %1023 = vmatprep.subr.mxu0 0.0
    %1024 = vmatpush2.msra.mxu0 0.0
    %1025 = vmatprep.subr.mxu0 0.0
    %1026 = vmatpush2.msra.mxu0 0.0
    %1027 = vmatprep.subr.mxu0 0.0
    %1028 = vmatpush2.msra.mxu0 0.0
    %1029 = vmatprep.mubr.f32.mxu0 0.0
    %1030 = vmatmul.mubr.f32.gmra.mxu0 %v963
    %v1031 = vpop.f32.mrf.mxu0
    %v1032 = vadd.f32 %v146, %v1031
    %v1033 = vpop.f32.mrf.mxu0
    %v1034 = vadd.f32 %v148, %v1033
    %1035 = vdwg.mxu0
    %v1036 = vxor.u32 %v1032, 2147483648
    %v1037 = vmul.f32 %v1036, 1.442695
    %v1038 = vpow.pop %v1037
    %v1039 = vadd.f32 %v1038, 1.0
    %v1040 = vrcp.pop %v1039
    %v1041 = vmul.f32 1.0, %v1040
    %v1042 = vxor.u32 %v1034, 2147483648
    %v1043 = vmul.f32 %v1042, 1.442695
    %v1044 = vpow.pop %v1043
    %v1045 = vadd.f32 %v1044, 1.0
    %v1046 = vrcp.pop %v1045
    %v1047 = vmul.f32 1.0, %v1046
    %v1048 = vmul.f32 %v1047, %v963
    %1049 = vmatprep.subr.mxu0 0.0
    %1050 = vmatpush1.msra.mxu0 %v356
    %1051 = vmatprep.subr.mxu0 0.0
    %1052 = vmatpush1.msra.mxu0 %v355
    %1053 = vmatprep.subr.mxu0 0.0
    %1054 = vmatpush1.msra.mxu0 %v354
    %1055 = vmatprep.subr.mxu0 0.0
    %1056 = vmatpush1.msra.mxu0 %v353
    %1057 = vmatprep.subr.mxu0 0.0
    %1058 = vmatpush1.msra.mxu0 %v352
    %1059 = vmatprep.subr.mxu0 0.0
    %1060 = vmatpush1.msra.mxu0 %v351
    %1061 = vmatprep.subr.mxu0 0.0
    %1062 = vmatpush1.msra.mxu0 %v350
    %1063 = vmatprep.subr.mxu0 0.0
    %1064 = vmatpush1.msra.mxu0 %v349
    %1065 = vmatprep.subr.mxu0 0.0
    %1066 = vmatpush1.msra.mxu0 %v348
    %1067 = vmatprep.subr.mxu0 0.0
    %1068 = vmatpush1.msra.mxu0 %v347
    %1069 = vmatprep.subr.mxu0 0.0
    %1070 = vmatpush1.msra.mxu0 %v346
    %1071 = vmatprep.subr.mxu0 0.0
    %1072 = vmatpush1.msra.mxu0 %v345
    %1073 = vmatprep.subr.mxu0 0.0
    %1074 = vmatpush1.msra.mxu0 %v344
    %1075 = vmatprep.subr.mxu0 0.0
    %1076 = vmatpush1.msra.mxu0 %v343
    %1077 = vmatprep.subr.mxu0 0.0
    %1078 = vmatpush1.msra.mxu0 %v342
    %1079 = vmatprep.subr.mxu0 0.0
    %1080 = vmatpush1.msra.mxu0 %v341
    %1081 = vmatprep.subr.mxu0 0.0
    %1082 = vmatpush2.msra.mxu0 0.0
    %1083 = vmatprep.subr.mxu0 0.0
    %1084 = vmatpush2.msra.mxu0 0.0
    %1085 = vmatprep.subr.mxu0 0.0
    %1086 = vmatpush2.msra.mxu0 0.0
    %1087 = vmatprep.subr.mxu0 0.0
    %1088 = vmatpush2.msra.mxu0 0.0
    %1089 = vmatprep.subr.mxu0 0.0
    %1090 = vmatpush2.msra.mxu0 0.0
    %1091 = vmatprep.subr.mxu0 0.0
    %1092 = vmatpush2.msra.mxu0 0.0
    %1093 = vmatprep.subr.mxu0 0.0
    %1094 = vmatpush2.msra.mxu0 0.0
    %1095 = vmatprep.subr.mxu0 0.0
    %1096 = vmatpush2.msra.mxu0 0.0
    %1097 = vmatprep.subr.mxu0 0.0
    %1098 = vmatpush2.msra.mxu0 0.0
    %1099 = vmatprep.subr.mxu0 0.0
    %1100 = vmatpush2.msra.mxu0 0.0
    %1101 = vmatprep.subr.mxu0 0.0
    %1102 = vmatpush2.msra.mxu0 0.0
    %1103 = vmatprep.subr.mxu0 0.0
    %1104 = vmatpush2.msra.mxu0 0.0
    %1105 = vmatprep.subr.mxu0 0.0
    %1106 = vmatpush2.msra.mxu0 0.0
    %1107 = vmatprep.subr.mxu0 0.0
    %1108 = vmatpush2.msra.mxu0 0.0
    %1109 = vmatprep.subr.mxu0 0.0
    %1110 = vmatpush2.msra.mxu0 0.0
    %1111 = vmatprep.subr.mxu0 0.0
    %1112 = vmatpush2.msra.mxu0 0.0
    %1113 = vmatprep.mubr.f32.mxu0 0.0
    %1114 = vmatmul.mubr.f32.gmra.mxu0 %v1048
    %v1115 = vpop.f32.mrf.mxu0
    %v1116 = vadd.f32 0.0, %v1115
    %v1117 = vpop.f32.mrf.mxu0
    %1118 = vdwg.mxu0
    %v1119 = vadd.f32 %v222, %v1116
    %v1120 = vtanh.pop %v1119
    %v1122 = vrot.slane %v1120, 2
    %v1124 = vsub.f32 %v961, %v1122
    %v1126 = vrot.slane %v1124, 6
    %v1128 = vmul.f32 %v1041, %v1126
    %v1129 = vadd.f32 %v1120, %v1128
    %v1132 = vrot.slane %v146, 2
    %v1133 = vrot.slane %v148, 2
    %1136 = vmatprep.subr.mxu0 %v256
    %1137 = vmatpush1.msra.mxu0 %v255
    %1138 = vmatprep.subr.mxu0 %v254
    %1139 = vmatpush1.msra.mxu0 %v253
    %1140 = vmatprep.subr.mxu0 %v252
    %1141 = vmatpush1.msra.mxu0 %v251
    %1142 = vmatprep.subr.mxu0 %v250
    %1143 = vmatpush1.msra.mxu0 %v249
    %1144 = vmatprep.subr.mxu0 %v248
    %1145 = vmatpush1.msra.mxu0 %v247
    %1146 = vmatprep.subr.mxu0 %v246
    %1147 = vmatpush1.msra.mxu0 %v245
    %1148 = vmatprep.subr.mxu0 %v244
    %1149 = vmatpush1.msra.mxu0 %v243
    %1150 = vmatprep.subr.mxu0 %v242
    %1151 = vmatpush1.msra.mxu0 %v241
    %1152 = vmatprep.subr.mxu0 %v240
    %1153 = vmatpush1.msra.mxu0 %v239
    %1154 = vmatprep.subr.mxu0 %v238
    %1155 = vmatpush1.msra.mxu0 %v237
    %1156 = vmatprep.subr.mxu0 %v236
    %1157 = vmatpush1.msra.mxu0 %v235
    %1158 = vmatprep.subr.mxu0 %v234
    %1159 = vmatpush1.msra.mxu0 %v233
    %1160 = vmatprep.subr.mxu0 %v232
    %1161 = vmatpush1.msra.mxu0 %v231
    %1162 = vmatprep.subr.mxu0 %v230
    %1163 = vmatpush1.msra.mxu0 %v229
    %1164 = vmatprep.subr.mxu0 %v228
    %1165 = vmatpush1.msra.mxu0 %v227
    %1166 = vmatprep.subr.mxu0 %v226
    %1167 = vmatpush1.msra.mxu0 %v225
    %1168 = vmatprep.subr.mxu0 0.0
    %1169 = vmatpush2.msra.mxu0 0.0
    %1170 = vmatprep.subr.mxu0 0.0
    %1171 = vmatpush2.msra.mxu0 0.0
    %1172 = vmatprep.subr.mxu0 0.0
    %1173 = vmatpush2.msra.mxu0 0.0
    %1174 = vmatprep.subr.mxu0 0.0
    %1175 = vmatpush2.msra.mxu0 0.0
    %1176 = vmatprep.subr.mxu0 0.0
    %1177 = vmatpush2.msra.mxu0 0.0
    %1178 = vmatprep.subr.mxu0 0.0
    %1179 = vmatpush2.msra.mxu0 0.0
    %1180 = vmatprep.subr.mxu0 0.0
    %1181 = vmatpush2.msra.mxu0 0.0
    %1182 = vmatprep.subr.mxu0 0.0
    %1183 = vmatpush2.msra.mxu0 0.0
    %1184 = vmatprep.subr.mxu0 0.0
    %1185 = vmatpush2.msra.mxu0 0.0
    %1186 = vmatprep.subr.mxu0 0.0
    %1187 = vmatpush2.msra.mxu0 0.0
    %1188 = vmatprep.subr.mxu0 0.0
    %1189 = vmatpush2.msra.mxu0 0.0
    %1190 = vmatprep.subr.mxu0 0.0
    %1191 = vmatpush2.msra.mxu0 0.0
    %1192 = vmatprep.subr.mxu0 0.0
    %1193 = vmatpush2.msra.mxu0 0.0
    %1194 = vmatprep.subr.mxu0 0.0
    %1195 = vmatpush2.msra.mxu0 0.0
    %1196 = vmatprep.subr.mxu0 0.0
    %1197 = vmatpush2.msra.mxu0 0.0
    %1198 = vmatprep.subr.mxu0 0.0
    %1199 = vmatpush2.msra.mxu0 0.0
    %1200 = vmatprep.mubr.f32.mxu0 0.0
    %1201 = vmatmul.mubr.f32.gmra.mxu0 %v1129
    %v1202 = vpop.f32.mrf.mxu0
    %v1203 = vadd.f32 %v1132, %v1202
    %v1204 = vpop.f32.mrf.mxu0
    %v1205 = vadd.f32 %v1133, %v1204
    %1206 = vdwg.mxu0
    %v1207 = vxor.u32 %v1203, 2147483648
    %v1208 = vmul.f32 %v1207, 1.442695
    %v1209 = vpow.pop %v1208
    %v1210 = vadd.f32 %v1209, 1.0
    %v1211 = vrcp.pop %v1210
    %v1212 = vmul.f32 1.0, %v1211
    %v1213 = vxor.u32 %v1205, 2147483648
    %v1214 = vmul.f32 %v1213, 1.442695
    %v1215 = vpow.pop %v1214
    %v1216 = vadd.f32 %v1215, 1.0
    %v1217 = vrcp.pop %v1216
    %v1218 = vmul.f32 1.0, %v1217
    %v1219 = vmul.f32 %v1218, %v1129
    %1220 = vmatprep.subr.mxu0 0.0
    %1221 = vmatpush1.msra.mxu0 %v356
    %1222 = vmatprep.subr.mxu0 0.0
    %1223 = vmatpush1.msra.mxu0 %v355
    %1224 = vmatprep.subr.mxu0 0.0
    %1225 = vmatpush1.msra.mxu0 %v354
    %1226 = vmatprep.subr.mxu0 0.0
    %1227 = vmatpush1.msra.mxu0 %v353
    %1228 = vmatprep.subr.mxu0 0.0
    %1229 = vmatpush1.msra.mxu0 %v352
    %1230 = vmatprep.subr.mxu0 0.0
    %1231 = vmatpush1.msra.mxu0 %v351
    %1232 = vmatprep.subr.mxu0 0.0
    %1233 = vmatpush1.msra.mxu0 %v350
    %1234 = vmatprep.subr.mxu0 0.0
    %1235 = vmatpush1.msra.mxu0 %v349
    %1236 = vmatprep.subr.mxu0 0.0
    %1237 = vmatpush1.msra.mxu0 %v348
    %1238 = vmatprep.subr.mxu0 0.0
    %1239 = vmatpush1.msra.mxu0 %v347
    %1240 = vmatprep.subr.mxu0 0.0
    %1241 = vmatpush1.msra.mxu0 %v346
    %1242 = vmatprep.subr.mxu0 0.0
    %1243 = vmatpush1.msra.mxu0 %v345
    %1244 = vmatprep.subr.mxu0 0.0
    %1245 = vmatpush1.msra.mxu0 %v344
    %1246 = vmatprep.subr.mxu0 0.0
    %1247 = vmatpush1.msra.mxu0 %v343
    %1248 = vmatprep.subr.mxu0 0.0
    %1249 = vmatpush1.msra.mxu0 %v342
    %1250 = vmatprep.subr.mxu0 0.0
    %1251 = vmatpush1.msra.mxu0 %v341
    %1252 = vmatprep.subr.mxu0 0.0
    %1253 = vmatpush2.msra.mxu0 0.0
    %1254 = vmatprep.subr.mxu0 0.0
    %1255 = vmatpush2.msra.mxu0 0.0
    %1256 = vmatprep.subr.mxu0 0.0
    %1257 = vmatpush2.msra.mxu0 0.0
    %1258 = vmatprep.subr.mxu0 0.0
    %1259 = vmatpush2.msra.mxu0 0.0
    %1260 = vmatprep.subr.mxu0 0.0
    %1261 = vmatpush2.msra.mxu0 0.0
    %1262 = vmatprep.subr.mxu0 0.0
    %1263 = vmatpush2.msra.mxu0 0.0
    %1264 = vmatprep.subr.mxu0 0.0
    %1265 = vmatpush2.msra.mxu0 0.0
    %1266 = vmatprep.subr.mxu0 0.0
    %1267 = vmatpush2.msra.mxu0 0.0
    %1268 = vmatprep.subr.mxu0 0.0
    %1269 = vmatpush2.msra.mxu0 0.0
    %1270 = vmatprep.subr.mxu0 0.0
    %1271 = vmatpush2.msra.mxu0 0.0
    %1272 = vmatprep.subr.mxu0 0.0
    %1273 = vmatpush2.msra.mxu0 0.0
    %1274 = vmatprep.subr.mxu0 0.0
    %1275 = vmatpush2.msra.mxu0 0.0
    %1276 = vmatprep.subr.mxu0 0.0
    %1277 = vmatpush2.msra.mxu0 0.0
    %1278 = vmatprep.subr.mxu0 0.0
    %1279 = vmatpush2.msra.mxu0 0.0
    %1280 = vmatprep.subr.mxu0 0.0
    %1281 = vmatpush2.msra.mxu0 0.0
    %1282 = vmatprep.subr.mxu0 0.0
    %1283 = vmatpush2.msra.mxu0 0.0
    %1284 = vmatprep.mubr.f32.mxu0 0.0
    %1285 = vmatmul.mubr.f32.gmra.mxu0 %v1219
    %v1286 = vpop.f32.mrf.mxu0
    %v1287 = vadd.f32 0.0, %v1286
    %v1288 = vpop.f32.mrf.mxu0
    %1289 = vdwg.mxu0
    %v1291 = vrot.slane %v1287, 6
    %v1293 = vadd.f32 %v222, %v1291
    %v1294 = vtanh.pop %v1293
    %v1296 = vrot.slane %v1294, 2
    %v1298 = vsub.f32 %v1129, %v1296
    %v1299 = vmul.f32 %v1212, %v1298
    %v1301 = vrot.slane %v1299, 6
    %v1303 = vadd.f32 %v1294, %v1301
    %v1304 = vld [vmem:[%s3 + $0x3] sm:$0x7]
    %v1305 = vld [vmem:[%s3 + $0x8] sm:$0x1]
    %v1306 = vld [vmem:[#allocation5 + $0x30] sm:$0xff]
    %v1307 = vld [vmem:[#allocation5 + $0x38] sm:$0xff]
    %v1308 = vld [vmem:[#allocation5 + $0x40] sm:$0xff]
    %v1309 = vld [vmem:[#allocation5 + $0x90] sm:$0xff]
    %v1310 = vld [vmem:[#allocation5 + $0x98] sm:$0xff]
    %v1311 = vld [vmem:[#allocation5 + $0xa0] sm:$0xff]
    %v1312 = vld [vmem:[#allocation5 + $0xf0] sm:$0xff]
    %v1313 = vld [vmem:[#allocation5 + $0xf8] sm:$0xff]
    %v1314 = vld [vmem:[#allocation5 + $0x100] sm:$0xff]
    %v1315 = vld [vmem:[#allocation5 + $0x150] sm:$0xff]
    %v1316 = vld [vmem:[#allocation5 + $0x158] sm:$0xff]
    %v1317 = vld [vmem:[#allocation5 + $0x160] sm:$0xff]
    %v1318 = vld [vmem:[#allocation5 + $0x1b0] sm:$0xff]
    %v1319 = vld [vmem:[#allocation5 + $0x1b8] sm:$0xff]
    %v1320 = vld [vmem:[#allocation5 + $0x1c0] sm:$0xff]
    %v1321 = vld [vmem:[#allocation5 + $0x210] sm:$0xff]
    %v1322 = vld [vmem:[#allocation5 + $0x218] sm:$0xff]
    %v1323 = vld [vmem:[#allocation5 + $0x220] sm:$0xff]
    %v1324 = vld [vmem:[#allocation5 + $0x270] sm:$0xff]
    %v1325 = vld [vmem:[#allocation5 + $0x278] sm:$0xff]
    %v1326 = vld [vmem:[#allocation5 + $0x280] sm:$0xff]
    %v1327 = vld [vmem:[#allocation5 + $0x2d0] sm:$0xff]
    %v1328 = vld [vmem:[#allocation5 + $0x2d8] sm:$0xff]
    %v1329 = vld [vmem:[#allocation5 + $0x2e0] sm:$0xff]
    %v1330 = vld [vmem:[#allocation5 + $0x330] sm:$0xff]
    %v1331 = vld [vmem:[#allocation5 + $0x338] sm:$0xff]
    %v1332 = vld [vmem:[#allocation5 + $0x340] sm:$0xff]
    %v1333 = vld [vmem:[#allocation5 + $0x390] sm:$0xff]
    %v1334 = vld [vmem:[#allocation5 + $0x398] sm:$0xff]
    %v1335 = vld [vmem:[#allocation5 + $0x3a0] sm:$0xff]
    %v1336 = vld [vmem:[#allocation5 + $0x3f0] sm:$0xff]
    %v1337 = vld [vmem:[#allocation5 + $0x3f8] sm:$0xff]
    %v1338 = vld [vmem:[#allocation5 + $0x400] sm:$0xff]
    %v1339 = vld [vmem:[#allocation5 + $0x450] sm:$0xff]
    %v1340 = vld [vmem:[#allocation5 + $0x458] sm:$0xff]
    %v1341 = vld [vmem:[#allocation5 + $0x460] sm:$0xff]
    %v1342 = vld [vmem:[#allocation5 + $0x4b0] sm:$0xff]
    %v1343 = vld [vmem:[#allocation5 + $0x4b8] sm:$0xff]
    %v1344 = vld [vmem:[#allocation5 + $0x4c0] sm:$0xff]
    %v1345 = vld [vmem:[#allocation5 + $0x510] sm:$0xff]
    %v1346 = vld [vmem:[#allocation5 + $0x518] sm:$0xff]
    %v1347 = vld [vmem:[#allocation5 + $0x520] sm:$0xff]
    %v1348 = vld [vmem:[#allocation5 + $0x570] sm:$0xff]
    %v1349 = vld [vmem:[#allocation5 + $0x578] sm:$0xff]
    %v1350 = vld [vmem:[#allocation5 + $0x580] sm:$0xff]
    %v1351 = vld [vmem:[#allocation5 + $0x5d0] sm:$0xff]
    %v1352 = vld [vmem:[#allocation5 + $0x5d8] sm:$0xff]
    %v1353 = vld [vmem:[#allocation5 + $0x5e0] sm:$0xff]
    %v1355 = vlaneseq
    %v1356 = vshrl.u32 %v1355, 7
    %v1357 = vsub.s32 0, %v1356
    %v1358 = vrot.slane %v1304, %v1357
    %v1359 = vlaneseq
    %v1360 = vshrl.u32 %v1359, 7
    %v1361 = vsub.s32 1, %v1360
    %v1362 = vrot.slane %v1304, %v1361
    %v1363 = vlaneseq
    %v1364 = vshrl.u32 %v1363, 7
    %v1365 = vsub.s32 2, %v1364
    %v1366 = vrot.slane %v1304, %v1365
    %v1371 = vrot.slane %v1303, 2
    %1373 = vmatprep.subr.mxu0 %v1352
    %1374 = vmatpush1.msra.mxu0 %v1351
    %1375 = vmatprep.subr.mxu0 %v1349
    %1376 = vmatpush1.msra.mxu0 %v1348
    %1377 = vmatprep.subr.mxu0 %v1346
    %1378 = vmatpush1.msra.mxu0 %v1345
    %1379 = vmatprep.subr.mxu0 %v1343
    %1380 = vmatpush1.msra.mxu0 %v1342
    %1381 = vmatprep.subr.mxu0 %v1340
    %1382 = vmatpush1.msra.mxu0 %v1339
    %1383 = vmatprep.subr.mxu0 %v1337
    %1384 = vmatpush1.msra.mxu0 %v1336
    %1385 = vmatprep.subr.mxu0 %v1334
    %1386 = vmatpush1.msra.mxu0 %v1333
    %1387 = vmatprep.subr.mxu0 %v1331
    %1388 = vmatpush1.msra.mxu0 %v1330
    %1389 = vmatprep.subr.mxu0 %v1328
    %1390 = vmatpush1.msra.mxu0 %v1327
    %1391 = vmatprep.subr.mxu0 %v1325
    %1392 = vmatpush1.msra.mxu0 %v1324
    %1393 = vmatprep.subr.mxu0 %v1322
    %1394 = vmatpush1.msra.mxu0 %v1321
    %1395 = vmatprep.subr.mxu0 %v1319
    %1396 = vmatpush1.msra.mxu0 %v1318
    %1397 = vmatprep.subr.mxu0 %v1316
    %1398 = vmatpush1.msra.mxu0 %v1315
    %1399 = vmatprep.subr.mxu0 %v1313
    %1400 = vmatpush1.msra.mxu0 %v1312
    %1401 = vmatprep.subr.mxu0 %v1310
    %1402 = vmatpush1.msra.mxu0 %v1309
    %1403 = vmatprep.subr.mxu0 %v1307
    %1404 = vmatpush1.msra.mxu0 %v1306
    %1405 = vmatprep.subr.mxu0 0.0
    %1406 = vmatpush2.msra.mxu0 0.0
    %1407 = vmatprep.subr.mxu0 0.0
    %1408 = vmatpush2.msra.mxu0 0.0
    %1409 = vmatprep.subr.mxu0 0.0
    %1410 = vmatpush2.msra.mxu0 0.0
    %1411 = vmatprep.subr.mxu0 0.0
    %1412 = vmatpush2.msra.mxu0 0.0
    %1413 = vmatprep.subr.mxu0 0.0
    %1414 = vmatpush2.msra.mxu0 0.0
    %1415 = vmatprep.subr.mxu0 0.0
    %1416 = vmatpush2.msra.mxu0 0.0
    %1417 = vmatprep.subr.mxu0 0.0
    %1418 = vmatpush2.msra.mxu0 0.0
    %1419 = vmatprep.subr.mxu0 0.0
    %1420 = vmatpush2.msra.mxu0 0.0
    %1421 = vmatprep.subr.mxu0 0.0
    %1422 = vmatpush2.msra.mxu0 0.0
    %1423 = vmatprep.subr.mxu0 0.0
    %1424 = vmatpush2.msra.mxu0 0.0
    %1425 = vmatprep.subr.mxu0 0.0
    %1426 = vmatpush2.msra.mxu0 0.0
    %1427 = vmatprep.subr.mxu0 0.0
    %1428 = vmatpush2.msra.mxu0 0.0
    %1429 = vmatprep.subr.mxu0 0.0
    %1430 = vmatpush2.msra.mxu0 0.0
    %1431 = vmatprep.subr.mxu0 0.0
    %1432 = vmatpush2.msra.mxu0 0.0
    %1433 = vmatprep.subr.mxu0 0.0
    %1434 = vmatpush2.msra.mxu0 0.0
    %1435 = vmatprep.subr.mxu0 0.0
    %1436 = vmatpush2.msra.mxu0 0.0
    %1437 = vmatprep.mubr.f32.mxu0 0.0
    %1438 = vmatmul.mubr.f32.gmra.mxu0 %v1371
    %v1439 = vpop.f32.mrf.mxu0
    %v1440 = vadd.f32 %v1358, %v1439
    %v1441 = vpop.f32.mrf.mxu0
    %v1442 = vadd.f32 %v1362, %v1441
    %1443 = vdwg.mxu0
    %1444 = vmatprep.subr.mxu0 0.0
    %1445 = vmatpush1.msra.mxu0 %v1353
    %1446 = vmatprep.subr.mxu0 0.0
    %1447 = vmatpush1.msra.mxu0 %v1350
    %1448 = vmatprep.subr.mxu0 0.0
    %1449 = vmatpush1.msra.mxu0 %v1347
    %1450 = vmatprep.subr.mxu0 0.0
    %1451 = vmatpush1.msra.mxu0 %v1344
    %1452 = vmatprep.subr.mxu0 0.0
    %1453 = vmatpush1.msra.mxu0 %v1341
    %1454 = vmatprep.subr.mxu0 0.0
    %1455 = vmatpush1.msra.mxu0 %v1338
    %1456 = vmatprep.subr.mxu0 0.0
    %1457 = vmatpush1.msra.mxu0 %v1335
    %1458 = vmatprep.subr.mxu0 0.0
    %1459 = vmatpush1.msra.mxu0 %v1332
    %1460 = vmatprep.subr.mxu0 0.0
    %1461 = vmatpush1.msra.mxu0 %v1329
    %1462 = vmatprep.subr.mxu0 0.0
    %1463 = vmatpush1.msra.mxu0 %v1326
    %1464 = vmatprep.subr.mxu0 0.0
    %1465 = vmatpush1.msra.mxu0 %v1323
    %1466 = vmatprep.subr.mxu0 0.0
    %1467 = vmatpush1.msra.mxu0 %v1320
    %1468 = vmatprep.subr.mxu0 0.0
    %1469 = vmatpush1.msra.mxu0 %v1317
    %1470 = vmatprep.subr.mxu0 0.0
    %1471 = vmatpush1.msra.mxu0 %v1314
    %1472 = vmatprep.subr.mxu0 0.0
    %1473 = vmatpush1.msra.mxu0 %v1311
    %1474 = vmatprep.subr.mxu0 0.0
    %1475 = vmatpush1.msra.mxu0 %v1308
    %1476 = vmatprep.subr.mxu0 0.0
    %1477 = vmatpush2.msra.mxu0 0.0
    %1478 = vmatprep.subr.mxu0 0.0
    %1479 = vmatpush2.msra.mxu0 0.0
    %1480 = vmatprep.subr.mxu0 0.0
    %1481 = vmatpush2.msra.mxu0 0.0
    %1482 = vmatprep.subr.mxu0 0.0
    %1483 = vmatpush2.msra.mxu0 0.0
    %1484 = vmatprep.subr.mxu0 0.0
    %1485 = vmatpush2.msra.mxu0 0.0
    %1486 = vmatprep.subr.mxu0 0.0
    %1487 = vmatpush2.msra.mxu0 0.0
    %1488 = vmatprep.subr.mxu0 0.0
    %1489 = vmatpush2.msra.mxu0 0.0
    %1490 = vmatprep.subr.mxu0 0.0
    %1491 = vmatpush2.msra.mxu0 0.0
    %1492 = vmatprep.subr.mxu0 0.0
    %1493 = vmatpush2.msra.mxu0 0.0
    %1494 = vmatprep.subr.mxu0 0.0
    %1495 = vmatpush2.msra.mxu0 0.0
    %1496 = vmatprep.subr.mxu0 0.0
    %1497 = vmatpush2.msra.mxu0 0.0
    %1498 = vmatprep.subr.mxu0 0.0
    %1499 = vmatpush2.msra.mxu0 0.0
    %1500 = vmatprep.subr.mxu0 0.0
    %1501 = vmatpush2.msra.mxu0 0.0
    %1502 = vmatprep.subr.mxu0 0.0
    %1503 = vmatpush2.msra.mxu0 0.0
    %1504 = vmatprep.subr.mxu0 0.0
    %1505 = vmatpush2.msra.mxu0 0.0
    %1506 = vmatprep.subr.mxu0 0.0
    %1507 = vmatpush2.msra.mxu0 0.0
    %1508 = vmatprep.mubr.f32.mxu0 0.0
    %1509 = vmatmul.mubr.f32.gmra.mxu0 %v1371
    %v1510 = vpop.f32.mrf.mxu0
    %v1511 = vadd.f32 %v1366, %v1510
    %v1512 = vpop.f32.mrf.mxu0
    %1513 = vdwg.mxu0
    %v1514 = vld [vmem:[#allocation5 + $0x58] sm:$0xff]
    %v1515 = vld [vmem:[#allocation5 + $0xb8] sm:$0xff]
    %v1516 = vld [vmem:[#allocation5 + $0x118] sm:$0xff]
    %v1517 = vld [vmem:[#allocation5 + $0x178] sm:$0xff]
    %v1518 = vld [vmem:[#allocation5 + $0x1d8] sm:$0xff]
    %v1519 = vld [vmem:[#allocation5 + $0x238] sm:$0xff]
    %v1520 = vld [vmem:[#allocation5 + $0x298] sm:$0xff]
    %v1521 = vld [vmem:[#allocation5 + $0x2f8] sm:$0xff]
    %v1522 = vld [vmem:[#allocation5 + $0x358] sm:$0xff]
    %v1523 = vld [vmem:[#allocation5 + $0x3b8] sm:$0xff]
    %v1524 = vld [vmem:[#allocation5 + $0x418] sm:$0xff]
    %v1525 = vld [vmem:[#allocation5 + $0x478] sm:$0xff]
    %v1526 = vld [vmem:[#allocation5 + $0x4d8] sm:$0xff]
    %v1527 = vld [vmem:[#allocation5 + $0x538] sm:$0xff]
    %v1528 = vld [vmem:[#allocation5 + $0x598] sm:$0xff]
    %v1529 = vld [vmem:[#allocation5 + $0x5f8] sm:$0xff]
    %1546 = vrot.lane.b32.xlu0 %v1514, 120
    %v1547 = vpop.permute.xlu0 %1546
    %1548 = vrot.lane.b32.xlu0 %v1515, 120
    %v1549 = vpop.permute.xlu0 %1548
    %1550 = vrot.lane.b32.xlu0 %v1516, 120
    %v1551 = vpop.permute.xlu0 %1550
    %1552 = vrot.lane.b32.xlu0 %v1517, 120
    %v1553 = vpop.permute.xlu0 %1552
    %1554 = vrot.lane.b32.xlu0 %v1518, 120
    %v1555 = vpop.permute.xlu0 %1554
    %1556 = vrot.lane.b32.xlu0 %v1519, 120
    %v1557 = vpop.permute.xlu0 %1556
    %1558 = vrot.lane.b32.xlu0 %v1520, 120
    %v1559 = vpop.permute.xlu0 %1558
    %1560 = vrot.lane.b32.xlu0 %v1521, 120
    %v1561 = vpop.permute.xlu0 %1560
    %1562 = vrot.lane.b32.xlu0 %v1522, 120
    %v1563 = vpop.permute.xlu0 %1562
    %1564 = vrot.lane.b32.xlu0 %v1523, 120
    %v1565 = vpop.permute.xlu0 %1564
    %1566 = vrot.lane.b32.xlu0 %v1524, 120
    %v1567 = vpop.permute.xlu0 %1566
    %1568 = vrot.lane.b32.xlu0 %v1525, 120
    %v1569 = vpop.permute.xlu0 %1568
    %1570 = vrot.lane.b32.xlu0 %v1526, 120
    %v1571 = vpop.permute.xlu0 %1570
    %1572 = vrot.lane.b32.xlu0 %v1527, 120
    %v1573 = vpop.permute.xlu0 %1572
    %1574 = vrot.lane.b32.xlu0 %v1528, 120
    %v1575 = vpop.permute.xlu0 %1574
    %1576 = vrot.lane.b32.xlu0 %v1529, 120
    %v1577 = vpop.permute.xlu0 %1576
    %1594 = vmatprep.subr.mxu0 0.0
    %1595 = vmatpush1.msra.mxu0 %v1577
    %1596 = vmatprep.subr.mxu0 0.0
    %1597 = vmatpush1.msra.mxu0 %v1575
    %1598 = vmatprep.subr.mxu0 0.0
    %1599 = vmatpush1.msra.mxu0 %v1573
    %1600 = vmatprep.subr.mxu0 0.0
    %1601 = vmatpush1.msra.mxu0 %v1571
    %1602 = vmatprep.subr.mxu0 0.0
    %1603 = vmatpush1.msra.mxu0 %v1569
    %1604 = vmatprep.subr.mxu0 0.0
    %1605 = vmatpush1.msra.mxu0 %v1567
    %1606 = vmatprep.subr.mxu0 0.0
    %1607 = vmatpush1.msra.mxu0 %v1565
    %1608 = vmatprep.subr.mxu0 0.0
    %1609 = vmatpush1.msra.mxu0 %v1563
    %1610 = vmatprep.subr.mxu0 0.0
    %1611 = vmatpush1.msra.mxu0 %v1561
    %1612 = vmatprep.subr.mxu0 0.0
    %1613 = vmatpush1.msra.mxu0 %v1559
    %1614 = vmatprep.subr.mxu0 0.0
    %1615 = vmatpush1.msra.mxu0 %v1557
    %1616 = vmatprep.subr.mxu0 0.0
    %1617 = vmatpush1.msra.mxu0 %v1555
    %1618 = vmatprep.subr.mxu0 0.0
    %1619 = vmatpush1.msra.mxu0 %v1553
    %1620 = vmatprep.subr.mxu0 0.0
    %1621 = vmatpush1.msra.mxu0 %v1551
    %1622 = vmatprep.subr.mxu0 0.0
    %1623 = vmatpush1.msra.mxu0 %v1549
    %1624 = vmatprep.subr.mxu0 0.0
    %1625 = vmatpush1.msra.mxu0 %v1547
    %1626 = vmatprep.subr.mxu0 0.0
    %1627 = vmatpush2.msra.mxu0 0.0
    %1628 = vmatprep.subr.mxu0 0.0
    %1629 = vmatpush2.msra.mxu0 0.0
    %1630 = vmatprep.subr.mxu0 0.0
    %1631 = vmatpush2.msra.mxu0 0.0
    %1632 = vmatprep.subr.mxu0 0.0
    %1633 = vmatpush2.msra.mxu0 0.0
    %1634 = vmatprep.subr.mxu0 0.0
    %1635 = vmatpush2.msra.mxu0 0.0
    %1636 = vmatprep.subr.mxu0 0.0
    %1637 = vmatpush2.msra.mxu0 0.0
    %1638 = vmatprep.subr.mxu0 0.0
    %1639 = vmatpush2.msra.mxu0 0.0
    %1640 = vmatprep.subr.mxu0 0.0
    %1641 = vmatpush2.msra.mxu0 0.0
    %1642 = vmatprep.subr.mxu0 0.0
    %1643 = vmatpush2.msra.mxu0 0.0
    %1644 = vmatprep.subr.mxu0 0.0
    %1645 = vmatpush2.msra.mxu0 0.0
    %1646 = vmatprep.subr.mxu0 0.0
    %1647 = vmatpush2.msra.mxu0 0.0
    %1648 = vmatprep.subr.mxu0 0.0
    %1649 = vmatpush2.msra.mxu0 0.0
    %1650 = vmatprep.subr.mxu0 0.0
    %1651 = vmatpush2.msra.mxu0 0.0
    %1652 = vmatprep.subr.mxu0 0.0
    %1653 = vmatpush2.msra.mxu0 0.0
    %1654 = vmatprep.subr.mxu0 0.0
    %1655 = vmatpush2.msra.mxu0 0.0
    %1656 = vmatprep.subr.mxu0 0.0
    %1657 = vmatpush2.msra.mxu0 0.0
    %1658 = vmatprep.mubr.f32.mxu0 0.0
    %1659 = vmatmul.mubr.f32.gmra.mxu0 %v1371
    %v1660 = vpop.f32.mrf.mxu0
    %v1661 = vadd.f32 0.0, %v1660
    %v1662 = vpop.f32.mrf.mxu0
    %1663 = vdwg.mxu0
    %v1664 = vld [vmem:[#allocation2 + $0x18] sm:$0xff]
    %v1665 = vld [vmem:[#allocation2 + $0x20] sm:$0xff]
    %v1666 = vld [vmem:[#allocation2 + $0x28] sm:$0xff]
    %v1667 = vrot.slane %v45, 2
    %v1668 = vsel %vm66, %v1667, 0
    %1670 = vmatprep.subr.mxu0 0.0
    %1671 = vmatpush1.msra.mxu0 0.0
    %1672 = vmatprep.subr.mxu0 0.0
    %1673 = vmatpush1.msra.mxu0 0.0
    %1674 = vmatprep.subr.mxu0 0.0
    %1675 = vmatpush1.msra.mxu0 0.0
    %1676 = vmatprep.subr.mxu0 0.0
    %1677 = vmatpush1.msra.mxu0 0.0
    %1678 = vmatprep.subr.mxu0 0.0
    %1679 = vmatpush1.msra.mxu0 0.0
    %1680 = vmatprep.subr.mxu0 0.0
    %1681 = vmatpush1.msra.mxu0 0.0
    %1682 = vmatprep.subr.mxu0 0.0
    %1683 = vmatpush1.msra.mxu0 0.0
    %1684 = vmatprep.subr.mxu0 0.0
    %1685 = vmatpush1.msra.mxu0 0.0
    %1686 = vmatprep.subr.mxu0 0.0
    %1687 = vmatpush1.msra.mxu0 0.0
    %1688 = vmatprep.subr.mxu0 0.0
    %1689 = vmatpush1.msra.mxu0 0.0
    %1690 = vmatprep.subr.mxu0 0.0
    %1691 = vmatpush1.msra.mxu0 0.0
    %1692 = vmatprep.subr.mxu0 0.0
    %1693 = vmatpush1.msra.mxu0 0.0
    %1694 = vmatprep.subr.mxu0 0.0
    %1695 = vmatpush1.msra.mxu0 0.0
    %1696 = vmatprep.subr.mxu0 0.0
    %1697 = vmatpush1.msra.mxu0 0.0
    %1698 = vmatprep.subr.mxu0 0.0
    %1699 = vmatpush1.msra.mxu0 0.0
    %1700 = vmatprep.subr.mxu0 %v1665
    %1701 = vmatpush1.msra.mxu0 %v1664
    %1702 = vmatprep.subr.mxu0 0.0
    %1703 = vmatpush2.msra.mxu0 0.0
    %1704 = vmatprep.subr.mxu0 0.0
    %1705 = vmatpush2.msra.mxu0 0.0
    %1706 = vmatprep.subr.mxu0 0.0
    %1707 = vmatpush2.msra.mxu0 0.0
    %1708 = vmatprep.subr.mxu0 0.0
    %1709 = vmatpush2.msra.mxu0 0.0
    %1710 = vmatprep.subr.mxu0 0.0
    %1711 = vmatpush2.msra.mxu0 0.0
    %1712 = vmatprep.subr.mxu0 0.0
    %1713 = vmatpush2.msra.mxu0 0.0
    %1714 = vmatprep.subr.mxu0 0.0
    %1715 = vmatpush2.msra.mxu0 0.0
    %1716 = vmatprep.subr.mxu0 0.0
    %1717 = vmatpush2.msra.mxu0 0.0
    %1718 = vmatprep.subr.mxu0 0.0
    %1719 = vmatpush2.msra.mxu0 0.0
    %1720 = vmatprep.subr.mxu0 0.0
    %1721 = vmatpush2.msra.mxu0 0.0
    %1722 = vmatprep.subr.mxu0 0.0
    %1723 = vmatpush2.msra.mxu0 0.0
    %1724 = vmatprep.subr.mxu0 0.0
    %1725 = vmatpush2.msra.mxu0 0.0
    %1726 = vmatprep.subr.mxu0 0.0
    %1727 = vmatpush2.msra.mxu0 0.0
    %1728 = vmatprep.subr.mxu0 0.0
    %1729 = vmatpush2.msra.mxu0 0.0
    %1730 = vmatprep.subr.mxu0 0.0
    %1731 = vmatpush2.msra.mxu0 0.0
    %1732 = vmatprep.subr.mxu0 0.0
    %1733 = vmatpush2.msra.mxu0 0.0
    %1734 = vmatprep.mubr.f32.mxu0 0.0
    %1735 = vmatmul.mubr.f32.gmra.mxu0 %v1668
    %v1736 = vpop.f32.mrf.mxu0
    %v1737 = vadd.f32 %v1440, %v1736
    %v1738 = vpop.f32.mrf.mxu0
    %v1739 = vadd.f32 %v1442, %v1738
    %1740 = vdwg.mxu0
    %1741 = vmatprep.subr.mxu0 0.0
    %1742 = vmatpush1.msra.mxu0 0.0
    %1743 = vmatprep.subr.mxu0 0.0
    %1744 = vmatpush1.msra.mxu0 0.0
    %1745 = vmatprep.subr.mxu0 0.0
    %1746 = vmatpush1.msra.mxu0 0.0
    %1747 = vmatprep.subr.mxu0 0.0
    %1748 = vmatpush1.msra.mxu0 0.0
    %1749 = vmatprep.subr.mxu0 0.0
    %1750 = vmatpush1.msra.mxu0 0.0
    %1751 = vmatprep.subr.mxu0 0.0
    %1752 = vmatpush1.msra.mxu0 0.0
    %1753 = vmatprep.subr.mxu0 0.0
    %1754 = vmatpush1.msra.mxu0 0.0
    %1755 = vmatprep.subr.mxu0 0.0
    %1756 = vmatpush1.msra.mxu0 0.0
    %1757 = vmatprep.subr.mxu0 0.0
    %1758 = vmatpush1.msra.mxu0 0.0
    %1759 = vmatprep.subr.mxu0 0.0
    %1760 = vmatpush1.msra.mxu0 0.0
    %1761 = vmatprep.subr.mxu0 0.0
    %1762 = vmatpush1.msra.mxu0 0.0
    %1763 = vmatprep.subr.mxu0 0.0
    %1764 = vmatpush1.msra.mxu0 0.0
    %1765 = vmatprep.subr.mxu0 0.0
    %1766 = vmatpush1.msra.mxu0 0.0
    %1767 = vmatprep.subr.mxu0 0.0
    %1768 = vmatpush1.msra.mxu0 0.0
    %1769 = vmatprep.subr.mxu0 0.0
    %1770 = vmatpush1.msra.mxu0 0.0
    %1771 = vmatprep.subr.mxu0 0.0
    %1772 = vmatpush1.msra.mxu0 %v1666
    %1773 = vmatprep.subr.mxu0 0.0
    %1774 = vmatpush2.msra.mxu0 0.0
    %1775 = vmatprep.subr.mxu0 0.0
    %1776 = vmatpush2.msra.mxu0 0.0
    %1777 = vmatprep.subr.mxu0 0.0
    %1778 = vmatpush2.msra.mxu0 0.0
    %1779 = vmatprep.subr.mxu0 0.0
    %1780 = vmatpush2.msra.mxu0 0.0
    %1781 = vmatprep.subr.mxu0 0.0
    %1782 = vmatpush2.msra.mxu0 0.0
    %1783 = vmatprep.subr.mxu0 0.0
    %1784 = vmatpush2.msra.mxu0 0.0
    %1785 = vmatprep.subr.mxu0 0.0
    %1786 = vmatpush2.msra.mxu0 0.0
    %1787 = vmatprep.subr.mxu0 0.0
    %1788 = vmatpush2.msra.mxu0 0.0
    %1789 = vmatprep.subr.mxu0 0.0
    %1790 = vmatpush2.msra.mxu0 0.0
    %1791 = vmatprep.subr.mxu0 0.0
    %1792 = vmatpush2.msra.mxu0 0.0
    %1793 = vmatprep.subr.mxu0 0.0
    %1794 = vmatpush2.msra.mxu0 0.0
    %1795 = vmatprep.subr.mxu0 0.0
    %1796 = vmatpush2.msra.mxu0 0.0
    %1797 = vmatprep.subr.mxu0 0.0
    %1798 = vmatpush2.msra.mxu0 0.0
    %1799 = vmatprep.subr.mxu0 0.0
    %1800 = vmatpush2.msra.mxu0 0.0
    %1801 = vmatprep.subr.mxu0 0.0
    %1802 = vmatpush2.msra.mxu0 0.0
    %1803 = vmatprep.subr.mxu0 0.0
    %1804 = vmatpush2.msra.mxu0 0.0
    %1805 = vmatprep.mubr.f32.mxu0 0.0
    %1806 = vmatmul.mubr.f32.gmra.mxu0 %v1668
    %v1807 = vpop.f32.mrf.mxu0
    %v1808 = vadd.f32 %v1511, %v1807
    %v1809 = vpop.f32.mrf.mxu0
    %1810 = vdwg.mxu0
    %v1811 = vld [vmem:[#allocation5 + $0x18] sm:$0xff]
    %v1812 = vld [vmem:[#allocation5 + $0x20] sm:$0xff]
    %v1813 = vld [vmem:[#allocation5 + $0x78] sm:$0xff]
    %v1814 = vld [vmem:[#allocation5 + $0x80] sm:$0xff]
    %v1815 = vld [vmem:[#allocation5 + $0xd8] sm:$0xff]
    %v1816 = vld [vmem:[#allocation5 + $0xe0] sm:$0xff]
    %v1817 = vld [vmem:[#allocation5 + $0x138] sm:$0xff]
    %v1818 = vld [vmem:[#allocation5 + $0x140] sm:$0xff]
    %v1819 = vld [vmem:[#allocation5 + $0x198] sm:$0xff]
    %v1820 = vld [vmem:[#allocation5 + $0x1a0] sm:$0xff]
    %v1821 = vld [vmem:[#allocation5 + $0x1f8] sm:$0xff]
    %v1822 = vld [vmem:[#allocation5 + $0x200] sm:$0xff]
    %v1823 = vld [vmem:[#allocation5 + $0x258] sm:$0xff]
    %v1824 = vld [vmem:[#allocation5 + $0x260] sm:$0xff]
    %v1825 = vld [vmem:[#allocation5 + $0x2b8] sm:$0xff]
    %v1826 = vld [vmem:[#allocation5 + $0x2c0] sm:$0xff]
    %v1827 = vld [vmem:[#allocation5 + $0x318] sm:$0xff]
    %v1828 = vld [vmem:[#allocation5 + $0x320] sm:$0xff]
    %v1829 = vld [vmem:[#allocation5 + $0x378] sm:$0xff]
    %v1830 = vld [vmem:[#allocation5 + $0x380] sm:$0xff]
    %v1831 = vld [vmem:[#allocation5 + $0x3d8] sm:$0xff]
    %v1832 = vld [vmem:[#allocation5 + $0x3e0] sm:$0xff]
    %v1833 = vld [vmem:[#allocation5 + $0x438] sm:$0xff]
    %v1834 = vld [vmem:[#allocation5 + $0x440] sm:$0xff]
    %v1835 = vld [vmem:[#allocation5 + $0x498] sm:$0xff]
    %v1836 = vld [vmem:[#allocation5 + $0x4a0] sm:$0xff]
    %v1837 = vld [vmem:[#allocation5 + $0x4f8] sm:$0xff]
    %v1838 = vld [vmem:[#allocation5 + $0x500] sm:$0xff]
    %v1839 = vld [vmem:[#allocation5 + $0x558] sm:$0xff]
    %v1840 = vld [vmem:[#allocation5 + $0x560] sm:$0xff]
    %v1841 = vld [vmem:[#allocation5 + $0x5b8] sm:$0xff]
    %v1842 = vld [vmem:[#allocation5 + $0x5c0] sm:$0xff]
    %1843 = vmatprep.subr.mxu0 %v1842
    %1844 = vmatpush1.msra.mxu0 %v1841
    %1845 = vmatprep.subr.mxu0 %v1840
    %1846 = vmatpush1.msra.mxu0 %v1839
    %1847 = vmatprep.subr.mxu0 %v1838
    %1848 = vmatpush1.msra.mxu0 %v1837
    %1849 = vmatprep.subr.mxu0 %v1836
    %1850 = vmatpush1.msra.mxu0 %v1835
    %1851 = vmatprep.subr.mxu0 %v1834
    %1852 = vmatpush1.msra.mxu0 %v1833
    %1853 = vmatprep.subr.mxu0 %v1832
    %1854 = vmatpush1.msra.mxu0 %v1831
    %1855 = vmatprep.subr.mxu0 %v1830
    %1856 = vmatpush1.msra.mxu0 %v1829
    %1857 = vmatprep.subr.mxu0 %v1828
    %1858 = vmatpush1.msra.mxu0 %v1827
    %1859 = vmatprep.subr.mxu0 %v1826
    %1860 = vmatpush1.msra.mxu0 %v1825
    %1861 = vmatprep.subr.mxu0 %v1824
    %1862 = vmatpush1.msra.mxu0 %v1823
    %1863 = vmatprep.subr.mxu0 %v1822
    %1864 = vmatpush1.msra.mxu0 %v1821
    %1865 = vmatprep.subr.mxu0 %v1820
    %1866 = vmatpush1.msra.mxu0 %v1819
    %1867 = vmatprep.subr.mxu0 %v1818
    %1868 = vmatpush1.msra.mxu0 %v1817
    %1869 = vmatprep.subr.mxu0 %v1816
    %1870 = vmatpush1.msra.mxu0 %v1815
    %1871 = vmatprep.subr.mxu0 %v1814
    %1872 = vmatpush1.msra.mxu0 %v1813
    %1873 = vmatprep.subr.mxu0 %v1812
    %1874 = vmatpush1.msra.mxu0 %v1811
    %1875 = vmatprep.subr.mxu0 0.0
    %1876 = vmatpush2.msra.mxu0 0.0
    %1877 = vmatprep.subr.mxu0 0.0
    %1878 = vmatpush2.msra.mxu0 0.0
    %1879 = vmatprep.subr.mxu0 0.0
    %1880 = vmatpush2.msra.mxu0 0.0
    %1881 = vmatprep.subr.mxu0 0.0
    %1882 = vmatpush2.msra.mxu0 0.0
    %1883 = vmatprep.subr.mxu0 0.0
    %1884 = vmatpush2.msra.mxu0 0.0
    %1885 = vmatprep.subr.mxu0 0.0
    %1886 = vmatpush2.msra.mxu0 0.0
    %1887 = vmatprep.subr.mxu0 0.0
    %1888 = vmatpush2.msra.mxu0 0.0
    %1889 = vmatprep.subr.mxu0 0.0
    %1890 = vmatpush2.msra.mxu0 0.0
    %1891 = vmatprep.subr.mxu0 0.0
    %1892 = vmatpush2.msra.mxu0 0.0
    %1893 = vmatprep.subr.mxu0 0.0
    %1894 = vmatpush2.msra.mxu0 0.0
    %1895 = vmatprep.subr.mxu0 0.0
    %1896 = vmatpush2.msra.mxu0 0.0
    %1897 = vmatprep.subr.mxu0 0.0
    %1898 = vmatpush2.msra.mxu0 0.0
    %1899 = vmatprep.subr.mxu0 0.0
    %1900 = vmatpush2.msra.mxu0 0.0
    %1901 = vmatprep.subr.mxu0 0.0
    %1902 = vmatpush2.msra.mxu0 0.0
    %1903 = vmatprep.subr.mxu0 0.0
    %1904 = vmatpush2.msra.mxu0 0.0
    %1905 = vmatprep.subr.mxu0 0.0
    %1906 = vmatpush2.msra.mxu0 0.0
    %1907 = vmatprep.mubr.f32.mxu0 0.0
    %1908 = vmatmul.mubr.f32.gmra.mxu0 %v431
    %v1909 = vpop.f32.mrf.mxu0
    %v1910 = vadd.f32 %v1737, %v1909
    %v1911 = vpop.f32.mrf.mxu0
    %v1912 = vadd.f32 %v1739, %v1911
    %1913 = vdwg.mxu0
    %v1914 = vxor.u32 %v1910, 2147483648
    %v1915 = vmul.f32 %v1914, 1.442695
    %v1916 = vpow.pop %v1915
    %v1917 = vadd.f32 %v1916, 1.0
    %v1918 = vrcp.pop %v1917
    %v1919 = vmul.f32 1.0, %v1918
    %v1920 = vxor.u32 %v1912, 2147483648
    %v1921 = vmul.f32 %v1920, 1.442695
    %v1922 = vpow.pop %v1921
    %v1923 = vadd.f32 %v1922, 1.0
    %v1924 = vrcp.pop %v1923
    %v1925 = vmul.f32 1.0, %v1924
    %v1926 = vmul.f32 %v1925, %v431
    %v1927 = vld [vmem:[#allocation5 + $0x28] sm:$0xff]
    %v1928 = vld [vmem:[#allocation5 + $0x88] sm:$0xff]
    %v1929 = vld [vmem:[#allocation5 + $0xe8] sm:$0xff]
    %v1930 = vld [vmem:[#allocation5 + $0x148] sm:$0xff]
    %v1931 = vld [vmem:[#allocation5 + $0x1a8] sm:$0xff]
    %v1932 = vld [vmem:[#allocation5 + $0x208] sm:$0xff]
    %v1933 = vld [vmem:[#allocation5 + $0x268] sm:$0xff]
    %v1934 = vld [vmem:[#allocation5 + $0x2c8] sm:$0xff]
    %v1935 = vld [vmem:[#allocation5 + $0x328] sm:$0xff]
    %v1936 = vld [vmem:[#allocation5 + $0x388] sm:$0xff]
    %v1937 = vld [vmem:[#allocation5 + $0x3e8] sm:$0xff]
    %v1938 = vld [vmem:[#allocation5 + $0x448] sm:$0xff]
    %v1939 = vld [vmem:[#allocation5 + $0x4a8] sm:$0xff]
    %v1940 = vld [vmem:[#allocation5 + $0x508] sm:$0xff]
    %v1941 = vld [vmem:[#allocation5 + $0x568] sm:$0xff]
    %v1942 = vld [vmem:[#allocation5 + $0x5c8] sm:$0xff]
    %1943 = vmatprep.subr.mxu0 0.0
    %1944 = vmatpush1.msra.mxu0 %v1942
    %1945 = vmatprep.subr.mxu0 0.0
    %1946 = vmatpush1.msra.mxu0 %v1941
    %1947 = vmatprep.subr.mxu0 0.0
    %1948 = vmatpush1.msra.mxu0 %v1940
    %1949 = vmatprep.subr.mxu0 0.0
    %1950 = vmatpush1.msra.mxu0 %v1939
    %1951 = vmatprep.subr.mxu0 0.0
    %1952 = vmatpush1.msra.mxu0 %v1938
    %1953 = vmatprep.subr.mxu0 0.0
    %1954 = vmatpush1.msra.mxu0 %v1937
    %1955 = vmatprep.subr.mxu0 0.0
    %1956 = vmatpush1.msra.mxu0 %v1936
    %1957 = vmatprep.subr.mxu0 0.0
    %1958 = vmatpush1.msra.mxu0 %v1935
    %1959 = vmatprep.subr.mxu0 0.0
    %1960 = vmatpush1.msra.mxu0 %v1934
    %1961 = vmatprep.subr.mxu0 0.0
    %1962 = vmatpush1.msra.mxu0 %v1933
    %1963 = vmatprep.subr.mxu0 0.0
    %1964 = vmatpush1.msra.mxu0 %v1932
    %1965 = vmatprep.subr.mxu0 0.0
    %1966 = vmatpush1.msra.mxu0 %v1931
    %1967 = vmatprep.subr.mxu0 0.0
    %1968 = vmatpush1.msra.mxu0 %v1930
    %1969 = vmatprep.subr.mxu0 0.0
    %1970 = vmatpush1.msra.mxu0 %v1929
    %1971 = vmatprep.subr.mxu0 0.0
    %1972 = vmatpush1.msra.mxu0 %v1928
    %1973 = vmatprep.subr.mxu0 0.0
    %1974 = vmatpush1.msra.mxu0 %v1927
    %1975 = vmatprep.subr.mxu0 0.0
    %1976 = vmatpush2.msra.mxu0 0.0
    %1977 = vmatprep.subr.mxu0 0.0
    %1978 = vmatpush2.msra.mxu0 0.0
    %1979 = vmatprep.subr.mxu0 0.0
    %1980 = vmatpush2.msra.mxu0 0.0
    %1981 = vmatprep.subr.mxu0 0.0
    %1982 = vmatpush2.msra.mxu0 0.0
    %1983 = vmatprep.subr.mxu0 0.0
    %1984 = vmatpush2.msra.mxu0 0.0
    %1985 = vmatprep.subr.mxu0 0.0
    %1986 = vmatpush2.msra.mxu0 0.0
    %1987 = vmatprep.subr.mxu0 0.0
    %1988 = vmatpush2.msra.mxu0 0.0
    %1989 = vmatprep.subr.mxu0 0.0
    %1990 = vmatpush2.msra.mxu0 0.0
    %1991 = vmatprep.subr.mxu0 0.0
    %1992 = vmatpush2.msra.mxu0 0.0
    %1993 = vmatprep.subr.mxu0 0.0
    %1994 = vmatpush2.msra.mxu0 0.0
    %1995 = vmatprep.subr.mxu0 0.0
    %1996 = vmatpush2.msra.mxu0 0.0
    %1997 = vmatprep.subr.mxu0 0.0
    %1998 = vmatpush2.msra.mxu0 0.0
    %1999 = vmatprep.subr.mxu0 0.0
    %2000 = vmatpush2.msra.mxu0 0.0
    %2001 = vmatprep.subr.mxu0 0.0
    %2002 = vmatpush2.msra.mxu0 0.0
    %2003 = vmatprep.subr.mxu0 0.0
    %2004 = vmatpush2.msra.mxu0 0.0
    %2005 = vmatprep.subr.mxu0 0.0
    %2006 = vmatpush2.msra.mxu0 0.0
    %2007 = vmatprep.mubr.f32.mxu0 0.0
    %2008 = vmatmul.mubr.f32.gmra.mxu0 %v1926
    %v2009 = vpop.f32.mrf.mxu0
    %v2010 = vadd.f32 0.0, %v2009
    %v2011 = vpop.f32.mrf.mxu0
    %2012 = vdwg.mxu0
    %v2013 = vadd.f32 %v1808, %v2010
    %v2014 = vtanh.pop %v2013
    %v2015 = vsub.f32 %v431, %v2014
    %v2016 = vmul.f32 %v1919, %v2015
    %v2017 = vadd.f32 %v2014, %v2016
    %2018 = vmatprep.subr.mxu0 0.0
    %2019 = vmatpush1.msra.mxu0 %v1529
    %2020 = vmatprep.subr.mxu0 0.0
    %2021 = vmatpush1.msra.mxu0 %v1528
    %2022 = vmatprep.subr.mxu0 0.0
    %2023 = vmatpush1.msra.mxu0 %v1527
    %2024 = vmatprep.subr.mxu0 0.0
    %2025 = vmatpush1.msra.mxu0 %v1526
    %2026 = vmatprep.subr.mxu0 0.0
    %2027 = vmatpush1.msra.mxu0 %v1525
    %2028 = vmatprep.subr.mxu0 0.0
    %2029 = vmatpush1.msra.mxu0 %v1524
    %2030 = vmatprep.subr.mxu0 0.0
    %2031 = vmatpush1.msra.mxu0 %v1523
    %2032 = vmatprep.subr.mxu0 0.0
    %2033 = vmatpush1.msra.mxu0 %v1522
    %2034 = vmatprep.subr.mxu0 0.0
    %2035 = vmatpush1.msra.mxu0 %v1521
    %2036 = vmatprep.subr.mxu0 0.0
    %2037 = vmatpush1.msra.mxu0 %v1520
    %2038 = vmatprep.subr.mxu0 0.0
    %2039 = vmatpush1.msra.mxu0 %v1519
    %2040 = vmatprep.subr.mxu0 0.0
    %2041 = vmatpush1.msra.mxu0 %v1518
    %2042 = vmatprep.subr.mxu0 0.0
    %2043 = vmatpush1.msra.mxu0 %v1517
    %2044 = vmatprep.subr.mxu0 0.0
    %2045 = vmatpush1.msra.mxu0 %v1516
    %2046 = vmatprep.subr.mxu0 0.0
    %2047 = vmatpush1.msra.mxu0 %v1515
    %2048 = vmatprep.subr.mxu0 0.0
    %2049 = vmatpush1.msra.mxu0 %v1514
    %2050 = vmatprep.subr.mxu0 0.0
    %2051 = vmatpush2.msra.mxu0 0.0
    %2052 = vmatprep.subr.mxu0 0.0
    %2053 = vmatpush2.msra.mxu0 0.0
    %2054 = vmatprep.subr.mxu0 0.0
    %2055 = vmatpush2.msra.mxu0 0.0
    %2056 = vmatprep.subr.mxu0 0.0
    %2057 = vmatpush2.msra.mxu0 0.0
    %2058 = vmatprep.subr.mxu0 0.0
    %2059 = vmatpush2.msra.mxu0 0.0
    %2060 = vmatprep.subr.mxu0 0.0
    %2061 = vmatpush2.msra.mxu0 0.0
    %2062 = vmatprep.subr.mxu0 0.0
    %2063 = vmatpush2.msra.mxu0 0.0
    %2064 = vmatprep.subr.mxu0 0.0
    %2065 = vmatpush2.msra.mxu0 0.0
    %2066 = vmatprep.subr.mxu0 0.0
    %2067 = vmatpush2.msra.mxu0 0.0
    %2068 = vmatprep.subr.mxu0 0.0
    %2069 = vmatpush2.msra.mxu0 0.0
    %2070 = vmatprep.subr.mxu0 0.0
    %2071 = vmatpush2.msra.mxu0 0.0
    %2072 = vmatprep.subr.mxu0 0.0
    %2073 = vmatpush2.msra.mxu0 0.0
    %2074 = vmatprep.subr.mxu0 0.0
    %2075 = vmatpush2.msra.mxu0 0.0
    %2076 = vmatprep.subr.mxu0 0.0
    %2077 = vmatpush2.msra.mxu0 0.0
    %2078 = vmatprep.subr.mxu0 0.0
    %2079 = vmatpush2.msra.mxu0 0.0
    %2080 = vmatprep.subr.mxu0 0.0
    %2081 = vmatpush2.msra.mxu0 0.0
    %2082 = vmatprep.mubr.f32.mxu0 0.0
    %2083 = vmatmul.mubr.f32.gmra.mxu0 %v2017
    %v2084 = vpop.f32.mrf.mxu0
    %v2085 = vadd.f32 %v1661, %v2084
    %v2086 = vpop.f32.mrf.mxu0
    %2087 = vdwg.mxu0
    %v2089 = vlaneseq
    %v2090 = vshrl.u32 %v2089, 7
    %v2091 = vsub.s32 0, %v2090
    %v2092 = vrot.slane %v1305, %v2091
    %v2094 = vmul.f32 %v45, %v2092
    %v2096 = vrot.slane %v2094, 2
    %v2098 = vadd.f32 %v2085, %v2096
    %2099 = vrot.lane.b32.xlu0 %v2092, 120
    %v2100 = vpop.permute.xlu0 %2099
    %v2102 = vadd.f32 %v2098, %v2100
    %vm2103 = vcmask 58368
    %2104 = vst.msk [vmem:[#allocation7] sm:$0x3] %vm2103, %v2102
    %v2105 = vld [vmem:[#allocation2 + $0x18] sm:$0xff]
    %v2106 = vld [vmem:[#allocation2 + $0x20] sm:$0xff]
    %v2107 = vld [vmem:[#allocation2 + $0x28] sm:$0xff]
    %v2109 = vsel %vm66, %v2102, 0
    %2111 = vmatprep.subr.mxu0 0.0
    %2112 = vmatpush1.msra.mxu0 0.0
    %2113 = vmatprep.subr.mxu0 0.0
    %2114 = vmatpush1.msra.mxu0 0.0
    %2115 = vmatprep.subr.mxu0 0.0
    %2116 = vmatpush1.msra.mxu0 0.0
    %2117 = vmatprep.subr.mxu0 0.0
    %2118 = vmatpush1.msra.mxu0 0.0
    %2119 = vmatprep.subr.mxu0 0.0
    %2120 = vmatpush1.msra.mxu0 0.0
    %2121 = vmatprep.subr.mxu0 0.0
    %2122 = vmatpush1.msra.mxu0 0.0
    %2123 = vmatprep.subr.mxu0 0.0
    %2124 = vmatpush1.msra.mxu0 0.0
    %2125 = vmatprep.subr.mxu0 0.0
    %2126 = vmatpush1.msra.mxu0 0.0
    %2127 = vmatprep.subr.mxu0 0.0
    %2128 = vmatpush1.msra.mxu0 0.0
    %2129 = vmatprep.subr.mxu0 0.0
    %2130 = vmatpush1.msra.mxu0 0.0
    %2131 = vmatprep.subr.mxu0 0.0
    %2132 = vmatpush1.msra.mxu0 0.0
    %2133 = vmatprep.subr.mxu0 0.0
    %2134 = vmatpush1.msra.mxu0 0.0
    %2135 = vmatprep.subr.mxu0 0.0
    %2136 = vmatpush1.msra.mxu0 0.0
    %2137 = vmatprep.subr.mxu0 0.0
    %2138 = vmatpush1.msra.mxu0 0.0
    %2139 = vmatprep.subr.mxu0 0.0
    %2140 = vmatpush1.msra.mxu0 0.0
    %2141 = vmatprep.subr.mxu0 %v2106
    %2142 = vmatpush1.msra.mxu0 %v2105
    %2143 = vmatprep.subr.mxu0 0.0
    %2144 = vmatpush2.msra.mxu0 0.0
    %2145 = vmatprep.subr.mxu0 0.0
    %2146 = vmatpush2.msra.mxu0 0.0
    %2147 = vmatprep.subr.mxu0 0.0
    %2148 = vmatpush2.msra.mxu0 0.0
    %2149 = vmatprep.subr.mxu0 0.0
    %2150 = vmatpush2.msra.mxu0 0.0
    %2151 = vmatprep.subr.mxu0 0.0
    %2152 = vmatpush2.msra.mxu0 0.0
    %2153 = vmatprep.subr.mxu0 0.0
    %2154 = vmatpush2.msra.mxu0 0.0
    %2155 = vmatprep.subr.mxu0 0.0
    %2156 = vmatpush2.msra.mxu0 0.0
    %2157 = vmatprep.subr.mxu0 0.0
    %2158 = vmatpush2.msra.mxu0 0.0
    %2159 = vmatprep.subr.mxu0 0.0
    %2160 = vmatpush2.msra.mxu0 0.0
    %2161 = vmatprep.subr.mxu0 0.0
    %2162 = vmatpush2.msra.mxu0 0.0
    %2163 = vmatprep.subr.mxu0 0.0
    %2164 = vmatpush2.msra.mxu0 0.0
    %2165 = vmatprep.subr.mxu0 0.0
    %2166 = vmatpush2.msra.mxu0 0.0
    %2167 = vmatprep.subr.mxu0 0.0
    %2168 = vmatpush2.msra.mxu0 0.0
    %2169 = vmatprep.subr.mxu0 0.0
    %2170 = vmatpush2.msra.mxu0 0.0
    %2171 = vmatprep.subr.mxu0 0.0
    %2172 = vmatpush2.msra.mxu0 0.0
    %2173 = vmatprep.subr.mxu0 0.0
    %2174 = vmatpush2.msra.mxu0 0.0
    %2175 = vmatprep.mubr.f32.mxu0 0.0
    %2176 = vmatmul.mubr.f32.gmra.mxu0 %v2109
    %v2177 = vpop.f32.mrf.mxu0
    %v2178 = vadd.f32 %v1440, %v2177
    %v2179 = vpop.f32.mrf.mxu0
    %v2180 = vadd.f32 %v1442, %v2179
    %2181 = vdwg.mxu0
    %2182 = vmatprep.subr.mxu0 0.0
    %2183 = vmatpush1.msra.mxu0 0.0
    %2184 = vmatprep.subr.mxu0 0.0
    %2185 = vmatpush1.msra.mxu0 0.0
    %2186 = vmatprep.subr.mxu0 0.0
    %2187 = vmatpush1.msra.mxu0 0.0
    %2188 = vmatprep.subr.mxu0 0.0
    %2189 = vmatpush1.msra.mxu0 0.0
    %2190 = vmatprep.subr.mxu0 0.0
    %2191 = vmatpush1.msra.mxu0 0.0
    %2192 = vmatprep.subr.mxu0 0.0
    %2193 = vmatpush1.msra.mxu0 0.0
    %2194 = vmatprep.subr.mxu0 0.0
    %2195 = vmatpush1.msra.mxu0 0.0
    %2196 = vmatprep.subr.mxu0 0.0
    %2197 = vmatpush1.msra.mxu0 0.0
    %2198 = vmatprep.subr.mxu0 0.0
    %2199 = vmatpush1.msra.mxu0 0.0
    %2200 = vmatprep.subr.mxu0 0.0
    %2201 = vmatpush1.msra.mxu0 0.0
    %2202 = vmatprep.subr.mxu0 0.0
    %2203 = vmatpush1.msra.mxu0 0.0
    %2204 = vmatprep.subr.mxu0 0.0
    %2205 = vmatpush1.msra.mxu0 0.0
    %2206 = vmatprep.subr.mxu0 0.0
    %2207 = vmatpush1.msra.mxu0 0.0
    %2208 = vmatprep.subr.mxu0 0.0
    %2209 = vmatpush1.msra.mxu0 0.0
    %2210 = vmatprep.subr.mxu0 0.0
    %2211 = vmatpush1.msra.mxu0 0.0
    %2212 = vmatprep.subr.mxu0 0.0
    %2213 = vmatpush1.msra.mxu0 %v2107
    %2214 = vmatprep.subr.mxu0 0.0
    %2215 = vmatpush2.msra.mxu0 0.0
    %2216 = vmatprep.subr.mxu0 0.0
    %2217 = vmatpush2.msra.mxu0 0.0
    %2218 = vmatprep.subr.mxu0 0.0
    %2219 = vmatpush2.msra.mxu0 0.0
    %2220 = vmatprep.subr.mxu0 0.0
    %2221 = vmatpush2.msra.mxu0 0.0
    %2222 = vmatprep.subr.mxu0 0.0
    %2223 = vmatpush2.msra.mxu0 0.0
    %2224 = vmatprep.subr.mxu0 0.0
    %2225 = vmatpush2.msra.mxu0 0.0
    %2226 = vmatprep.subr.mxu0 0.0
    %2227 = vmatpush2.msra.mxu0 0.0
    %2228 = vmatprep.subr.mxu0 0.0
    %2229 = vmatpush2.msra.mxu0 0.0
    %2230 = vmatprep.subr.mxu0 0.0
    %2231 = vmatpush2.msra.mxu0 0.0
    %2232 = vmatprep.subr.mxu0 0.0
    %2233 = vmatpush2.msra.mxu0 0.0
    %2234 = vmatprep.subr.mxu0 0.0
    %2235 = vmatpush2.msra.mxu0 0.0
    %2236 = vmatprep.subr.mxu0 0.0
    %2237 = vmatpush2.msra.mxu0 0.0
    %2238 = vmatprep.subr.mxu0 0.0
    %2239 = vmatpush2.msra.mxu0 0.0
    %2240 = vmatprep.subr.mxu0 0.0
    %2241 = vmatpush2.msra.mxu0 0.0
    %2242 = vmatprep.subr.mxu0 0.0
    %2243 = vmatpush2.msra.mxu0 0.0
    %2244 = vmatprep.subr.mxu0 0.0
    %2245 = vmatpush2.msra.mxu0 0.0
    %2246 = vmatprep.mubr.f32.mxu0 0.0
    %2247 = vmatmul.mubr.f32.gmra.mxu0 %v2109
    %v2248 = vpop.f32.mrf.mxu0
    %v2249 = vadd.f32 %v1511, %v2248
    %v2250 = vpop.f32.mrf.mxu0
    %2251 = vdwg.mxu0
    %v2252 = vld [vmem:[#allocation5 + $0x18] sm:$0xff]
    %v2253 = vld [vmem:[#allocation5 + $0x20] sm:$0xff]
    %v2254 = vld [vmem:[#allocation5 + $0x78] sm:$0xff]
    %v2255 = vld [vmem:[#allocation5 + $0x80] sm:$0xff]
    %v2256 = vld [vmem:[#allocation5 + $0xd8] sm:$0xff]
    %v2257 = vld [vmem:[#allocation5 + $0xe0] sm:$0xff]
    %v2258 = vld [vmem:[#allocation5 + $0x138] sm:$0xff]
    %v2259 = vld [vmem:[#allocation5 + $0x140] sm:$0xff]
    %v2260 = vld [vmem:[#allocation5 + $0x198] sm:$0xff]
    %v2261 = vld [vmem:[#allocation5 + $0x1a0] sm:$0xff]
    %v2262 = vld [vmem:[#allocation5 + $0x1f8] sm:$0xff]
    %v2263 = vld [vmem:[#allocation5 + $0x200] sm:$0xff]
    %v2264 = vld [vmem:[#allocation5 + $0x258] sm:$0xff]
    %v2265 = vld [vmem:[#allocation5 + $0x260] sm:$0xff]
    %v2266 = vld [vmem:[#allocation5 + $0x2b8] sm:$0xff]
    %v2267 = vld [vmem:[#allocation5 + $0x2c0] sm:$0xff]
    %v2268 = vld [vmem:[#allocation5 + $0x318] sm:$0xff]
    %v2269 = vld [vmem:[#allocation5 + $0x320] sm:$0xff]
    %v2270 = vld [vmem:[#allocation5 + $0x378] sm:$0xff]
    %v2271 = vld [vmem:[#allocation5 + $0x380] sm:$0xff]
    %v2272 = vld [vmem:[#allocation5 + $0x3d8] sm:$0xff]
    %v2273 = vld [vmem:[#allocation5 + $0x3e0] sm:$0xff]
    %v2274 = vld [vmem:[#allocation5 + $0x438] sm:$0xff]
    %v2275 = vld [vmem:[#allocation5 + $0x440] sm:$0xff]
    %v2276 = vld [vmem:[#allocation5 + $0x498] sm:$0xff]
    %v2277 = vld [vmem:[#allocation5 + $0x4a0] sm:$0xff]
    %v2278 = vld [vmem:[#allocation5 + $0x4f8] sm:$0xff]
    %v2279 = vld [vmem:[#allocation5 + $0x500] sm:$0xff]
    %v2280 = vld [vmem:[#allocation5 + $0x558] sm:$0xff]
    %v2281 = vld [vmem:[#allocation5 + $0x560] sm:$0xff]
    %v2282 = vld [vmem:[#allocation5 + $0x5b8] sm:$0xff]
    %v2283 = vld [vmem:[#allocation5 + $0x5c0] sm:$0xff]
    %2284 = vmatprep.subr.mxu0 %v2283
    %2285 = vmatpush1.msra.mxu0 %v2282
    %2286 = vmatprep.subr.mxu0 %v2281
    %2287 = vmatpush1.msra.mxu0 %v2280
    %2288 = vmatprep.subr.mxu0 %v2279
    %2289 = vmatpush1.msra.mxu0 %v2278
    %2290 = vmatprep.subr.mxu0 %v2277
    %2291 = vmatpush1.msra.mxu0 %v2276
    %2292 = vmatprep.subr.mxu0 %v2275
    %2293 = vmatpush1.msra.mxu0 %v2274
    %2294 = vmatprep.subr.mxu0 %v2273
    %2295 = vmatpush1.msra.mxu0 %v2272
    %2296 = vmatprep.subr.mxu0 %v2271
    %2297 = vmatpush1.msra.mxu0 %v2270
    %2298 = vmatprep.subr.mxu0 %v2269
    %2299 = vmatpush1.msra.mxu0 %v2268
    %2300 = vmatprep.subr.mxu0 %v2267
    %2301 = vmatpush1.msra.mxu0 %v2266
    %2302 = vmatprep.subr.mxu0 %v2265
    %2303 = vmatpush1.msra.mxu0 %v2264
    %2304 = vmatprep.subr.mxu0 %v2263
    %2305 = vmatpush1.msra.mxu0 %v2262
    %2306 = vmatprep.subr.mxu0 %v2261
    %2307 = vmatpush1.msra.mxu0 %v2260
    %2308 = vmatprep.subr.mxu0 %v2259
    %2309 = vmatpush1.msra.mxu0 %v2258
    %2310 = vmatprep.subr.mxu0 %v2257
    %2311 = vmatpush1.msra.mxu0 %v2256
    %2312 = vmatprep.subr.mxu0 %v2255
    %2313 = vmatpush1.msra.mxu0 %v2254
    %2314 = vmatprep.subr.mxu0 %v2253
    %2315 = vmatpush1.msra.mxu0 %v2252
    %2316 = vmatprep.subr.mxu0 0.0
    %2317 = vmatpush2.msra.mxu0 0.0
    %2318 = vmatprep.subr.mxu0 0.0
    %2319 = vmatpush2.msra.mxu0 0.0
    %2320 = vmatprep.subr.mxu0 0.0
    %2321 = vmatpush2.msra.mxu0 0.0
    %2322 = vmatprep.subr.mxu0 0.0
    %2323 = vmatpush2.msra.mxu0 0.0
    %2324 = vmatprep.subr.mxu0 0.0
    %2325 = vmatpush2.msra.mxu0 0.0
    %2326 = vmatprep.subr.mxu0 0.0
    %2327 = vmatpush2.msra.mxu0 0.0
    %2328 = vmatprep.subr.mxu0 0.0
    %2329 = vmatpush2.msra.mxu0 0.0
    %2330 = vmatprep.subr.mxu0 0.0
    %2331 = vmatpush2.msra.mxu0 0.0
    %2332 = vmatprep.subr.mxu0 0.0
    %2333 = vmatpush2.msra.mxu0 0.0
    %2334 = vmatprep.subr.mxu0 0.0
    %2335 = vmatpush2.msra.mxu0 0.0
    %2336 = vmatprep.subr.mxu0 0.0
    %2337 = vmatpush2.msra.mxu0 0.0
    %2338 = vmatprep.subr.mxu0 0.0
    %2339 = vmatpush2.msra.mxu0 0.0
    %2340 = vmatprep.subr.mxu0 0.0
    %2341 = vmatpush2.msra.mxu0 0.0
    %2342 = vmatprep.subr.mxu0 0.0
    %2343 = vmatpush2.msra.mxu0 0.0
    %2344 = vmatprep.subr.mxu0 0.0
    %2345 = vmatpush2.msra.mxu0 0.0
    %2346 = vmatprep.subr.mxu0 0.0
    %2347 = vmatpush2.msra.mxu0 0.0
    %2348 = vmatprep.mubr.f32.mxu0 0.0
    %2349 = vmatmul.mubr.f32.gmra.mxu0 %v2017
    %v2350 = vpop.f32.mrf.mxu0
    %v2351 = vadd.f32 %v2178, %v2350
    %v2352 = vpop.f32.mrf.mxu0
    %v2353 = vadd.f32 %v2180, %v2352
    %2354 = vdwg.mxu0
    %v2355 = vxor.u32 %v2351, 2147483648
    %v2356 = vmul.f32 %v2355, 1.442695
    %v2357 = vpow.pop %v2356
    %v2358 = vadd.f32 %v2357, 1.0
    %v2359 = vrcp.pop %v2358
    %v2360 = vmul.f32 1.0, %v2359
    %v2361 = vxor.u32 %v2353, 2147483648
    %v2362 = vmul.f32 %v2361, 1.442695
    %v2363 = vpow.pop %v2362
    %v2364 = vadd.f32 %v2363, 1.0
    %v2365 = vrcp.pop %v2364
    %v2366 = vmul.f32 1.0, %v2365
    %v2367 = vmul.f32 %v2366, %v2017
    %v2368 = vld [vmem:[#allocation5 + $0x28] sm:$0xff]
    %v2369 = vld [vmem:[#allocation5 + $0x88] sm:$0xff]
    %v2370 = vld [vmem:[#allocation5 + $0xe8] sm:$0xff]
    %v2371 = vld [vmem:[#allocation5 + $0x148] sm:$0xff]
    %v2372 = vld [vmem:[#allocation5 + $0x1a8] sm:$0xff]
    %v2373 = vld [vmem:[#allocation5 + $0x208] sm:$0xff]
    %v2374 = vld [vmem:[#allocation5 + $0x268] sm:$0xff]
    %v2375 = vld [vmem:[#allocation5 + $0x2c8] sm:$0xff]
    %v2376 = vld [vmem:[#allocation5 + $0x328] sm:$0xff]
    %v2377 = vld [vmem:[#allocation5 + $0x388] sm:$0xff]
    %v2378 = vld [vmem:[#allocation5 + $0x3e8] sm:$0xff]
    %v2379 = vld [vmem:[#allocation5 + $0x448] sm:$0xff]
    %v2380 = vld [vmem:[#allocation5 + $0x4a8] sm:$0xff]
    %v2381 = vld [vmem:[#allocation5 + $0x508] sm:$0xff]
    %v2382 = vld [vmem:[#allocation5 + $0x568] sm:$0xff]
    %v2383 = vld [vmem:[#allocation5 + $0x5c8] sm:$0xff]
    %2384 = vmatprep.subr.mxu0 0.0
    %2385 = vmatpush1.msra.mxu0 %v2383
    %2386 = vmatprep.subr.mxu0 0.0
    %2387 = vmatpush1.msra.mxu0 %v2382
    %2388 = vmatprep.subr.mxu0 0.0
    %2389 = vmatpush1.msra.mxu0 %v2381
    %2390 = vmatprep.subr.mxu0 0.0
    %2391 = vmatpush1.msra.mxu0 %v2380
    %2392 = vmatprep.subr.mxu0 0.0
    %2393 = vmatpush1.msra.mxu0 %v2379
    %2394 = vmatprep.subr.mxu0 0.0
    %2395 = vmatpush1.msra.mxu0 %v2378
    %2396 = vmatprep.subr.mxu0 0.0
    %2397 = vmatpush1.msra.mxu0 %v2377
    %2398 = vmatprep.subr.mxu0 0.0
    %2399 = vmatpush1.msra.mxu0 %v2376
    %2400 = vmatprep.subr.mxu0 0.0
    %2401 = vmatpush1.msra.mxu0 %v2375
    %2402 = vmatprep.subr.mxu0 0.0
    %2403 = vmatpush1.msra.mxu0 %v2374
    %2404 = vmatprep.subr.mxu0 0.0
    %2405 = vmatpush1.msra.mxu0 %v2373
    %2406 = vmatprep.subr.mxu0 0.0
    %2407 = vmatpush1.msra.mxu0 %v2372
    %2408 = vmatprep.subr.mxu0 0.0
    %2409 = vmatpush1.msra.mxu0 %v2371
    %2410 = vmatprep.subr.mxu0 0.0
    %2411 = vmatpush1.msra.mxu0 %v2370
    %2412 = vmatprep.subr.mxu0 0.0
    %2413 = vmatpush1.msra.mxu0 %v2369
    %2414 = vmatprep.subr.mxu0 0.0
    %2415 = vmatpush1.msra.mxu0 %v2368
    %2416 = vmatprep.subr.mxu0 0.0
    %2417 = vmatpush2.msra.mxu0 0.0
    %2418 = vmatprep.subr.mxu0 0.0
    %2419 = vmatpush2.msra.mxu0 0.0
    %2420 = vmatprep.subr.mxu0 0.0
    %2421 = vmatpush2.msra.mxu0 0.0
    %2422 = vmatprep.subr.mxu0 0.0
    %2423 = vmatpush2.msra.mxu0 0.0
    %2424 = vmatprep.subr.mxu0 0.0
    %2425 = vmatpush2.msra.mxu0 0.0
    %2426 = vmatprep.subr.mxu0 0.0
    %2427 = vmatpush2.msra.mxu0 0.0
    %2428 = vmatprep.subr.mxu0 0.0
    %2429 = vmatpush2.msra.mxu0 0.0
    %2430 = vmatprep.subr.mxu0 0.0
    %2431 = vmatpush2.msra.mxu0 0.0
    %2432 = vmatprep.subr.mxu0 0.0
    %2433 = vmatpush2.msra.mxu0 0.0
    %2434 = vmatprep.subr.mxu0 0.0
    %2435 = vmatpush2.msra.mxu0 0.0
    %2436 = vmatprep.subr.mxu0 0.0
    %2437 = vmatpush2.msra.mxu0 0.0
    %2438 = vmatprep.subr.mxu0 0.0
    %2439 = vmatpush2.msra.mxu0 0.0
    %2440 = vmatprep.subr.mxu0 0.0
    %2441 = vmatpush2.msra.mxu0 0.0
    %2442 = vmatprep.subr.mxu0 0.0
    %2443 = vmatpush2.msra.mxu0 0.0
    %2444 = vmatprep.subr.mxu0 0.0
    %2445 = vmatpush2.msra.mxu0 0.0
    %2446 = vmatprep.subr.mxu0 0.0
    %2447 = vmatpush2.msra.mxu0 0.0
    %2448 = vmatprep.mubr.f32.mxu0 0.0
    %2449 = vmatmul.mubr.f32.gmra.mxu0 %v2367
    %v2450 = vpop.f32.mrf.mxu0
    %v2451 = vadd.f32 0.0, %v2450
    %v2452 = vpop.f32.mrf.mxu0
    %2453 = vdwg.mxu0
    %v2454 = vadd.f32 %v2249, %v2451
    %v2455 = vtanh.pop %v2454
    %v2456 = vsub.f32 %v2017, %v2455
    %v2457 = vmul.f32 %v2360, %v2456
    %v2458 = vadd.f32 %v2455, %v2457
    %v2459 = vld [vmem:[#allocation5 + $0x58] sm:$0xff]
    %v2460 = vld [vmem:[#allocation5 + $0xb8] sm:$0xff]
    %v2461 = vld [vmem:[#allocation5 + $0x118] sm:$0xff]
    %v2462 = vld [vmem:[#allocation5 + $0x178] sm:$0xff]
    %v2463 = vld [vmem:[#allocation5 + $0x1d8] sm:$0xff]
    %v2464 = vld [vmem:[#allocation5 + $0x238] sm:$0xff]
    %v2465 = vld [vmem:[#allocation5 + $0x298] sm:$0xff]
    %v2466 = vld [vmem:[#allocation5 + $0x2f8] sm:$0xff]
    %v2467 = vld [vmem:[#allocation5 + $0x358] sm:$0xff]
    %v2468 = vld [vmem:[#allocation5 + $0x3b8] sm:$0xff]
    %v2469 = vld [vmem:[#allocation5 + $0x418] sm:$0xff]
    %v2470 = vld [vmem:[#allocation5 + $0x478] sm:$0xff]
    %v2471 = vld [vmem:[#allocation5 + $0x4d8] sm:$0xff]
    %v2472 = vld [vmem:[#allocation5 + $0x538] sm:$0xff]
    %v2473 = vld [vmem:[#allocation5 + $0x598] sm:$0xff]
    %v2474 = vld [vmem:[#allocation5 + $0x5f8] sm:$0xff]
    %2475 = vmatprep.subr.mxu0 0.0
    %2476 = vmatpush1.msra.mxu0 %v2474
    %2477 = vmatprep.subr.mxu0 0.0
    %2478 = vmatpush1.msra.mxu0 %v2473
    %2479 = vmatprep.subr.mxu0 0.0
    %2480 = vmatpush1.msra.mxu0 %v2472
    %2481 = vmatprep.subr.mxu0 0.0
    %2482 = vmatpush1.msra.mxu0 %v2471
    %2483 = vmatprep.subr.mxu0 0.0
    %2484 = vmatpush1.msra.mxu0 %v2470
    %2485 = vmatprep.subr.mxu0 0.0
    %2486 = vmatpush1.msra.mxu0 %v2469
    %2487 = vmatprep.subr.mxu0 0.0
    %2488 = vmatpush1.msra.mxu0 %v2468
    %2489 = vmatprep.subr.mxu0 0.0
    %2490 = vmatpush1.msra.mxu0 %v2467
    %2491 = vmatprep.subr.mxu0 0.0
    %2492 = vmatpush1.msra.mxu0 %v2466
    %2493 = vmatprep.subr.mxu0 0.0
    %2494 = vmatpush1.msra.mxu0 %v2465
    %2495 = vmatprep.subr.mxu0 0.0
    %2496 = vmatpush1.msra.mxu0 %v2464
    %2497 = vmatprep.subr.mxu0 0.0
    %2498 = vmatpush1.msra.mxu0 %v2463
    %2499 = vmatprep.subr.mxu0 0.0
    %2500 = vmatpush1.msra.mxu0 %v2462
    %2501 = vmatprep.subr.mxu0 0.0
    %2502 = vmatpush1.msra.mxu0 %v2461
    %2503 = vmatprep.subr.mxu0 0.0
    %2504 = vmatpush1.msra.mxu0 %v2460
    %2505 = vmatprep.subr.mxu0 0.0
    %2506 = vmatpush1.msra.mxu0 %v2459
    %2507 = vmatprep.subr.mxu0 0.0
    %2508 = vmatpush2.msra.mxu0 0.0
    %2509 = vmatprep.subr.mxu0 0.0
    %2510 = vmatpush2.msra.mxu0 0.0
    %2511 = vmatprep.subr.mxu0 0.0
    %2512 = vmatpush2.msra.mxu0 0.0
    %2513 = vmatprep.subr.mxu0 0.0
    %2514 = vmatpush2.msra.mxu0 0.0
    %2515 = vmatprep.subr.mxu0 0.0
    %2516 = vmatpush2.msra.mxu0 0.0
    %2517 = vmatprep.subr.mxu0 0.0
    %2518 = vmatpush2.msra.mxu0 0.0
    %2519 = vmatprep.subr.mxu0 0.0
    %2520 = vmatpush2.msra.mxu0 0.0
    %2521 = vmatprep.subr.mxu0 0.0
    %2522 = vmatpush2.msra.mxu0 0.0
    %2523 = vmatprep.subr.mxu0 0.0
    %2524 = vmatpush2.msra.mxu0 0.0
    %2525 = vmatprep.subr.mxu0 0.0
    %2526 = vmatpush2.msra.mxu0 0.0
    %2527 = vmatprep.subr.mxu0 0.0
    %2528 = vmatpush2.msra.mxu0 0.0
    %2529 = vmatprep.subr.mxu0 0.0
    %2530 = vmatpush2.msra.mxu0 0.0
    %2531 = vmatprep.subr.mxu0 0.0
    %2532 = vmatpush2.msra.mxu0 0.0
    %2533 = vmatprep.subr.mxu0 0.0
    %2534 = vmatpush2.msra.mxu0 0.0
    %2535 = vmatprep.subr.mxu0 0.0
    %2536 = vmatpush2.msra.mxu0 0.0
    %2537 = vmatprep.subr.mxu0 0.0
    %2538 = vmatpush2.msra.mxu0 0.0
    %2539 = vmatprep.mubr.f32.mxu0 0.0
    %2540 = vmatmul.mubr.f32.gmra.mxu0 %v2458
    %v2541 = vpop.f32.mrf.mxu0
    %v2542 = vadd.f32 %v1661, %v2541
    %v2543 = vpop.f32.mrf.mxu0
    %2544 = vdwg.mxu0
    %v2545 = vmul.f32 %v2102, %v2092
    %v2546 = vadd.f32 %v2542, %v2545
    %v2547 = vadd.f32 %v2546, %v2100
    %s2548 = scalar_lea.vmem [#allocation7], 2
    %2549 = vst.msk [vmem:[%s2548] sm:$0x3] %vm2103, %v2547
    %v2550 = vld [vmem:[#allocation2 + $0x18] sm:$0xff]
    %v2551 = vld [vmem:[#allocation2 + $0x20] sm:$0xff]
    %v2552 = vld [vmem:[#allocation2 + $0x28] sm:$0xff]
    %v2554 = vsel %vm66, %v2547, 0
    %2556 = vmatprep.subr.mxu0 0.0
    %2557 = vmatpush1.msra.mxu0 0.0
    %2558 = vmatprep.subr.mxu0 0.0
    %2559 = vmatpush1.msra.mxu0 0.0
    %2560 = vmatprep.subr.mxu0 0.0
    %2561 = vmatpush1.msra.mxu0 0.0
    %2562 = vmatprep.subr.mxu0 0.0
    %2563 = vmatpush1.msra.mxu0 0.0
    %2564 = vmatprep.subr.mxu0 0.0
    %2565 = vmatpush1.msra.mxu0 0.0
    %2566 = vmatprep.subr.mxu0 0.0
    %2567 = vmatpush1.msra.mxu0 0.0
    %2568 = vmatprep.subr.mxu0 0.0
    %2569 = vmatpush1.msra.mxu0 0.0
    %2570 = vmatprep.subr.mxu0 0.0
    %2571 = vmatpush1.msra.mxu0 0.0
    %2572 = vmatprep.subr.mxu0 0.0
    %2573 = vmatpush1.msra.mxu0 0.0
    %2574 = vmatprep.subr.mxu0 0.0
    %2575 = vmatpush1.msra.mxu0 0.0
    %2576 = vmatprep.subr.mxu0 0.0
    %2577 = vmatpush1.msra.mxu0 0.0
    %2578 = vmatprep.subr.mxu0 0.0
    %2579 = vmatpush1.msra.mxu0 0.0
    %2580 = vmatprep.subr.mxu0 0.0
    %2581 = vmatpush1.msra.mxu0 0.0
    %2582 = vmatprep.subr.mxu0 0.0
    %2583 = vmatpush1.msra.mxu0 0.0
    %2584 = vmatprep.subr.mxu0 0.0
    %2585 = vmatpush1.msra.mxu0 0.0
    %2586 = vmatprep.subr.mxu0 %v2551
    %2587 = vmatpush1.msra.mxu0 %v2550
    %2588 = vmatprep.subr.mxu0 0.0
    %2589 = vmatpush2.msra.mxu0 0.0
    %2590 = vmatprep.subr.mxu0 0.0
    %2591 = vmatpush2.msra.mxu0 0.0
    %2592 = vmatprep.subr.mxu0 0.0
    %2593 = vmatpush2.msra.mxu0 0.0
    %2594 = vmatprep.subr.mxu0 0.0
    %2595 = vmatpush2.msra.mxu0 0.0
    %2596 = vmatprep.subr.mxu0 0.0
    %2597 = vmatpush2.msra.mxu0 0.0
    %2598 = vmatprep.subr.mxu0 0.0
    %2599 = vmatpush2.msra.mxu0 0.0
    %2600 = vmatprep.subr.mxu0 0.0
    %2601 = vmatpush2.msra.mxu0 0.0
    %2602 = vmatprep.subr.mxu0 0.0
    %2603 = vmatpush2.msra.mxu0 0.0
    %2604 = vmatprep.subr.mxu0 0.0
    %2605 = vmatpush2.msra.mxu0 0.0
    %2606 = vmatprep.subr.mxu0 0.0
    %2607 = vmatpush2.msra.mxu0 0.0
    %2608 = vmatprep.subr.mxu0 0.0
    %2609 = vmatpush2.msra.mxu0 0.0
    %2610 = vmatprep.subr.mxu0 0.0
    %2611 = vmatpush2.msra.mxu0 0.0
    %2612 = vmatprep.subr.mxu0 0.0
    %2613 = vmatpush2.msra.mxu0 0.0
    %2614 = vmatprep.subr.mxu0 0.0
    %2615 = vmatpush2.msra.mxu0 0.0
    %2616 = vmatprep.subr.mxu0 0.0
    %2617 = vmatpush2.msra.mxu0 0.0
    %2618 = vmatprep.subr.mxu0 0.0
    %2619 = vmatpush2.msra.mxu0 0.0
    %2620 = vmatprep.mubr.f32.mxu0 0.0
    %2621 = vmatmul.mubr.f32.gmra.mxu0 %v2554
    %v2622 = vpop.f32.mrf.mxu0
    %v2623 = vadd.f32 %v1440, %v2622
    %v2624 = vpop.f32.mrf.mxu0
    %v2625 = vadd.f32 %v1442, %v2624
    %2626 = vdwg.mxu0
    %2627 = vmatprep.subr.mxu0 0.0
    %2628 = vmatpush1.msra.mxu0 0.0
    %2629 = vmatprep.subr.mxu0 0.0
    %2630 = vmatpush1.msra.mxu0 0.0
    %2631 = vmatprep.subr.mxu0 0.0
    %2632 = vmatpush1.msra.mxu0 0.0
    %2633 = vmatprep.subr.mxu0 0.0
    %2634 = vmatpush1.msra.mxu0 0.0
    %2635 = vmatprep.subr.mxu0 0.0
    %2636 = vmatpush1.msra.mxu0 0.0
    %2637 = vmatprep.subr.mxu0 0.0
    %2638 = vmatpush1.msra.mxu0 0.0
    %2639 = vmatprep.subr.mxu0 0.0
    %2640 = vmatpush1.msra.mxu0 0.0
    %2641 = vmatprep.subr.mxu0 0.0
    %2642 = vmatpush1.msra.mxu0 0.0
    %2643 = vmatprep.subr.mxu0 0.0
    %2644 = vmatpush1.msra.mxu0 0.0
    %2645 = vmatprep.subr.mxu0 0.0
    %2646 = vmatpush1.msra.mxu0 0.0
    %2647 = vmatprep.subr.mxu0 0.0
    %2648 = vmatpush1.msra.mxu0 0.0
    %2649 = vmatprep.subr.mxu0 0.0
    %2650 = vmatpush1.msra.mxu0 0.0
    %2651 = vmatprep.subr.mxu0 0.0
    %2652 = vmatpush1.msra.mxu0 0.0
    %2653 = vmatprep.subr.mxu0 0.0
    %2654 = vmatpush1.msra.mxu0 0.0
    %2655 = vmatprep.subr.mxu0 0.0
    %2656 = vmatpush1.msra.mxu0 0.0
    %2657 = vmatprep.subr.mxu0 0.0
    %2658 = vmatpush1.msra.mxu0 %v2552
    %2659 = vmatprep.subr.mxu0 0.0
    %2660 = vmatpush2.msra.mxu0 0.0
    %2661 = vmatprep.subr.mxu0 0.0
    %2662 = vmatpush2.msra.mxu0 0.0
    %2663 = vmatprep.subr.mxu0 0.0
    %2664 = vmatpush2.msra.mxu0 0.0
    %2665 = vmatprep.subr.mxu0 0.0
    %2666 = vmatpush2.msra.mxu0 0.0
    %2667 = vmatprep.subr.mxu0 0.0
    %2668 = vmatpush2.msra.mxu0 0.0
    %2669 = vmatprep.subr.mxu0 0.0
    %2670 = vmatpush2.msra.mxu0 0.0
    %2671 = vmatprep.subr.mxu0 0.0
    %2672 = vmatpush2.msra.mxu0 0.0
    %2673 = vmatprep.subr.mxu0 0.0
    %2674 = vmatpush2.msra.mxu0 0.0
    %2675 = vmatprep.subr.mxu0 0.0
    %2676 = vmatpush2.msra.mxu0 0.0
    %2677 = vmatprep.subr.mxu0 0.0
    %2678 = vmatpush2.msra.mxu0 0.0
    %2679 = vmatprep.subr.mxu0 0.0
    %2680 = vmatpush2.msra.mxu0 0.0
    %2681 = vmatprep.subr.mxu0 0.0
    %2682 = vmatpush2.msra.mxu0 0.0
    %2683 = vmatprep.subr.mxu0 0.0
    %2684 = vmatpush2.msra.mxu0 0.0
    %2685 = vmatprep.subr.mxu0 0.0
    %2686 = vmatpush2.msra.mxu0 0.0
    %2687 = vmatprep.subr.mxu0 0.0
    %2688 = vmatpush2.msra.mxu0 0.0
    %2689 = vmatprep.subr.mxu0 0.0
    %2690 = vmatpush2.msra.mxu0 0.0
    %2691 = vmatprep.mubr.f32.mxu0 0.0
    %2692 = vmatmul.mubr.f32.gmra.mxu0 %v2554
    %v2693 = vpop.f32.mrf.mxu0
    %v2694 = vadd.f32 %v1511, %v2693
    %v2695 = vpop.f32.mrf.mxu0
    %2696 = vdwg.mxu0
    %v2697 = vld [vmem:[#allocation5 + $0x18] sm:$0xff]
    %v2698 = vld [vmem:[#allocation5 + $0x20] sm:$0xff]
    %v2699 = vld [vmem:[#allocation5 + $0x78] sm:$0xff]
    %v2700 = vld [vmem:[#allocation5 + $0x80] sm:$0xff]
    %v2701 = vld [vmem:[#allocation5 + $0xd8] sm:$0xff]
    %v2702 = vld [vmem:[#allocation5 + $0xe0] sm:$0xff]
    %v2703 = vld [vmem:[#allocation5 + $0x138] sm:$0xff]
    %v2704 = vld [vmem:[#allocation5 + $0x140] sm:$0xff]
    %v2705 = vld [vmem:[#allocation5 + $0x198] sm:$0xff]
    %v2706 = vld [vmem:[#allocation5 + $0x1a0] sm:$0xff]
    %v2707 = vld [vmem:[#allocation5 + $0x1f8] sm:$0xff]
    %v2708 = vld [vmem:[#allocation5 + $0x200] sm:$0xff]
    %v2709 = vld [vmem:[#allocation5 + $0x258] sm:$0xff]
    %v2710 = vld [vmem:[#allocation5 + $0x260] sm:$0xff]
    %v2711 = vld [vmem:[#allocation5 + $0x2b8] sm:$0xff]
    %v2712 = vld [vmem:[#allocation5 + $0x2c0] sm:$0xff]
    %v2713 = vld [vmem:[#allocation5 + $0x318] sm:$0xff]
    %v2714 = vld [vmem:[#allocation5 + $0x320] sm:$0xff]
    %v2715 = vld [vmem:[#allocation5 + $0x378] sm:$0xff]
    %v2716 = vld [vmem:[#allocation5 + $0x380] sm:$0xff]
    %v2717 = vld [vmem:[#allocation5 + $0x3d8] sm:$0xff]
    %v2718 = vld [vmem:[#allocation5 + $0x3e0] sm:$0xff]
    %v2719 = vld [vmem:[#allocation5 + $0x438] sm:$0xff]
    %v2720 = vld [vmem:[#allocation5 + $0x440] sm:$0xff]
    %v2721 = vld [vmem:[#allocation5 + $0x498] sm:$0xff]
    %v2722 = vld [vmem:[#allocation5 + $0x4a0] sm:$0xff]
    %v2723 = vld [vmem:[#allocation5 + $0x4f8] sm:$0xff]
    %v2724 = vld [vmem:[#allocation5 + $0x500] sm:$0xff]
    %v2725 = vld [vmem:[#allocation5 + $0x558] sm:$0xff]
    %v2726 = vld [vmem:[#allocation5 + $0x560] sm:$0xff]
    %v2727 = vld [vmem:[#allocation5 + $0x5b8] sm:$0xff]
    %v2728 = vld [vmem:[#allocation5 + $0x5c0] sm:$0xff]
    %2729 = vmatprep.subr.mxu0 %v2728
    %2730 = vmatpush1.msra.mxu0 %v2727
    %2731 = vmatprep.subr.mxu0 %v2726
    %2732 = vmatpush1.msra.mxu0 %v2725
    %2733 = vmatprep.subr.mxu0 %v2724
    %2734 = vmatpush1.msra.mxu0 %v2723
    %2735 = vmatprep.subr.mxu0 %v2722
    %2736 = vmatpush1.msra.mxu0 %v2721
    %2737 = vmatprep.subr.mxu0 %v2720
    %2738 = vmatpush1.msra.mxu0 %v2719
    %2739 = vmatprep.subr.mxu0 %v2718
    %2740 = vmatpush1.msra.mxu0 %v2717
    %2741 = vmatprep.subr.mxu0 %v2716
    %2742 = vmatpush1.msra.mxu0 %v2715
    %2743 = vmatprep.subr.mxu0 %v2714
    %2744 = vmatpush1.msra.mxu0 %v2713
    %2745 = vmatprep.subr.mxu0 %v2712
    %2746 = vmatpush1.msra.mxu0 %v2711
    %2747 = vmatprep.subr.mxu0 %v2710
    %2748 = vmatpush1.msra.mxu0 %v2709
    %2749 = vmatprep.subr.mxu0 %v2708
    %2750 = vmatpush1.msra.mxu0 %v2707
    %2751 = vmatprep.subr.mxu0 %v2706
    %2752 = vmatpush1.msra.mxu0 %v2705
    %2753 = vmatprep.subr.mxu0 %v2704
    %2754 = vmatpush1.msra.mxu0 %v2703
    %2755 = vmatprep.subr.mxu0 %v2702
    %2756 = vmatpush1.msra.mxu0 %v2701
    %2757 = vmatprep.subr.mxu0 %v2700
    %2758 = vmatpush1.msra.mxu0 %v2699
    %2759 = vmatprep.subr.mxu0 %v2698
    %2760 = vmatpush1.msra.mxu0 %v2697
    %2761 = vmatprep.subr.mxu0 0.0
    %2762 = vmatpush2.msra.mxu0 0.0
    %2763 = vmatprep.subr.mxu0 0.0
    %2764 = vmatpush2.msra.mxu0 0.0
    %2765 = vmatprep.subr.mxu0 0.0
    %2766 = vmatpush2.msra.mxu0 0.0
    %2767 = vmatprep.subr.mxu0 0.0
    %2768 = vmatpush2.msra.mxu0 0.0
    %2769 = vmatprep.subr.mxu0 0.0
    %2770 = vmatpush2.msra.mxu0 0.0
    %2771 = vmatprep.subr.mxu0 0.0
    %2772 = vmatpush2.msra.mxu0 0.0
    %2773 = vmatprep.subr.mxu0 0.0
    %2774 = vmatpush2.msra.mxu0 0.0
    %2775 = vmatprep.subr.mxu0 0.0
    %2776 = vmatpush2.msra.mxu0 0.0
    %2777 = vmatprep.subr.mxu0 0.0
    %2778 = vmatpush2.msra.mxu0 0.0
    %2779 = vmatprep.subr.mxu0 0.0
    %2780 = vmatpush2.msra.mxu0 0.0
    %2781 = vmatprep.subr.mxu0 0.0
    %2782 = vmatpush2.msra.mxu0 0.0
    %2783 = vmatprep.subr.mxu0 0.0
    %2784 = vmatpush2.msra.mxu0 0.0
    %2785 = vmatprep.subr.mxu0 0.0
    %2786 = vmatpush2.msra.mxu0 0.0
    %2787 = vmatprep.subr.mxu0 0.0
    %2788 = vmatpush2.msra.mxu0 0.0
    %2789 = vmatprep.subr.mxu0 0.0
    %2790 = vmatpush2.msra.mxu0 0.0
    %2791 = vmatprep.subr.mxu0 0.0
    %2792 = vmatpush2.msra.mxu0 0.0
    %2793 = vmatprep.mubr.f32.mxu0 0.0
    %2794 = vmatmul.mubr.f32.gmra.mxu0 %v2458
    %v2795 = vpop.f32.mrf.mxu0
    %v2796 = vadd.f32 %v2623, %v2795
    %v2797 = vpop.f32.mrf.mxu0
    %v2798 = vadd.f32 %v2625, %v2797
    %2799 = vdwg.mxu0
    %v2800 = vxor.u32 %v2796, 2147483648
    %v2801 = vmul.f32 %v2800, 1.442695
    %v2802 = vpow.pop %v2801
    %v2803 = vadd.f32 %v2802, 1.0
    %v2804 = vrcp.pop %v2803
    %v2805 = vmul.f32 1.0, %v2804
    %v2806 = vxor.u32 %v2798, 2147483648
    %v2807 = vmul.f32 %v2806, 1.442695
    %v2808 = vpow.pop %v2807
    %v2809 = vadd.f32 %v2808, 1.0
    %v2810 = vrcp.pop %v2809
    %v2811 = vmul.f32 1.0, %v2810
    %v2812 = vmul.f32 %v2811, %v2458
    %v2813 = vld [vmem:[#allocation5 + $0x28] sm:$0xff]
    %v2814 = vld [vmem:[#allocation5 + $0x88] sm:$0xff]
    %v2815 = vld [vmem:[#allocation5 + $0xe8] sm:$0xff]
    %v2816 = vld [vmem:[#allocation5 + $0x148] sm:$0xff]
    %v2817 = vld [vmem:[#allocation5 + $0x1a8] sm:$0xff]
    %v2818 = vld [vmem:[#allocation5 + $0x208] sm:$0xff]
    %v2819 = vld [vmem:[#allocation5 + $0x268] sm:$0xff]
    %v2820 = vld [vmem:[#allocation5 + $0x2c8] sm:$0xff]
    %v2821 = vld [vmem:[#allocation5 + $0x328] sm:$0xff]
    %v2822 = vld [vmem:[#allocation5 + $0x388] sm:$0xff]
    %v2823 = vld [vmem:[#allocation5 + $0x3e8] sm:$0xff]
    %v2824 = vld [vmem:[#allocation5 + $0x448] sm:$0xff]
    %v2825 = vld [vmem:[#allocation5 + $0x4a8] sm:$0xff]
    %v2826 = vld [vmem:[#allocation5 + $0x508] sm:$0xff]
    %v2827 = vld [vmem:[#allocation5 + $0x568] sm:$0xff]
    %v2828 = vld [vmem:[#allocation5 + $0x5c8] sm:$0xff]
    %2829 = vmatprep.subr.mxu0 0.0
    %2830 = vmatpush1.msra.mxu0 %v2828
    %2831 = vmatprep.subr.mxu0 0.0
    %2832 = vmatpush1.msra.mxu0 %v2827
    %2833 = vmatprep.subr.mxu0 0.0
    %2834 = vmatpush1.msra.mxu0 %v2826
    %2835 = vmatprep.subr.mxu0 0.0
    %2836 = vmatpush1.msra.mxu0 %v2825
    %2837 = vmatprep.subr.mxu0 0.0
    %2838 = vmatpush1.msra.mxu0 %v2824
    %2839 = vmatprep.subr.mxu0 0.0
    %2840 = vmatpush1.msra.mxu0 %v2823
    %2841 = vmatprep.subr.mxu0 0.0
    %2842 = vmatpush1.msra.mxu0 %v2822
    %2843 = vmatprep.subr.mxu0 0.0
    %2844 = vmatpush1.msra.mxu0 %v2821
    %2845 = vmatprep.subr.mxu0 0.0
    %2846 = vmatpush1.msra.mxu0 %v2820
    %2847 = vmatprep.subr.mxu0 0.0
    %2848 = vmatpush1.msra.mxu0 %v2819
    %2849 = vmatprep.subr.mxu0 0.0
    %2850 = vmatpush1.msra.mxu0 %v2818
    %2851 = vmatprep.subr.mxu0 0.0
    %2852 = vmatpush1.msra.mxu0 %v2817
    %2853 = vmatprep.subr.mxu0 0.0
    %2854 = vmatpush1.msra.mxu0 %v2816
    %2855 = vmatprep.subr.mxu0 0.0
    %2856 = vmatpush1.msra.mxu0 %v2815
    %2857 = vmatprep.subr.mxu0 0.0
    %2858 = vmatpush1.msra.mxu0 %v2814
    %2859 = vmatprep.subr.mxu0 0.0
    %2860 = vmatpush1.msra.mxu0 %v2813
    %2861 = vmatprep.subr.mxu0 0.0
    %2862 = vmatpush2.msra.mxu0 0.0
    %2863 = vmatprep.subr.mxu0 0.0
    %2864 = vmatpush2.msra.mxu0 0.0
    %2865 = vmatprep.subr.mxu0 0.0
    %2866 = vmatpush2.msra.mxu0 0.0
    %2867 = vmatprep.subr.mxu0 0.0
    %2868 = vmatpush2.msra.mxu0 0.0
    %2869 = vmatprep.subr.mxu0 0.0
    %2870 = vmatpush2.msra.mxu0 0.0
    %2871 = vmatprep.subr.mxu0 0.0
    %2872 = vmatpush2.msra.mxu0 0.0
    %2873 = vmatprep.subr.mxu0 0.0
    %2874 = vmatpush2.msra.mxu0 0.0
    %2875 = vmatprep.subr.mxu0 0.0
    %2876 = vmatpush2.msra.mxu0 0.0
    %2877 = vmatprep.subr.mxu0 0.0
    %2878 = vmatpush2.msra.mxu0 0.0
    %2879 = vmatprep.subr.mxu0 0.0
    %2880 = vmatpush2.msra.mxu0 0.0
    %2881 = vmatprep.subr.mxu0 0.0
    %2882 = vmatpush2.msra.mxu0 0.0
    %2883 = vmatprep.subr.mxu0 0.0
    %2884 = vmatpush2.msra.mxu0 0.0
    %2885 = vmatprep.subr.mxu0 0.0
    %2886 = vmatpush2.msra.mxu0 0.0
    %2887 = vmatprep.subr.mxu0 0.0
    %2888 = vmatpush2.msra.mxu0 0.0
    %2889 = vmatprep.subr.mxu0 0.0
    %2890 = vmatpush2.msra.mxu0 0.0
    %2891 = vmatprep.subr.mxu0 0.0
    %2892 = vmatpush2.msra.mxu0 0.0
    %2893 = vmatprep.mubr.f32.mxu0 0.0
    %2894 = vmatmul.mubr.f32.gmra.mxu0 %v2812
    %v2895 = vpop.f32.mrf.mxu0
    %v2896 = vadd.f32 0.0, %v2895
    %v2897 = vpop.f32.mrf.mxu0
    %2898 = vdwg.mxu0
    %v2899 = vadd.f32 %v2694, %v2896
    %v2900 = vtanh.pop %v2899
    %v2901 = vsub.f32 %v2458, %v2900
    %v2902 = vmul.f32 %v2805, %v2901
    %v2903 = vadd.f32 %v2900, %v2902
    %v2904 = vld [vmem:[#allocation5 + $0x58] sm:$0xff]
    %v2905 = vld [vmem:[#allocation5 + $0xb8] sm:$0xff]
    %v2906 = vld [vmem:[#allocation5 + $0x118] sm:$0xff]
    %v2907 = vld [vmem:[#allocation5 + $0x178] sm:$0xff]
    %v2908 = vld [vmem:[#allocation5 + $0x1d8] sm:$0xff]
    %v2909 = vld [vmem:[#allocation5 + $0x238] sm:$0xff]
    %v2910 = vld [vmem:[#allocation5 + $0x298] sm:$0xff]
    %v2911 = vld [vmem:[#allocation5 + $0x2f8] sm:$0xff]
    %v2912 = vld [vmem:[#allocation5 + $0x358] sm:$0xff]
    %v2913 = vld [vmem:[#allocation5 + $0x3b8] sm:$0xff]
    %v2914 = vld [vmem:[#allocation5 + $0x418] sm:$0xff]
    %v2915 = vld [vmem:[#allocation5 + $0x478] sm:$0xff]
    %v2916 = vld [vmem:[#allocation5 + $0x4d8] sm:$0xff]
    %v2917 = vld [vmem:[#allocation5 + $0x538] sm:$0xff]
    %v2918 = vld [vmem:[#allocation5 + $0x598] sm:$0xff]
    %v2919 = vld [vmem:[#allocation5 + $0x5f8] sm:$0xff]
    %2920 = vmatprep.subr.mxu0 0.0
    %2921 = vmatpush1.msra.mxu0 %v2919
    %2922 = vmatprep.subr.mxu0 0.0
    %2923 = vmatpush1.msra.mxu0 %v2918
    %2924 = vmatprep.subr.mxu0 0.0
    %2925 = vmatpush1.msra.mxu0 %v2917
    %2926 = vmatprep.subr.mxu0 0.0
    %2927 = vmatpush1.msra.mxu0 %v2916
    %2928 = vmatprep.subr.mxu0 0.0
    %2929 = vmatpush1.msra.mxu0 %v2915
    %2930 = vmatprep.subr.mxu0 0.0
    %2931 = vmatpush1.msra.mxu0 %v2914
    %2932 = vmatprep.subr.mxu0 0.0
    %2933 = vmatpush1.msra.mxu0 %v2913
    %2934 = vmatprep.subr.mxu0 0.0
    %2935 = vmatpush1.msra.mxu0 %v2912
    %2936 = vmatprep.subr.mxu0 0.0
    %2937 = vmatpush1.msra.mxu0 %v2911
    %2938 = vmatprep.subr.mxu0 0.0
    %2939 = vmatpush1.msra.mxu0 %v2910
    %2940 = vmatprep.subr.mxu0 0.0
    %2941 = vmatpush1.msra.mxu0 %v2909
    %2942 = vmatprep.subr.mxu0 0.0
    %2943 = vmatpush1.msra.mxu0 %v2908
    %2944 = vmatprep.subr.mxu0 0.0
    %2945 = vmatpush1.msra.mxu0 %v2907
    %2946 = vmatprep.subr.mxu0 0.0
    %2947 = vmatpush1.msra.mxu0 %v2906
    %2948 = vmatprep.subr.mxu0 0.0
    %2949 = vmatpush1.msra.mxu0 %v2905
    %2950 = vmatprep.subr.mxu0 0.0
    %2951 = vmatpush1.msra.mxu0 %v2904
    %2952 = vmatprep.subr.mxu0 0.0
    %2953 = vmatpush2.msra.mxu0 0.0
    %2954 = vmatprep.subr.mxu0 0.0
    %2955 = vmatpush2.msra.mxu0 0.0
    %2956 = vmatprep.subr.mxu0 0.0
    %2957 = vmatpush2.msra.mxu0 0.0
    %2958 = vmatprep.subr.mxu0 0.0
    %2959 = vmatpush2.msra.mxu0 0.0
    %2960 = vmatprep.subr.mxu0 0.0
    %2961 = vmatpush2.msra.mxu0 0.0
    %2962 = vmatprep.subr.mxu0 0.0
    %2963 = vmatpush2.msra.mxu0 0.0
    %2964 = vmatprep.subr.mxu0 0.0
    %2965 = vmatpush2.msra.mxu0 0.0
    %2966 = vmatprep.subr.mxu0 0.0
    %2967 = vmatpush2.msra.mxu0 0.0
    %2968 = vmatprep.subr.mxu0 0.0
    %2969 = vmatpush2.msra.mxu0 0.0
    %2970 = vmatprep.subr.mxu0 0.0
    %2971 = vmatpush2.msra.mxu0 0.0
    %2972 = vmatprep.subr.mxu0 0.0
    %2973 = vmatpush2.msra.mxu0 0.0
    %2974 = vmatprep.subr.mxu0 0.0
    %2975 = vmatpush2.msra.mxu0 0.0
    %2976 = vmatprep.subr.mxu0 0.0
    %2977 = vmatpush2.msra.mxu0 0.0
    %2978 = vmatprep.subr.mxu0 0.0
    %2979 = vmatpush2.msra.mxu0 0.0
    %2980 = vmatprep.subr.mxu0 0.0
    %2981 = vmatpush2.msra.mxu0 0.0
    %2982 = vmatprep.subr.mxu0 0.0
    %2983 = vmatpush2.msra.mxu0 0.0
    %2984 = vmatprep.mubr.f32.mxu0 0.0
    %2985 = vmatmul.mubr.f32.gmra.mxu0 %v2903
    %v2986 = vpop.f32.mrf.mxu0
    %v2987 = vadd.f32 %v1661, %v2986
    %v2988 = vpop.f32.mrf.mxu0
    %2989 = vdwg.mxu0
    %v2990 = vmul.f32 %v2547, %v2092
    %v2991 = vadd.f32 %v2987, %v2990
    %v2992 = vadd.f32 %v2991, %v2100
    %s2993 = scalar_lea.vmem [#allocation7], 4
    %2994 = vst.msk [vmem:[%s2993] sm:$0x3] %vm2103, %v2992
    // Predicated region
    $region26: #{dcrnn_forward_fused.1} parent=1 // pred_check
      _
    $region27: #{dcrnn_forward_fused.1} parent=1 // pred_check_branch
      %2996 = sbr.rel (0) target = $region29
    $region28: #{dcrnn_forward_fused.1} parent=1 // pred_region
      %s2998 = ssub.s32 96, 96
      %2999 = vsyncadd [#allocation4], %s2998
      %s3000 = sshll.u32 [#allocation7], 4
      %s3001 = int_to_ptr.vmem [resolvable:$true] %s3000
      %3006 = dma.vmem_to_hbm [thread:$0]  %s3001, 96, %s4, [#allocation4], 32, 32, 2
    $region29: #{dcrnn_forward_fused.1} parent=1 // pred_fallthru
      _
    // Predicated region
    $region30: #{dcrnn_forward_fused.1} parent=1 // pred_check
      _
    $region31: #{dcrnn_forward_fused.1} parent=1 // pred_check_branch
      %3008 = sbr.rel (0) target = $region33
    $region32: #{dcrnn_forward_fused.1} parent=1 // pred_region
      %3009 = dma.done [#allocation4], 96
    $region33: #{dcrnn_forward_fused.1} parent=1 // pred_fallthru
      _
    %3010 = vsyncpa [#allocation3], 1
    %3011 = vsyncpa [#allocation6], 1
    %3012 = vsyncpa [#allocation4], 1

</llo_original>
